<compile_context>
chip_gen: v7x
topology: tpu7x:2x2x1
jax: 0.10.0
libtpu: 0.0.40
codegen_flags: <defaults>
</compile_context>

<pallas_src>
import jax
import jax.numpy as jnp
import numpy as np
from jax import lax
from jax.experimental import pallas as pl
from jax.experimental.pallas import tpu as pltpu

D_MODEL = 32
NHEAD = 4
D_FF = 64
HEAD_DIM = D_MODEL // NHEAD
SCALE = 1.0 / float(HEAD_DIM) ** 0.5
LN_EPS = 1e-5

# Rows of the packed constants slab (one 128-lane sublane row each).
_C_BQKV, _C_BO, _C_B1, _C_B2, _C_G1, _C_BT1, _C_G2, _C_BT2 = range(8)
_C_LANES = 128


def _layernorm(x, gamma, beta):
    mu = jnp.mean(x, axis=-1, keepdims=True)
    var = jnp.mean((x - mu) ** 2, axis=-1, keepdims=True)
    return (x - mu) * lax.rsqrt(var + LN_EPS) * gamma + beta


def encoder_layer_kernel(x_ref, wqkv_ref, wo_ref, w1_ref, w2_ref, c_ref, o_ref):
    bblk = x_ref.shape[0]
    s = x_ref.shape[1] // D_MODEL
    rows = bblk * s

    # ---- lane-dense load + single relayout in ----
    # x_ref is (bblk, S*D) (256 lanes, dense DMA).  Re-layout once into token-major rows:
    # row r = t*bblk + b holds token t of batch element b.  All intermediate compute stays
    # in this flat (rows, features) layout until the single relayout out.
    x2d = x_ref[...].astype(jnp.float32)                                     # (bblk, S*D)
    xf = jnp.concatenate(
        [x2d[:, t * D_MODEL:(t + 1) * D_MODEL] for t in range(s)], axis=0)   # (rows, D)

    # Packed bias / LayerNorm constants: one (8, 128) slab -> one DMA.
    bqkv = c_ref[_C_BQKV:_C_BQKV + 1, :3 * D_MODEL]
    bo = c_ref[_C_BO:_C_BO + 1, :D_MODEL]
    b1 = c_ref[_C_B1:_C_B1 + 1, :D_FF]
    b2 = c_ref[_C_B2:_C_B2 + 1, :D_MODEL]
    g1 = c_ref[_C_G1:_C_G1 + 1, :D_MODEL]
    bt1 = c_ref[_C_BT1:_C_BT1 + 1, :D_MODEL]
    g2 = c_ref[_C_G2:_C_G2 + 1, :D_MODEL]
    bt2 = c_ref[_C_BT2:_C_BT2 + 1, :D_MODEL]

    # ---- self attention ----
    # Single in-projection matmul; wqkv pre-transposed to (D, 3D) on the host.
    qkv = jnp.dot(xf, wqkv_ref[...], preferred_element_type=jnp.float32) + bqkv  # (rows, 3D)

    # Block-diagonal attention: one (rows, rows) score matmul per head; cross-batch
    # entries masked before softmax.  Row r belongs to batch element (r % bblk).
    rid = lax.broadcasted_iota(jnp.int32, (rows, rows), 0)
    cid = lax.broadcasted_iota(jnp.int32, (rows, rows), 1)
    same_batch = (rid % bblk) == (cid % bblk)
    neg_big = jnp.float32(-1e30)

    attn = jnp.zeros((rows, D_MODEL), jnp.float32)
    for h in range(NHEAD):
        lo = h * HEAD_DIM
        qh = qkv[:, lo:lo + HEAD_DIM]                                # (rows, HD)
        kh = qkv[:, D_MODEL + lo:D_MODEL + lo + HEAD_DIM]            # (rows, HD)
        vh = qkv[:, 2 * D_MODEL + lo:2 * D_MODEL + lo + HEAD_DIM]    # (rows, HD)

        sc = lax.dot_general(qh, kh, (((1,), (1,)), ((), ())),
                             preferred_element_type=jnp.float32) * SCALE      # (rows, rows)
        sc = jnp.where(same_batch, sc, neg_big)
        sc = sc - jnp.max(sc, axis=-1, keepdims=True)
        pr = jnp.exp(sc)
        # approx reciprocal is fine for a single layer (passes rtol=1e-3); use
        # approx=False if stacking many layers.
        pr = pr * pl.reciprocal(jnp.sum(pr, axis=-1, keepdims=True), approx=True)

        pv = jnp.dot(pr, vh, preferred_element_type=jnp.float32)              # (rows, HD)
        # Fold the out-projection per head (no head re-concatenation):
        #   attn = sum_h (P_h V_h) @ Wo_T[h*HD:(h+1)*HD, :]
        attn = attn + jnp.dot(pv, wo_ref[lo:lo + HEAD_DIM, :],
                              preferred_element_type=jnp.float32)             # (rows, D)
    attn = attn + bo

    # residual + LayerNorm1 (dropout1 = identity in eval mode)
    h1 = _layernorm(xf + attn, g1, bt1)

    # ---- feed-forward: linear1 -> ReLU -> linear2 (weights pre-transposed) ----
    f = jnp.dot(h1, w1_ref[...], preferred_element_type=jnp.float32) + b1
    f = jnp.maximum(f, 0.0)
    f = jnp.dot(f, w2_ref[...], preferred_element_type=jnp.float32) + b2

    # residual + LayerNorm2 (dropout2 = identity in eval mode)
    h2 = _layernorm(h1 + f, g2, bt2)

    # ---- single relayout out + lane-dense (256-lane) unmasked store ----
    out2d = jnp.concatenate(
        [h2[t * bblk:(t + 1) * bblk, :] for t in range(s)], axis=1)           # (bblk, S*D)
    o_ref[...] = out2d.astype(o_ref.dtype)


def init_params(key):
    ks = jax.random.split(key, 8)
    s = 0.02
    return {
        "wqkv": s * jax.random.normal(ks[0], (3 * D_MODEL, D_MODEL), jnp.float32),
        "bqkv": s * jax.random.normal(ks[1], (1, 3 * D_MODEL), jnp.float32),
        "wo":   s * jax.random.normal(ks[2], (D_MODEL, D_MODEL), jnp.float32),
        "bo":   s * jax.random.normal(ks[3], (1, D_MODEL), jnp.float32),
        "w1":   s * jax.random.normal(ks[4], (D_FF, D_MODEL), jnp.float32),
        "b1":   s * jax.random.normal(ks[5], (1, D_FF), jnp.float32),
        "w2":   s * jax.random.normal(ks[6], (D_MODEL, D_FF), jnp.float32),
        "b2":   s * jax.random.normal(ks[7], (1, D_MODEL), jnp.float32),
        "g1":   jnp.ones((1, D_MODEL), jnp.float32),
        "bt1":  jnp.zeros((1, D_MODEL), jnp.float32),
        "g2":   jnp.ones((1, D_MODEL), jnp.float32),
        "bt2":  jnp.zeros((1, D_MODEL), jnp.float32),
    }


def _pack_consts(p):
    c = jnp.zeros((8, _C_LANES), jnp.float32)
    c = c.at[_C_BQKV, :3 * D_MODEL].set(p["bqkv"].reshape(-1))
    c = c.at[_C_BO, :D_MODEL].set(p["bo"].reshape(-1))
    c = c.at[_C_B1, :D_FF].set(p["b1"].reshape(-1))
    c = c.at[_C_B2, :D_MODEL].set(p["b2"].reshape(-1))
    c = c.at[_C_G1, :D_MODEL].set(p["g1"].reshape(-1))
    c = c.at[_C_BT1, :D_MODEL].set(p["bt1"].reshape(-1))
    c = c.at[_C_G2, :D_MODEL].set(p["g2"].reshape(-1))
    c = c.at[_C_BT2, :D_MODEL].set(p["bt2"].reshape(-1))
    return c


def encoder_layer(x, p, block_b=None):
    B, S, D = x.shape
    assert D == D_MODEL
    if block_b is None:
        # Single grid step: v5e/v6e are single-TensorCore so extra grid steps are pure
        # per-step overhead; on v7x pass block_b = B // 2 to benchmark the 2-TC split.
        block_b = B
    assert B % block_b == 0
    # TODO(synk): if this layer is scaled up, make block_b VMEM-aware (keep the
    # double-buffered activation tile under the scoped VMEM limit) and set
    # pltpu.CompilerParams(vmem_limit_bytes=...).  Irrelevant at these toy sizes.

    # Lane-dense kernel I/O: (B, S*D) = 256 lanes.
    x2d = x.reshape(B, S * D)

    # Pre-transpose weights ONCE on the host; kernel never transposes weights.
    weights = [
        p["wqkv"].T,        # (D, 3D)
        p["wo"].T,          # (D, D)
        p["w1"].T,          # (D, D_FF)
        p["w2"].T,          # (D_FF, D)
        _pack_consts(p),    # (8, 128) packed biases / LN params -> one DMA
    ]

    in_specs = [pl.BlockSpec((block_b, S * D), lambda b: (b, 0))]
    for w in weights:
        in_specs.append(pl.BlockSpec(w.shape, lambda b: (0, 0)))

    out2d = pl.pallas_call(
        encoder_layer_kernel,
        out_shape=jax.ShapeDtypeStruct((B, S * D), x.dtype),
        grid=(B // block_b,),
        in_specs=in_specs,
        out_specs=pl.BlockSpec((block_b, S * D), lambda b: (b, 0)),
        compiler_params=pltpu.CompilerParams(dimension_semantics=("parallel",)),
    )(x2d, *weights)
    return out2d.reshape(B, S, D)


def reference(x, p):
    B, S, D = x.shape
    qkv = x @ p["wqkv"].T + p["bqkv"]
    q, k, v = qkv[..., :D], qkv[..., D:2 * D], qkv[..., 2 * D:]
    q = q.reshape(B, S, NHEAD, HEAD_DIM)
    k = k.reshape(B, S, NHEAD, HEAD_DIM)
    v = v.reshape(B, S, NHEAD, HEAD_DIM)
    s = jnp.einsum("bqhd,bkhd->bhqk", q, k) * SCALE
    pattn = jax.nn.softmax(s, axis=-1)
    o = jnp.einsum("bhqk,bkhd->bqhd", pattn, v).reshape(B, S, D)
    attn = o @ p["wo"].T + p["bo"]

    def ln(z, g, b):
        mu = jnp.mean(z, -1, keepdims=True)
        var = jnp.mean((z - mu) ** 2, -1, keepdims=True)
        return (z - mu) * jax.lax.rsqrt(var + LN_EPS) * g + b

    h1 = ln(x + attn, p["g1"], p["bt1"])
    f = jnp.maximum(h1 @ p["w1"].T + p["b1"], 0.0) @ p["w2"].T + p["b2"]
    return ln(h1 + f, p["g2"], p["bt2"])


if __name__ == "__main__":
    key = jax.random.PRNGKey(0)
    kx, kp = jax.random.split(key)
    B, S = 8, 8
    x = jax.random.normal(kx, (B, S, D_MODEL), jnp.float32)
    params = init_params(kp)

    out = encoder_layer(x, params)
    out = jax.block_until_ready(out)

    ref = reference(x, params)
    assert out.shape == (B, S, D_MODEL)
    np.testing.assert_allclose(np.asarray(out), np.asarray(ref), rtol=1e-3, atol=1e-4)
    print("KERNEL_OK")
</pallas_src>

<mosaic_0001>
module attributes {stable_mosaic.version = 11 : i64} {
  func.func @encoder_layer_kernel(%arg0: i32, %arg1: memref<8x256xf32, #tpu.memory_space<vmem>>, %arg2: memref<32x96xf32, #tpu.memory_space<vmem>>, %arg3: memref<32x32xf32, #tpu.memory_space<vmem>>, %arg4: memref<32x64xf32, #tpu.memory_space<vmem>>, %arg5: memref<64x32xf32, #tpu.memory_space<vmem>>, %arg6: memref<8x128xf32, #tpu.memory_space<vmem>>, %arg7: memref<8x256xf32, #tpu.memory_space<vmem>>) attributes {dimension_semantics = [#tpu.dimension_semantics<parallel>], iteration_bounds = array<i64: 1>, scalar_prefetch = 0 : i64, scratch_operands = 0 : i64, tpu.core_type = #tpu.core_type<tc>, window_params = [{transform_indices = @transform_0, window_bounds = array<i64: 8, 256>}, {pipeline_mode = #tpu.pipeline_mode<synchronous>, transform_indices = @transform_1, window_bounds = array<i64: 32, 96>}, {pipeline_mode = #tpu.pipeline_mode<synchronous>, transform_indices = @transform_2, window_bounds = array<i64: 32, 32>}, {pipeline_mode = #tpu.pipeline_mode<synchronous>, transform_indices = @transform_3, window_bounds = array<i64: 32, 64>}, {pipeline_mode = #tpu.pipeline_mode<synchronous>, transform_indices = @transform_4, window_bounds = array<i64: 64, 32>}, {pipeline_mode = #tpu.pipeline_mode<synchronous>, transform_indices = @transform_5, window_bounds = array<i64: 8, 128>}, {transform_indices = @transform_6, window_bounds = array<i64: 8, 256>}]} {
    %c0 = arith.constant 0 : index
    %c0_0 = arith.constant 0 : index
    %0 = vector.load %arg1[%c0, %c0_0] : memref<8x256xf32, #tpu.memory_space<vmem>>, vector<8x256xf32>
    %1 = vector.extract_strided_slice %0 {offsets = [0, 0], sizes = [8, 32], strides = [1, 1]} : vector<8x256xf32> to vector<8x32xf32>
    %2 = vector.extract_strided_slice %0 {offsets = [0, 32], sizes = [8, 32], strides = [1, 1]} : vector<8x256xf32> to vector<8x32xf32>
    %3 = vector.extract_strided_slice %0 {offsets = [0, 64], sizes = [8, 32], strides = [1, 1]} : vector<8x256xf32> to vector<8x32xf32>
    %4 = vector.extract_strided_slice %0 {offsets = [0, 96], sizes = [8, 32], strides = [1, 1]} : vector<8x256xf32> to vector<8x32xf32>
    %5 = vector.extract_strided_slice %0 {offsets = [0, 128], sizes = [8, 32], strides = [1, 1]} : vector<8x256xf32> to vector<8x32xf32>
    %6 = vector.extract_strided_slice %0 {offsets = [0, 160], sizes = [8, 32], strides = [1, 1]} : vector<8x256xf32> to vector<8x32xf32>
    %7 = vector.extract_strided_slice %0 {offsets = [0, 192], sizes = [8, 32], strides = [1, 1]} : vector<8x256xf32> to vector<8x32xf32>
    %8 = vector.extract_strided_slice %0 {offsets = [0, 224], sizes = [8, 32], strides = [1, 1]} : vector<8x256xf32> to vector<8x32xf32>
    %9 = tpu.concatenate %1, %2, %3, %4, %5, %6, %7, %8 in 0 : vector<8x32xf32>, vector<8x32xf32>, vector<8x32xf32>, vector<8x32xf32>, vector<8x32xf32>, vector<8x32xf32>, vector<8x32xf32>, vector<8x32xf32> -> vector<64x32xf32>
    %c0_1 = arith.constant 0 : index
    %c0_2 = arith.constant 0 : index
    %10 = vector.load %arg6[%c0_1, %c0_2] : memref<8x128xf32, #tpu.memory_space<vmem>>, vector<1x96xf32>
    %c1 = arith.constant 1 : index
    %c0_3 = arith.constant 0 : index
    %11 = vector.load %arg6[%c1, %c0_3] : memref<8x128xf32, #tpu.memory_space<vmem>>, vector<1x32xf32>
    %c2 = arith.constant 2 : index
    %c0_4 = arith.constant 0 : index
    %12 = vector.load %arg6[%c2, %c0_4] : memref<8x128xf32, #tpu.memory_space<vmem>>, vector<1x64xf32>
    %c3 = arith.constant 3 : index
    %c0_5 = arith.constant 0 : index
    %13 = vector.load %arg6[%c3, %c0_5] : memref<8x128xf32, #tpu.memory_space<vmem>>, vector<1x32xf32>
    %c4 = arith.constant 4 : index
    %c0_6 = arith.constant 0 : index
    %14 = vector.load %arg6[%c4, %c0_6] : memref<8x128xf32, #tpu.memory_space<vmem>>, vector<1x32xf32>
    %c5 = arith.constant 5 : index
    %c0_7 = arith.constant 0 : index
    %15 = vector.load %arg6[%c5, %c0_7] : memref<8x128xf32, #tpu.memory_space<vmem>>, vector<1x32xf32>
    %c6 = arith.constant 6 : index
    %c0_8 = arith.constant 0 : index
    %16 = vector.load %arg6[%c6, %c0_8] : memref<8x128xf32, #tpu.memory_space<vmem>>, vector<1x32xf32>
    %c7 = arith.constant 7 : index
    %c0_9 = arith.constant 0 : index
    %17 = vector.load %arg6[%c7, %c0_9] : memref<8x128xf32, #tpu.memory_space<vmem>>, vector<1x32xf32>
    %c0_10 = arith.constant 0 : index
    %c0_11 = arith.constant 0 : index
    %18 = vector.load %arg2[%c0_10, %c0_11] : memref<32x96xf32, #tpu.memory_space<vmem>>, vector<32x96xf32>
    %cst = arith.constant dense<0.000000e+00> : vector<64x96xf32>
    %19 = tpu.matmul %9, %18, %cst {dimension_numbers = #tpu.dot_dimension_numbers<[1], [0], [0], [1], [0, 0, 1, 1], [], []>} : vector<64x32xf32>, vector<32x96xf32>, vector<64x96xf32> -> vector<64x96xf32>
    %20 = vector.broadcast %10 : vector<1x96xf32> to vector<64x96xf32>
    %21 = arith.addf %19, %20 : vector<64x96xf32>
    %22 = tpu.iota {dimensions = array<i32: 0>} : vector<64x64xi32>
    %23 = tpu.iota {dimensions = array<i32: 1>} : vector<64x64xi32>
    %c8_i32 = arith.constant 8 : i32
    %c0_i32 = arith.constant 0 : i32
    %24 = arith.cmpi eq, %c8_i32, %c0_i32 : i32
    %c1_i32 = arith.constant 1 : i32
    %25 = arith.select %24, %c1_i32, %c8_i32 : i32
    %26 = vector.broadcast %25 : i32 to vector<64x64xi32>
    %27 = arith.remsi %22, %26 : vector<64x64xi32>
    %c0_i32_12 = arith.constant 0 : i32
    %28 = vector.broadcast %c0_i32_12 : i32 to vector<64x64xi32>
    %29 = arith.cmpi ne, %27, %28 : vector<64x64xi32>
    %c0_i32_13 = arith.constant 0 : i32
    %30 = vector.broadcast %c0_i32_13 : i32 to vector<64x64xi32>
    %31 = arith.cmpi slt, %27, %30 : vector<64x64xi32>
    %c0_i32_14 = arith.constant 0 : i32
    %32 = arith.cmpi slt, %25, %c0_i32_14 : i32
    %33 = vector.broadcast %32 : i1 to vector<64x64xi1>
    %34 = vector.broadcast %33 : vector<64x64xi1> to vector<64x64xi1>
    %35 = arith.xori %31, %34 : vector<64x64xi1>
    %36 = arith.andi %35, %29 : vector<64x64xi1>
    %37 = vector.broadcast %25 : i32 to vector<64x64xi32>
    %38 = arith.addi %27, %37 : vector<64x64xi32>
    %39 = arith.select %36, %38, %27 : vector<64x64xi1>, vector<64x64xi32>
    %c8_i32_15 = arith.constant 8 : i32
    %c0_i32_16 = arith.constant 0 : i32
    %40 = arith.cmpi eq, %c8_i32_15, %c0_i32_16 : i32
    %c1_i32_17 = arith.constant 1 : i32
    %41 = arith.select %40, %c1_i32_17, %c8_i32_15 : i32
    %42 = vector.broadcast %41 : i32 to vector<64x64xi32>
    %43 = arith.remsi %23, %42 : vector<64x64xi32>
    %c0_i32_18 = arith.constant 0 : i32
    %44 = vector.broadcast %c0_i32_18 : i32 to vector<64x64xi32>
    %45 = arith.cmpi ne, %43, %44 : vector<64x64xi32>
    %c0_i32_19 = arith.constant 0 : i32
    %46 = vector.broadcast %c0_i32_19 : i32 to vector<64x64xi32>
    %47 = arith.cmpi slt, %43, %46 : vector<64x64xi32>
    %c0_i32_20 = arith.constant 0 : i32
    %48 = arith.cmpi slt, %41, %c0_i32_20 : i32
    %49 = vector.broadcast %48 : i1 to vector<64x64xi1>
    %50 = vector.broadcast %49 : vector<64x64xi1> to vector<64x64xi1>
    %51 = arith.xori %47, %50 : vector<64x64xi1>
    %52 = arith.andi %51, %45 : vector<64x64xi1>
    %53 = vector.broadcast %41 : i32 to vector<64x64xi32>
    %54 = arith.addi %43, %53 : vector<64x64xi32>
    %55 = arith.select %52, %54, %43 : vector<64x64xi1>, vector<64x64xi32>
    %56 = arith.cmpi eq, %39, %55 : vector<64x64xi32>
    %cst_21 = arith.constant 0.000000e+00 : f32
    %57 = vector.broadcast %cst_21 : f32 to vector<64x32xf32>
    %58 = vector.extract_strided_slice %21 {offsets = [0, 0], sizes = [64, 8], strides = [1, 1]} : vector<64x96xf32> to vector<64x8xf32>
    %59 = vector.extract_strided_slice %21 {offsets = [0, 32], sizes = [64, 8], strides = [1, 1]} : vector<64x96xf32> to vector<64x8xf32>
    %60 = vector.extract_strided_slice %21 {offsets = [0, 64], sizes = [64, 8], strides = [1, 1]} : vector<64x96xf32> to vector<64x8xf32>
    %cst_22 = arith.constant dense<0.000000e+00> : vector<64x64xf32>
    %61 = tpu.matmul %58, %59, %cst_22 {dimension_numbers = #tpu.dot_dimension_numbers<[1], [1], [0], [0], [0, 0, 1, 0], [], []>} : vector<64x8xf32>, vector<64x8xf32>, vector<64x64xf32> -> vector<64x64xf32>
    %cst_23 = arith.constant 0.353553385 : f32
    %62 = vector.broadcast %cst_23 : f32 to vector<64x64xf32>
    %63 = arith.mulf %61, %62 : vector<64x64xf32>
    %cst_24 = arith.constant -1.000000e+30 : f32
    %64 = vector.broadcast %cst_24 : f32 to vector<64x64xf32>
    %65 = arith.select %56, %63, %64 : vector<64x64xi1>, vector<64x64xf32>
    %cst_25 = arith.constant dense<0xFF800000> : vector<64xf32>
    %66 = vector.multi_reduction <maximumf>, %65, %cst_25 [1] : vector<64x64xf32> to vector<64xf32>
    %67 = vector.shape_cast %66 : vector<64xf32> to vector<64x1xf32>
    %68 = vector.broadcast %67 : vector<64x1xf32> to vector<64x64xf32>
    %69 = arith.subf %65, %68 : vector<64x64xf32>
    %70 = math.exp %69 : vector<64x64xf32>
    %cst_26 = arith.constant dense<0.000000e+00> : vector<64xf32>
    %71 = vector.multi_reduction <add>, %70, %cst_26 [1] : vector<64x64xf32> to vector<64xf32>
    %72 = vector.shape_cast %71 : vector<64xf32> to vector<64x1xf32>
    %73 = tpu.reciprocal %72 {approx = true} : vector<64x1xf32> -> vector<64x1xf32>
    %74 = vector.broadcast %73 : vector<64x1xf32> to vector<64x64xf32>
    %75 = arith.mulf %70, %74 : vector<64x64xf32>
    %cst_27 = arith.constant dense<0.000000e+00> : vector<64x8xf32>
    %76 = tpu.matmul %75, %60, %cst_27 {dimension_numbers = #tpu.dot_dimension_numbers<[1], [0], [0], [1], [0, 0, 1, 1], [], []>} : vector<64x64xf32>, vector<64x8xf32>, vector<64x8xf32> -> vector<64x8xf32>
    %c0_28 = arith.constant 0 : index
    %c0_29 = arith.constant 0 : index
    %77 = vector.load %arg3[%c0_28, %c0_29] : memref<32x32xf32, #tpu.memory_space<vmem>>, vector<8x32xf32>
    %cst_30 = arith.constant dense<0.000000e+00> : vector<64x32xf32>
    %78 = tpu.matmul %76, %77, %cst_30 {dimension_numbers = #tpu.dot_dimension_numbers<[1], [0], [0], [1], [0, 0, 1, 1], [], []>} : vector<64x8xf32>, vector<8x32xf32>, vector<64x32xf32> -> vector<64x32xf32>
    %79 = arith.addf %57, %78 : vector<64x32xf32>
    %80 = vector.extract_strided_slice %21 {offsets = [0, 8], sizes = [64, 8], strides = [1, 1]} : vector<64x96xf32> to vector<64x8xf32>
    %81 = vector.extract_strided_slice %21 {offsets = [0, 40], sizes = [64, 8], strides = [1, 1]} : vector<64x96xf32> to vector<64x8xf32>
    %82 = vector.extract_strided_slice %21 {offsets = [0, 72], sizes = [64, 8], strides = [1, 1]} : vector<64x96xf32> to vector<64x8xf32>
    %cst_31 = arith.constant dense<0.000000e+00> : vector<64x64xf32>
    %83 = tpu.matmul %80, %81, %cst_31 {dimension_numbers = #tpu.dot_dimension_numbers<[1], [1], [0], [0], [0, 0, 1, 0], [], []>} : vector<64x8xf32>, vector<64x8xf32>, vector<64x64xf32> -> vector<64x64xf32>
    %cst_32 = arith.constant 0.353553385 : f32
    %84 = vector.broadcast %cst_32 : f32 to vector<64x64xf32>
    %85 = arith.mulf %83, %84 : vector<64x64xf32>
    %cst_33 = arith.constant -1.000000e+30 : f32
    %86 = vector.broadcast %cst_33 : f32 to vector<64x64xf32>
    %87 = arith.select %56, %85, %86 : vector<64x64xi1>, vector<64x64xf32>
    %cst_34 = arith.constant dense<0xFF800000> : vector<64xf32>
    %88 = vector.multi_reduction <maximumf>, %87, %cst_34 [1] : vector<64x64xf32> to vector<64xf32>
    %89 = vector.shape_cast %88 : vector<64xf32> to vector<64x1xf32>
    %90 = vector.broadcast %89 : vector<64x1xf32> to vector<64x64xf32>
    %91 = arith.subf %87, %90 : vector<64x64xf32>
    %92 = math.exp %91 : vector<64x64xf32>
    %cst_35 = arith.constant dense<0.000000e+00> : vector<64xf32>
    %93 = vector.multi_reduction <add>, %92, %cst_35 [1] : vector<64x64xf32> to vector<64xf32>
    %94 = vector.shape_cast %93 : vector<64xf32> to vector<64x1xf32>
    %95 = tpu.reciprocal %94 {approx = true} : vector<64x1xf32> -> vector<64x1xf32>
    %96 = vector.broadcast %95 : vector<64x1xf32> to vector<64x64xf32>
    %97 = arith.mulf %92, %96 : vector<64x64xf32>
    %cst_36 = arith.constant dense<0.000000e+00> : vector<64x8xf32>
    %98 = tpu.matmul %97, %82, %cst_36 {dimension_numbers = #tpu.dot_dimension_numbers<[1], [0], [0], [1], [0, 0, 1, 1], [], []>} : vector<64x64xf32>, vector<64x8xf32>, vector<64x8xf32> -> vector<64x8xf32>
    %c8 = arith.constant 8 : index
    %c0_37 = arith.constant 0 : index
    %99 = vector.load %arg3[%c8, %c0_37] : memref<32x32xf32, #tpu.memory_space<vmem>>, vector<8x32xf32>
    %cst_38 = arith.constant dense<0.000000e+00> : vector<64x32xf32>
    %100 = tpu.matmul %98, %99, %cst_38 {dimension_numbers = #tpu.dot_dimension_numbers<[1], [0], [0], [1], [0, 0, 1, 1], [], []>} : vector<64x8xf32>, vector<8x32xf32>, vector<64x32xf32> -> vector<64x32xf32>
    %101 = arith.addf %79, %100 : vector<64x32xf32>
    %102 = vector.extract_strided_slice %21 {offsets = [0, 16], sizes = [64, 8], strides = [1, 1]} : vector<64x96xf32> to vector<64x8xf32>
    %103 = vector.extract_strided_slice %21 {offsets = [0, 48], sizes = [64, 8], strides = [1, 1]} : vector<64x96xf32> to vector<64x8xf32>
    %104 = vector.extract_strided_slice %21 {offsets = [0, 80], sizes = [64, 8], strides = [1, 1]} : vector<64x96xf32> to vector<64x8xf32>
    %cst_39 = arith.constant dense<0.000000e+00> : vector<64x64xf32>
    %105 = tpu.matmul %102, %103, %cst_39 {dimension_numbers = #tpu.dot_dimension_numbers<[1], [1], [0], [0], [0, 0, 1, 0], [], []>} : vector<64x8xf32>, vector<64x8xf32>, vector<64x64xf32> -> vector<64x64xf32>
    %cst_40 = arith.constant 0.353553385 : f32
    %106 = vector.broadcast %cst_40 : f32 to vector<64x64xf32>
    %107 = arith.mulf %105, %106 : vector<64x64xf32>
    %cst_41 = arith.constant -1.000000e+30 : f32
    %108 = vector.broadcast %cst_41 : f32 to vector<64x64xf32>
    %109 = arith.select %56, %107, %108 : vector<64x64xi1>, vector<64x64xf32>
    %cst_42 = arith.constant dense<0xFF800000> : vector<64xf32>
    %110 = vector.multi_reduction <maximumf>, %109, %cst_42 [1] : vector<64x64xf32> to vector<64xf32>
    %111 = vector.shape_cast %110 : vector<64xf32> to vector<64x1xf32>
    %112 = vector.broadcast %111 : vector<64x1xf32> to vector<64x64xf32>
    %113 = arith.subf %109, %112 : vector<64x64xf32>
    %114 = math.exp %113 : vector<64x64xf32>
    %cst_43 = arith.constant dense<0.000000e+00> : vector<64xf32>
    %115 = vector.multi_reduction <add>, %114, %cst_43 [1] : vector<64x64xf32> to vector<64xf32>
    %116 = vector.shape_cast %115 : vector<64xf32> to vector<64x1xf32>
    %117 = tpu.reciprocal %116 {approx = true} : vector<64x1xf32> -> vector<64x1xf32>
    %118 = vector.broadcast %117 : vector<64x1xf32> to vector<64x64xf32>
    %119 = arith.mulf %114, %118 : vector<64x64xf32>
    %cst_44 = arith.constant dense<0.000000e+00> : vector<64x8xf32>
    %120 = tpu.matmul %119, %104, %cst_44 {dimension_numbers = #tpu.dot_dimension_numbers<[1], [0], [0], [1], [0, 0, 1, 1], [], []>} : vector<64x64xf32>, vector<64x8xf32>, vector<64x8xf32> -> vector<64x8xf32>
    %c16 = arith.constant 16 : index
    %c0_45 = arith.constant 0 : index
    %121 = vector.load %arg3[%c16, %c0_45] : memref<32x32xf32, #tpu.memory_space<vmem>>, vector<8x32xf32>
    %cst_46 = arith.constant dense<0.000000e+00> : vector<64x32xf32>
    %122 = tpu.matmul %120, %121, %cst_46 {dimension_numbers = #tpu.dot_dimension_numbers<[1], [0], [0], [1], [0, 0, 1, 1], [], []>} : vector<64x8xf32>, vector<8x32xf32>, vector<64x32xf32> -> vector<64x32xf32>
    %123 = arith.addf %101, %122 : vector<64x32xf32>
    %124 = vector.extract_strided_slice %21 {offsets = [0, 24], sizes = [64, 8], strides = [1, 1]} : vector<64x96xf32> to vector<64x8xf32>
    %125 = vector.extract_strided_slice %21 {offsets = [0, 56], sizes = [64, 8], strides = [1, 1]} : vector<64x96xf32> to vector<64x8xf32>
    %126 = vector.extract_strided_slice %21 {offsets = [0, 88], sizes = [64, 8], strides = [1, 1]} : vector<64x96xf32> to vector<64x8xf32>
    %cst_47 = arith.constant dense<0.000000e+00> : vector<64x64xf32>
    %127 = tpu.matmul %124, %125, %cst_47 {dimension_numbers = #tpu.dot_dimension_numbers<[1], [1], [0], [0], [0, 0, 1, 0], [], []>} : vector<64x8xf32>, vector<64x8xf32>, vector<64x64xf32> -> vector<64x64xf32>
    %cst_48 = arith.constant 0.353553385 : f32
    %128 = vector.broadcast %cst_48 : f32 to vector<64x64xf32>
    %129 = arith.mulf %127, %128 : vector<64x64xf32>
    %cst_49 = arith.constant -1.000000e+30 : f32
    %130 = vector.broadcast %cst_49 : f32 to vector<64x64xf32>
    %131 = arith.select %56, %129, %130 : vector<64x64xi1>, vector<64x64xf32>
    %cst_50 = arith.constant dense<0xFF800000> : vector<64xf32>
    %132 = vector.multi_reduction <maximumf>, %131, %cst_50 [1] : vector<64x64xf32> to vector<64xf32>
    %133 = vector.shape_cast %132 : vector<64xf32> to vector<64x1xf32>
    %134 = vector.broadcast %133 : vector<64x1xf32> to vector<64x64xf32>
    %135 = arith.subf %131, %134 : vector<64x64xf32>
    %136 = math.exp %135 : vector<64x64xf32>
    %cst_51 = arith.constant dense<0.000000e+00> : vector<64xf32>
    %137 = vector.multi_reduction <add>, %136, %cst_51 [1] : vector<64x64xf32> to vector<64xf32>
    %138 = vector.shape_cast %137 : vector<64xf32> to vector<64x1xf32>
    %139 = tpu.reciprocal %138 {approx = true} : vector<64x1xf32> -> vector<64x1xf32>
    %140 = vector.broadcast %139 : vector<64x1xf32> to vector<64x64xf32>
    %141 = arith.mulf %136, %140 : vector<64x64xf32>
    %cst_52 = arith.constant dense<0.000000e+00> : vector<64x8xf32>
    %142 = tpu.matmul %141, %126, %cst_52 {dimension_numbers = #tpu.dot_dimension_numbers<[1], [0], [0], [1], [0, 0, 1, 1], [], []>} : vector<64x64xf32>, vector<64x8xf32>, vector<64x8xf32> -> vector<64x8xf32>
    %c24 = arith.constant 24 : index
    %c0_53 = arith.constant 0 : index
    %143 = vector.load %arg3[%c24, %c0_53] : memref<32x32xf32, #tpu.memory_space<vmem>>, vector<8x32xf32>
    %cst_54 = arith.constant dense<0.000000e+00> : vector<64x32xf32>
    %144 = tpu.matmul %142, %143, %cst_54 {dimension_numbers = #tpu.dot_dimension_numbers<[1], [0], [0], [1], [0, 0, 1, 1], [], []>} : vector<64x8xf32>, vector<8x32xf32>, vector<64x32xf32> -> vector<64x32xf32>
    %145 = arith.addf %123, %144 : vector<64x32xf32>
    %146 = vector.broadcast %11 : vector<1x32xf32> to vector<64x32xf32>
    %147 = arith.addf %145, %146 : vector<64x32xf32>
    %148 = arith.addf %9, %147 : vector<64x32xf32>
    %cst_55 = arith.constant dense<0.000000e+00> : vector<64xf32>
    %149 = vector.multi_reduction <add>, %148, %cst_55 [1] : vector<64x32xf32> to vector<64xf32>
    %150 = vector.shape_cast %149 : vector<64xf32> to vector<64x1xf32>
    %cst_56 = arith.constant 3.200000e+01 : f32
    %151 = vector.broadcast %cst_56 : f32 to vector<64x1xf32>
    %152 = arith.divf %150, %151 : vector<64x1xf32>
    %153 = vector.broadcast %152 : vector<64x1xf32> to vector<64x32xf32>
    %154 = arith.subf %148, %153 : vector<64x32xf32>
    %155 = arith.mulf %154, %154 : vector<64x32xf32>
    %cst_57 = arith.constant dense<0.000000e+00> : vector<64xf32>
    %156 = vector.multi_reduction <add>, %155, %cst_57 [1] : vector<64x32xf32> to vector<64xf32>
    %157 = vector.shape_cast %156 : vector<64xf32> to vector<64x1xf32>
    %cst_58 = arith.constant 3.200000e+01 : f32
    %158 = vector.broadcast %cst_58 : f32 to vector<64x1xf32>
    %159 = arith.divf %157, %158 : vector<64x1xf32>
    %160 = vector.broadcast %152 : vector<64x1xf32> to vector<64x32xf32>
    %161 = arith.subf %148, %160 : vector<64x32xf32>
    %cst_59 = arith.constant 9.99999974E-6 : f32
    %162 = vector.broadcast %cst_59 : f32 to vector<64x1xf32>
    %163 = arith.addf %159, %162 : vector<64x1xf32>
    %164 = math.rsqrt %163 : vector<64x1xf32>
    %165 = vector.broadcast %164 : vector<64x1xf32> to vector<64x32xf32>
    %166 = arith.mulf %161, %165 : vector<64x32xf32>
    %167 = vector.broadcast %14 : vector<1x32xf32> to vector<64x32xf32>
    %168 = arith.mulf %166, %167 : vector<64x32xf32>
    %169 = vector.broadcast %15 : vector<1x32xf32> to vector<64x32xf32>
    %170 = arith.addf %168, %169 : vector<64x32xf32>
    %c0_60 = arith.constant 0 : index
    %c0_61 = arith.constant 0 : index
    %171 = vector.load %arg4[%c0_60, %c0_61] : memref<32x64xf32, #tpu.memory_space<vmem>>, vector<32x64xf32>
    %cst_62 = arith.constant dense<0.000000e+00> : vector<64x64xf32>
    %172 = tpu.matmul %170, %171, %cst_62 {dimension_numbers = #tpu.dot_dimension_numbers<[1], [0], [0], [1], [0, 0, 1, 1], [], []>} : vector<64x32xf32>, vector<32x64xf32>, vector<64x64xf32> -> vector<64x64xf32>
    %173 = vector.broadcast %12 : vector<1x64xf32> to vector<64x64xf32>
    %174 = arith.addf %172, %173 : vector<64x64xf32>
    %cst_63 = arith.constant 0.000000e+00 : f32
    %175 = vector.broadcast %cst_63 : f32 to vector<64x64xf32>
    %176 = arith.maximumf %174, %175 : vector<64x64xf32>
    %c0_64 = arith.constant 0 : index
    %c0_65 = arith.constant 0 : index
    %177 = vector.load %arg5[%c0_64, %c0_65] : memref<64x32xf32, #tpu.memory_space<vmem>>, vector<64x32xf32>
    %cst_66 = arith.constant dense<0.000000e+00> : vector<64x32xf32>
    %178 = tpu.matmul %176, %177, %cst_66 {dimension_numbers = #tpu.dot_dimension_numbers<[1], [0], [0], [1], [0, 0, 1, 1], [], []>} : vector<64x64xf32>, vector<64x32xf32>, vector<64x32xf32> -> vector<64x32xf32>
    %179 = vector.broadcast %13 : vector<1x32xf32> to vector<64x32xf32>
    %180 = arith.addf %178, %179 : vector<64x32xf32>
    %181 = arith.addf %170, %180 : vector<64x32xf32>
    %cst_67 = arith.constant dense<0.000000e+00> : vector<64xf32>
    %182 = vector.multi_reduction <add>, %181, %cst_67 [1] : vector<64x32xf32> to vector<64xf32>
    %183 = vector.shape_cast %182 : vector<64xf32> to vector<64x1xf32>
    %cst_68 = arith.constant 3.200000e+01 : f32
    %184 = vector.broadcast %cst_68 : f32 to vector<64x1xf32>
    %185 = arith.divf %183, %184 : vector<64x1xf32>
    %186 = vector.broadcast %185 : vector<64x1xf32> to vector<64x32xf32>
    %187 = arith.subf %181, %186 : vector<64x32xf32>
    %188 = arith.mulf %187, %187 : vector<64x32xf32>
    %cst_69 = arith.constant dense<0.000000e+00> : vector<64xf32>
    %189 = vector.multi_reduction <add>, %188, %cst_69 [1] : vector<64x32xf32> to vector<64xf32>
    %190 = vector.shape_cast %189 : vector<64xf32> to vector<64x1xf32>
    %cst_70 = arith.constant 3.200000e+01 : f32
    %191 = vector.broadcast %cst_70 : f32 to vector<64x1xf32>
    %192 = arith.divf %190, %191 : vector<64x1xf32>
    %193 = vector.broadcast %185 : vector<64x1xf32> to vector<64x32xf32>
    %194 = arith.subf %181, %193 : vector<64x32xf32>
    %cst_71 = arith.constant 9.99999974E-6 : f32
    %195 = vector.broadcast %cst_71 : f32 to vector<64x1xf32>
    %196 = arith.addf %192, %195 : vector<64x1xf32>
    %197 = math.rsqrt %196 : vector<64x1xf32>
    %198 = vector.broadcast %197 : vector<64x1xf32> to vector<64x32xf32>
    %199 = arith.mulf %194, %198 : vector<64x32xf32>
    %200 = vector.broadcast %16 : vector<1x32xf32> to vector<64x32xf32>
    %201 = arith.mulf %199, %200 : vector<64x32xf32>
    %202 = vector.broadcast %17 : vector<1x32xf32> to vector<64x32xf32>
    %203 = arith.addf %201, %202 : vector<64x32xf32>
    %204 = vector.extract_strided_slice %203 {offsets = [0, 0], sizes = [8, 32], strides = [1, 1]} : vector<64x32xf32> to vector<8x32xf32>
    %205 = vector.extract_strided_slice %203 {offsets = [8, 0], sizes = [8, 32], strides = [1, 1]} : vector<64x32xf32> to vector<8x32xf32>
    %206 = vector.extract_strided_slice %203 {offsets = [16, 0], sizes = [8, 32], strides = [1, 1]} : vector<64x32xf32> to vector<8x32xf32>
    %207 = vector.extract_strided_slice %203 {offsets = [24, 0], sizes = [8, 32], strides = [1, 1]} : vector<64x32xf32> to vector<8x32xf32>
    %208 = vector.extract_strided_slice %203 {offsets = [32, 0], sizes = [8, 32], strides = [1, 1]} : vector<64x32xf32> to vector<8x32xf32>
    %209 = vector.extract_strided_slice %203 {offsets = [40, 0], sizes = [8, 32], strides = [1, 1]} : vector<64x32xf32> to vector<8x32xf32>
    %210 = vector.extract_strided_slice %203 {offsets = [48, 0], sizes = [8, 32], strides = [1, 1]} : vector<64x32xf32> to vector<8x32xf32>
    %211 = vector.extract_strided_slice %203 {offsets = [56, 0], sizes = [8, 32], strides = [1, 1]} : vector<64x32xf32> to vector<8x32xf32>
    %212 = tpu.concatenate %204, %205, %206, %207, %208, %209, %210, %211 in 1 : vector<8x32xf32>, vector<8x32xf32>, vector<8x32xf32>, vector<8x32xf32>, vector<8x32xf32>, vector<8x32xf32>, vector<8x32xf32>, vector<8x32xf32> -> vector<8x256xf32>
    %c0_72 = arith.constant 0 : index
    %c0_73 = arith.constant 0 : index
    %213 = vector.load %arg7[%c0_72, %c0_73] : memref<8x256xf32, #tpu.memory_space<vmem>>, vector<8x256xf32>
    tpu.vector_store %arg7[%c0_72, %c0_73], %212 {strides = array<i32>} : memref<8x256xf32, #tpu.memory_space<vmem>>, vector<8x256xf32>,
    return
  }
  func.func @transform_0(%arg0: i32) -> (i32, i32) {
    %c0_i32 = arith.constant 0 : i32
    %c0_i32_0 = arith.constant 0 : i32
    return %arg0, %c0_i32 : i32, i32
  }
  func.func @transform_1(%arg0: i32) -> (i32, i32) {
    %c0_i32 = arith.constant 0 : i32
    %c0_i32_0 = arith.constant 0 : i32
    %c0_i32_1 = arith.constant 0 : i32
    return %c0_i32, %c0_i32_0 : i32, i32
  }
  func.func @transform_2(%arg0: i32) -> (i32, i32) {
    %c0_i32 = arith.constant 0 : i32
    %c0_i32_0 = arith.constant 0 : i32
    %c0_i32_1 = arith.constant 0 : i32
    return %c0_i32, %c0_i32_0 : i32, i32
  }
  func.func @transform_3(%arg0: i32) -> (i32, i32) {
    %c0_i32 = arith.constant 0 : i32
    %c0_i32_0 = arith.constant 0 : i32
    %c0_i32_1 = arith.constant 0 : i32
    return %c0_i32, %c0_i32_0 : i32, i32
  }
  func.func @transform_4(%arg0: i32) -> (i32, i32) {
    %c0_i32 = arith.constant 0 : i32
    %c0_i32_0 = arith.constant 0 : i32
    %c0_i32_1 = arith.constant 0 : i32
    return %c0_i32, %c0_i32_0 : i32, i32
  }
  func.func @transform_5(%arg0: i32) -> (i32, i32) {
    %c0_i32 = arith.constant 0 : i32
    %c0_i32_0 = arith.constant 0 : i32
    %c0_i32_1 = arith.constant 0 : i32
    return %c0_i32, %c0_i32_0 : i32, i32
  }
  func.func @transform_6(%arg0: i32) -> (i32, i32) {
    %c0_i32 = arith.constant 0 : i32
    %c0_i32_0 = arith.constant 0 : i32
    return %arg0, %c0_i32 : i32, i32
  }
}

</mosaic_0001>

<llo_original>
// kernel: tpu_custom_call.1
$region0: #{tpu_custom_call.1}
  #allocation0 [shape = 'u32[]', space=smem, size = 0x4, offset = 0x4, fixed_abs, tag = 'smem constant byte address 0x4 - core index']
  #allocation1 [shape = 'u32[144,128]{1,0:T(1,128)}', space=vmem, size = 0x12000, scoped, tag = 'internal scratch']
  %s0 = inlined_call_operand.hbm [shape: f32[8,256], index: 0, kind: input, shape index: {}]
  %s1 = inlined_call_operand.vmem [shape: f32[32,96], index: 1, kind: input, shape index: {}]
  %s2 = inlined_call_operand.vmem [shape: f32[32,32], index: 2, kind: input, shape index: {}]
  %s3 = inlined_call_operand.vmem [shape: f32[32,64], index: 3, kind: input, shape index: {}]
  %s4 = inlined_call_operand.vmem [shape: f32[64,32], index: 4, kind: input, shape index: {}]
  %s5 = inlined_call_operand.vmem [shape: f32[8,128], index: 5, kind: input, shape index: {}]
  %s6 = inlined_call_operand.hbm [shape: f32[8,256], index: 6, kind: output, shape index: {}]
  %s7 = sld [smem:[#allocation0]]
  $region38: #{tpu_custom_call.1} parent=0
    _
  %s9 = ssub.s32 1, %s7
  %s10 = scalar_select 0, %s9, %s7
  $region1: #{tpu_custom_call.1} parent=0
    #allocation2 [shape = 'u8[8192]{0}', space=vmem, size = 0x2000, scoped, tag = 'input window, operand 0, single buffered']
    #allocation3 [shape = 's32[1]{0}', space=sflag, size = 0x4, scoped, tag = 'scoped memory for tpu_custom_call.1']
    #allocation4 [shape = 's32[1]{0}', space=sflag, size = 0x4, scoped, tag = 'scoped memory for tpu_custom_call.1']
    #allocation5 [shape = 'u8[8192]{0}', space=vmem, size = 0x2000, scoped, tag = 'output window, operand 0, single buffered']
    %11 = vsyncpa [#allocation3], 0
    %12 = vsyncpa [#allocation4], 0
    // Predicated region
    $region2: #{tpu_custom_call.1} parent=1 // pred_check
      _
    $region3: #{tpu_custom_call.1} parent=1 // pred_check_branch
      %14 = sbr.rel (0) target = $region5
    $region4: #{tpu_custom_call.1} parent=1 // pred_region
      %s16 = ssub.s32 256, 256
      %17 = vsyncadd [#allocation3], %s16
      %s19 = sshll.u32 [#allocation2], 4
      %s20 = int_to_ptr.vmem [resolvable:$true] %s19
      %22 = dma.hbm_to_vmem [thread:$0]  %s0, 256, %s20, [#allocation3]
    $region5: #{tpu_custom_call.1} parent=1 // pred_fallthru
      _
    // Predicated region
    $region6: #{tpu_custom_call.1} parent=1 // pred_check
      _
    $region7: #{tpu_custom_call.1} parent=1 // pred_check_branch
      %24 = sbr.rel (0) target = $region9
    $region8: #{tpu_custom_call.1} parent=1 // pred_region
      _
    $region9: #{tpu_custom_call.1} parent=1 // pred_fallthru
      _
    // Predicated region
    $region10: #{tpu_custom_call.1} parent=1 // pred_check
      _
    $region11: #{tpu_custom_call.1} parent=1 // pred_check_branch
      %26 = sbr.rel (0) target = $region13
    $region12: #{tpu_custom_call.1} parent=1 // pred_region
      _
    $region13: #{tpu_custom_call.1} parent=1 // pred_fallthru
      _
    // Predicated region
    $region14: #{tpu_custom_call.1} parent=1 // pred_check
      _
    $region15: #{tpu_custom_call.1} parent=1 // pred_check_branch
      %28 = sbr.rel (0) target = $region17
    $region16: #{tpu_custom_call.1} parent=1 // pred_region
      _
    $region17: #{tpu_custom_call.1} parent=1 // pred_fallthru
      _
    // Predicated region
    $region18: #{tpu_custom_call.1} parent=1 // pred_check
      _
    $region19: #{tpu_custom_call.1} parent=1 // pred_check_branch
      %30 = sbr.rel (0) target = $region21
    $region20: #{tpu_custom_call.1} parent=1 // pred_region
      _
    $region21: #{tpu_custom_call.1} parent=1 // pred_fallthru
      _
    // Predicated region
    $region22: #{tpu_custom_call.1} parent=1 // pred_check
      _
    $region23: #{tpu_custom_call.1} parent=1 // pred_check_branch
      %32 = sbr.rel (0) target = $region25
    $region24: #{tpu_custom_call.1} parent=1 // pred_region
      _
    $region25: #{tpu_custom_call.1} parent=1 // pred_fallthru
      _
    // Predicated region
    $region26: #{tpu_custom_call.1} parent=1 // pred_check
      _
    $region27: #{tpu_custom_call.1} parent=1 // pred_check_branch
      %34 = sbr.rel (0) target = $region29
    $region28: #{tpu_custom_call.1} parent=1 // pred_region
      %35 = dma.done [#allocation3], 256
    $region29: #{tpu_custom_call.1} parent=1 // pred_fallthru
      _
    %v36 = vld [vmem:[#allocation2] sm:$0xff]
    %v37 = vld [vmem:[#allocation2 + $0x8] sm:$0xff]
    %39 = vrot.lane.b32.xlu0 %v36, 96
    %v40 = vpop.permute.xlu0 %39
    %42 = vrot.lane.b32.xlu0 %v36, 64
    %v43 = vpop.permute.xlu0 %42
    %45 = vrot.lane.b32.xlu0 %v36, 32
    %v46 = vpop.permute.xlu0 %45
    %49 = vrot.lane.b32.xlu0 %v37, 96
    %v50 = vpop.permute.xlu0 %49
    %52 = vrot.lane.b32.xlu0 %v37, 64
    %v53 = vpop.permute.xlu0 %52
    %55 = vrot.lane.b32.xlu0 %v37, 32
    %v56 = vpop.permute.xlu0 %55
    %v58 = vld [vmem:[%s5] sm:$0x1]
    %v59 = vld [vmem:[%s5 + $0x1] sm:$0x1]
    %v60 = vld [vmem:[%s5 + $0x2] sm:$0x1]
    %v61 = vld [vmem:[%s5 + $0x3] sm:$0x1]
    %v62 = vld [vmem:[%s5 + $0x4] sm:$0x1]
    %v63 = vld [vmem:[%s5 + $0x5] sm:$0x1]
    %v64 = vld [vmem:[%s5 + $0x6] sm:$0x1]
    %v65 = vld [vmem:[%s5 + $0x7] sm:$0x1]
    %v66 = vld [vmem:[%s1] sm:$0xff]
    %v67 = vld [vmem:[%s1 + $0x8] sm:$0xff]
    %v68 = vld [vmem:[%s1 + $0x10] sm:$0xff]
    %v69 = vld [vmem:[%s1 + $0x18] sm:$0xff]
    %v70 = vlaneseq
    %v71 = vshrl.u32 %v70, 7
    %v72 = vsub.s32 0, %v71
    %v73 = vrot.slane %v58, %v72
    %vm74 = vcmask 261120
    %v75 = vsel %vm74, %v36, 0
    %v77 = vsel %vm74, %v40, 0
    %v79 = vsel %vm74, %v43, 0
    %v81 = vsel %vm74, %v46, 0
    %v83 = vsel %vm74, %v37, 0
    %v85 = vsel %vm74, %v50, 0
    %v87 = vsel %vm74, %v53, 0
    %v89 = vsel %vm74, %v56, 0
    %91 = vmatprep.subr.mxu0 0.0
    %92 = vmatpush1.msra.mxu0 %v66
    %93 = vmatprep.subr.mxu0 0.0
    %94 = vmatpush1.msra.mxu0 %v67
    %95 = vmatprep.subr.mxu0 0.0
    %96 = vmatpush1.msra.mxu0 %v68
    %97 = vmatprep.subr.mxu0 0.0
    %98 = vmatpush1.msra.mxu0 %v69
    %99 = vmatprep.subr.mxu0 0.0
    %100 = vmatpush1.msra.mxu0 0.0
    %101 = vmatprep.subr.mxu0 0.0
    %102 = vmatpush1.msra.mxu0 0.0
    %103 = vmatprep.subr.mxu0 0.0
    %104 = vmatpush1.msra.mxu0 0.0
    %105 = vmatprep.subr.mxu0 0.0
    %106 = vmatpush1.msra.mxu0 0.0
    %107 = vmatprep.subr.mxu0 0.0
    %108 = vmatpush1.msra.mxu0 0.0
    %109 = vmatprep.subr.mxu0 0.0
    %110 = vmatpush1.msra.mxu0 0.0
    %111 = vmatprep.subr.mxu0 0.0
    %112 = vmatpush1.msra.mxu0 0.0
    %113 = vmatprep.subr.mxu0 0.0
    %114 = vmatpush1.msra.mxu0 0.0
    %115 = vmatprep.subr.mxu0 0.0
    %116 = vmatpush1.msra.mxu0 0.0
    %117 = vmatprep.subr.mxu0 0.0
    %118 = vmatpush1.msra.mxu0 0.0
    %119 = vmatprep.subr.mxu0 0.0
    %120 = vmatpush1.msra.mxu0 0.0
    %121 = vmatprep.subr.mxu0 0.0
    %122 = vmatpush1.msra.mxu0 0.0
    %123 = vmatprep.subr.mxu0 0.0
    %124 = vmatpush1.msra.mxu0 0.0
    %125 = vmatprep.subr.mxu0 0.0
    %126 = vmatpush1.msra.mxu0 0.0
    %127 = vmatprep.subr.mxu0 0.0
    %128 = vmatpush1.msra.mxu0 0.0
    %129 = vmatprep.subr.mxu0 0.0
    %130 = vmatpush1.msra.mxu0 0.0
    %131 = vmatprep.subr.mxu0 0.0
    %132 = vmatpush1.msra.mxu0 0.0
    %133 = vmatprep.subr.mxu0 0.0
    %134 = vmatpush1.msra.mxu0 0.0
    %135 = vmatprep.subr.mxu0 0.0
    %136 = vmatpush1.msra.mxu0 0.0
    %137 = vmatprep.subr.mxu0 0.0
    %138 = vmatpush1.msra.mxu0 0.0
    %139 = vmatprep.subr.mxu0 0.0
    %140 = vmatpush1.msra.mxu0 0.0
    %141 = vmatprep.subr.mxu0 0.0
    %142 = vmatpush1.msra.mxu0 0.0
    %143 = vmatprep.subr.mxu0 0.0
    %144 = vmatpush1.msra.mxu0 0.0
    %145 = vmatprep.subr.mxu0 0.0
    %146 = vmatpush1.msra.mxu0 0.0
    %147 = vmatprep.subr.mxu0 0.0
    %148 = vmatpush1.msra.mxu0 0.0
    %149 = vmatprep.subr.mxu0 0.0
    %150 = vmatpush1.msra.mxu0 0.0
    %151 = vmatprep.subr.mxu0 0.0
    %152 = vmatpush1.msra.mxu0 0.0
    %153 = vmatprep.subr.mxu0 0.0
    %154 = vmatpush1.msra.mxu0 0.0
    %155 = vmatprep.mubr.f32.mxu0 0.0
    %156 = vmatmul.mubr.f32.gmra.mrb[0].mxu0 %v75
    %v157 = vpop.f32.mrb[0].mxu0
    %v158 = vadd.f32 %v73, %v157
    %v159 = vpop.f32.mrb[0].mxu0
    %160 = vmatprep.mubr.f32.mxu0 0.0
    %161 = vmatmul.mubr.f32.gmra.mrb[0].mxu0 %v77
    %v162 = vpop.f32.mrb[0].mxu0
    %v163 = vadd.f32 %v73, %v162
    %v164 = vpop.f32.mrb[0].mxu0
    %165 = vmatprep.mubr.f32.mxu0 0.0
    %166 = vmatmul.mubr.f32.gmra.mrb[0].mxu0 %v79
    %v167 = vpop.f32.mrb[0].mxu0
    %v168 = vadd.f32 %v73, %v167
    %v169 = vpop.f32.mrb[0].mxu0
    %170 = vmatprep.mubr.f32.mxu0 0.0
    %171 = vmatmul.mubr.f32.gmra.mrb[0].mxu0 %v81
    %v172 = vpop.f32.mrb[0].mxu0
    %v173 = vadd.f32 %v73, %v172
    %v174 = vpop.f32.mrb[0].mxu0
    %175 = vmatprep.mubr.f32.mxu0 0.0
    %176 = vmatmul.mubr.f32.gmra.mrb[0].mxu0 %v83
    %v177 = vpop.f32.mrb[0].mxu0
    %v178 = vadd.f32 %v73, %v177
    %v179 = vpop.f32.mrb[0].mxu0
    %180 = vmatprep.mubr.f32.mxu0 0.0
    %181 = vmatmul.mubr.f32.gmra.mrb[0].mxu0 %v85
    %v182 = vpop.f32.mrb[0].mxu0
    %v183 = vadd.f32 %v73, %v182
    %v184 = vpop.f32.mrb[0].mxu0
    %185 = vmatprep.mubr.f32.mxu0 0.0
    %186 = vmatmul.mubr.f32.gmra.mrb[0].mxu0 %v87
    %v187 = vpop.f32.mrb[0].mxu0
    %v188 = vadd.f32 %v73, %v187
    %v189 = vpop.f32.mrb[0].mxu0
    %190 = vmatprep.mubr.f32.mxu0 0.0
    %191 = vmatmul.mubr.f32.gmra.mrb[0].mxu0 %v89
    %v192 = vpop.f32.mrb[0].mxu0
    %v193 = vadd.f32 %v73, %v192
    %v194 = vpop.f32.mrb[0].mxu0
    %195 = vdwg.mxu0
    %v196 = vlaneseq
    %v197 = vshrl.u32 %v196, 7
    %v198 = vadd.s32 %v197, 8
    %v199 = vadd.s32 %v197, 16
    %v200 = vadd.s32 %v197, 24
    %v201 = vadd.s32 %v197, 32
    %v202 = vadd.s32 %v197, 40
    %v203 = vadd.s32 %v197, 48
    %v204 = vadd.s32 %v197, 56
    %v205 = vlaneseq
    %v206 = vand.u32 %v205, 127
    %vm207 = vcmp.lt.s32.totalorder %v197, 0
    %v208 = vsub.s32 0, %v197
    %v209 = vsel %vm207, %v208, %v197
    %v210 = vshrl.u32 %v209, 3
    %v211 = vand.u32 %v209, 7
    %v212 = vsub.s32 0, %v211
    %v213 = vsel %vm207, %v212, %v211
    %vm214 = vcmp.lt.s32.totalorder %v198, 0
    %v215 = vsub.s32 0, %v198
    %v216 = vsel %vm214, %v215, %v198
    %v217 = vshrl.u32 %v216, 3
    %v218 = vand.u32 %v216, 7
    %v219 = vsub.s32 0, %v218
    %v220 = vsel %vm214, %v219, %v218
    %vm221 = vcmp.lt.s32.totalorder %v199, 0
    %v222 = vsub.s32 0, %v199
    %v223 = vsel %vm221, %v222, %v199
    %v224 = vshrl.u32 %v223, 3
    %v225 = vand.u32 %v223, 7
    %v226 = vsub.s32 0, %v225
    %v227 = vsel %vm221, %v226, %v225
    %vm228 = vcmp.lt.s32.totalorder %v200, 0
    %v229 = vsub.s32 0, %v200
    %v230 = vsel %vm228, %v229, %v200
    %v231 = vshrl.u32 %v230, 3
    %v232 = vand.u32 %v230, 7
    %v233 = vsub.s32 0, %v232
    %v234 = vsel %vm228, %v233, %v232
    %vm235 = vcmp.lt.s32.totalorder %v201, 0
    %v236 = vsub.s32 0, %v201
    %v237 = vsel %vm235, %v236, %v201
    %v238 = vshrl.u32 %v237, 3
    %v239 = vand.u32 %v237, 7
    %v240 = vsub.s32 0, %v239
    %v241 = vsel %vm235, %v240, %v239
    %vm242 = vcmp.lt.s32.totalorder %v202, 0
    %v243 = vsub.s32 0, %v202
    %v244 = vsel %vm242, %v243, %v202
    %v245 = vshrl.u32 %v244, 3
    %v246 = vand.u32 %v244, 7
    %v247 = vsub.s32 0, %v246
    %v248 = vsel %vm242, %v247, %v246
    %vm249 = vcmp.lt.s32.totalorder %v203, 0
    %v250 = vsub.s32 0, %v203
    %v251 = vsel %vm249, %v250, %v203
    %v252 = vshrl.u32 %v251, 3
    %v253 = vand.u32 %v251, 7
    %v254 = vsub.s32 0, %v253
    %v255 = vsel %vm249, %v254, %v253
    %vm256 = vcmp.lt.s32.totalorder %v204, 0
    %v257 = vsub.s32 0, %v204
    %v258 = vsel %vm256, %v257, %v204
    %v259 = vshrl.u32 %v258, 3
    %v260 = vand.u32 %v258, 7
    %v261 = vsub.s32 0, %v260
    %v262 = vsel %vm256, %v261, %v260
    %vm263 = vcmp.ne.s32.totalorder %v213, 0
    %vm264 = vcmp.ne.s32.totalorder %v220, 0
    %vm265 = vcmp.ne.s32.totalorder %v227, 0
    %vm266 = vcmp.ne.s32.totalorder %v234, 0
    %vm267 = vcmp.ne.s32.totalorder %v241, 0
    %vm268 = vcmp.ne.s32.totalorder %v248, 0
    %vm269 = vcmp.ne.s32.totalorder %v255, 0
    %vm270 = vcmp.ne.s32.totalorder %v262, 0
    %vm271 = vcmp.lt.s32.totalorder %v213, 0
    %vm272 = vcmp.lt.s32.totalorder %v220, 0
    %vm273 = vcmp.lt.s32.totalorder %v227, 0
    %vm274 = vcmp.lt.s32.totalorder %v234, 0
    %vm275 = vcmp.lt.s32.totalorder %v241, 0
    %vm276 = vcmp.lt.s32.totalorder %v248, 0
    %vm277 = vcmp.lt.s32.totalorder %v255, 0
    %vm278 = vcmp.lt.s32.totalorder %v262, 0
    %vm279 = vmand %vm271, %vm263
    %vm280 = vmand %vm272, %vm264
    %vm281 = vmand %vm273, %vm265
    %vm282 = vmand %vm274, %vm266
    %vm283 = vmand %vm275, %vm267
    %vm284 = vmand %vm276, %vm268
    %vm285 = vmand %vm277, %vm269
    %vm286 = vmand %vm278, %vm270
    %v287 = vadd.s32 %v213, 8
    %v288 = vadd.s32 %v220, 8
    %v289 = vadd.s32 %v227, 8
    %v290 = vadd.s32 %v234, 8
    %v291 = vadd.s32 %v241, 8
    %v292 = vadd.s32 %v248, 8
    %v293 = vadd.s32 %v255, 8
    %v294 = vadd.s32 %v262, 8
    %v295 = vsel %vm279, %v287, %v213
    %v296 = vsel %vm280, %v288, %v220
    %v297 = vsel %vm281, %v289, %v227
    %v298 = vsel %vm282, %v290, %v234
    %v299 = vsel %vm283, %v291, %v241
    %v300 = vsel %vm284, %v292, %v248
    %v301 = vsel %vm285, %v293, %v255
    %v302 = vsel %vm286, %v294, %v262
    %vm303 = vcmp.lt.s32.totalorder %v206, 0
    %v304 = vsub.s32 0, %v206
    %v305 = vsel %vm303, %v304, %v206
    %v306 = vshrl.u32 %v305, 3
    %v307 = vand.u32 %v305, 7
    %v308 = vsub.s32 0, %v307
    %v309 = vsel %vm303, %v308, %v307
    %vm310 = vcmp.ne.s32.totalorder %v309, 0
    %vm311 = vcmp.lt.s32.totalorder %v309, 0
    %vm312 = vmand %vm311, %vm310
    %v313 = vadd.s32 %v309, 8
    %v314 = vsel %vm312, %v313, %v309
    %vm315 = vcmp.eq.s32.totalorder %v295, %v314
    %vm316 = vcmp.eq.s32.totalorder %v296, %v314
    %vm317 = vcmp.eq.s32.totalorder %v297, %v314
    %vm318 = vcmp.eq.s32.totalorder %v298, %v314
    %vm319 = vcmp.eq.s32.totalorder %v299, %v314
    %vm320 = vcmp.eq.s32.totalorder %v300, %v314
    %vm321 = vcmp.eq.s32.totalorder %v301, %v314
    %vm322 = vcmp.eq.s32.totalorder %v302, %v314
    %331 = vrot.lane.b32.xlu0 %v158, 96
    %v332 = vpop.permute.xlu0 %331
    %333 = vrot.lane.b32.xlu0 %v163, 96
    %v334 = vpop.permute.xlu0 %333
    %335 = vrot.lane.b32.xlu0 %v168, 96
    %v336 = vpop.permute.xlu0 %335
    %337 = vrot.lane.b32.xlu0 %v173, 96
    %v338 = vpop.permute.xlu0 %337
    %339 = vrot.lane.b32.xlu0 %v178, 96
    %v340 = vpop.permute.xlu0 %339
    %341 = vrot.lane.b32.xlu0 %v183, 96
    %v342 = vpop.permute.xlu0 %341
    %343 = vrot.lane.b32.xlu0 %v188, 96
    %v344 = vpop.permute.xlu0 %343
    %345 = vrot.lane.b32.xlu0 %v193, 96
    %v346 = vpop.permute.xlu0 %345
    %vm347 = vcmask 64512
    %v348 = vsel %vm347, %v158, 0
    %v350 = vsel %vm347, %v163, 0
    %v352 = vsel %vm347, %v168, 0
    %v354 = vsel %vm347, %v173, 0
    %v356 = vsel %vm347, %v178, 0
    %v358 = vsel %vm347, %v183, 0
    %v360 = vsel %vm347, %v188, 0
    %v362 = vsel %vm347, %v193, 0
    %v364 = vsel %vm347, %v332, 0
    %v366 = vsel %vm347, %v334, 0
    %v368 = vsel %vm347, %v336, 0
    %v370 = vsel %vm347, %v338, 0
    %v372 = vsel %vm347, %v340, 0
    %v374 = vsel %vm347, %v342, 0
    %v376 = vsel %vm347, %v344, 0
    %v378 = vsel %vm347, %v346, 0
    %380 = vmatprep.subr.mxu0 0.0
    %381 = vmatpush1.xpose.msra.mxu0 %v364
    %382 = vmatprep.subr.mxu0 0.0
    %383 = vmatpush1.xpose.msra.mxu0 %v366
    %384 = vmatprep.subr.mxu0 0.0
    %385 = vmatpush1.xpose.msra.mxu0 %v368
    %386 = vmatprep.subr.mxu0 0.0
    %387 = vmatpush1.xpose.msra.mxu0 %v370
    %388 = vmatprep.subr.mxu0 0.0
    %389 = vmatpush1.xpose.msra.mxu0 %v372
    %390 = vmatprep.subr.mxu0 0.0
    %391 = vmatpush1.xpose.msra.mxu0 %v374
    %392 = vmatprep.subr.mxu0 0.0
    %393 = vmatpush1.xpose.msra.mxu0 %v376
    %394 = vmatprep.subr.mxu0 0.0
    %395 = vmatpush1.xpose.msra.mxu0 %v378
    %396 = vmatprep.subr.mxu0 0.0
    %397 = vmatpush1.xpose.msra.mxu0 0.0
    %398 = vmatprep.subr.mxu0 0.0
    %399 = vmatpush1.xpose.msra.mxu0 0.0
    %400 = vmatprep.subr.mxu0 0.0
    %401 = vmatpush1.xpose.msra.mxu0 0.0
    %402 = vmatprep.subr.mxu0 0.0
    %403 = vmatpush1.xpose.msra.mxu0 0.0
    %404 = vmatprep.subr.mxu0 0.0
    %405 = vmatpush1.xpose.msra.mxu0 0.0
    %406 = vmatprep.subr.mxu0 0.0
    %407 = vmatpush1.xpose.msra.mxu0 0.0
    %408 = vmatprep.subr.mxu0 0.0
    %409 = vmatpush1.xpose.msra.mxu0 0.0
    %410 = vmatprep.subr.mxu0 0.0
    %411 = vmatpush1.xpose.msra.mxu0 0.0
    %412 = vmatprep.subr.mxu0 0.0
    %413 = vmatpush1.xpose.msra.mxu0 0.0
    %414 = vmatprep.subr.mxu0 0.0
    %415 = vmatpush1.xpose.msra.mxu0 0.0
    %416 = vmatprep.subr.mxu0 0.0
    %417 = vmatpush1.xpose.msra.mxu0 0.0
    %418 = vmatprep.subr.mxu0 0.0
    %419 = vmatpush1.xpose.msra.mxu0 0.0
    %420 = vmatprep.subr.mxu0 0.0
    %421 = vmatpush1.xpose.msra.mxu0 0.0
    %422 = vmatprep.subr.mxu0 0.0
    %423 = vmatpush1.xpose.msra.mxu0 0.0
    %424 = vmatprep.subr.mxu0 0.0
    %425 = vmatpush1.xpose.msra.mxu0 0.0
    %426 = vmatprep.subr.mxu0 0.0
    %427 = vmatpush1.xpose.msra.mxu0 0.0
    %428 = vmatprep.subr.mxu0 0.0
    %429 = vmatpush1.xpose.msra.mxu0 0.0
    %430 = vmatprep.subr.mxu0 0.0
    %431 = vmatpush1.xpose.msra.mxu0 0.0
    %432 = vmatprep.subr.mxu0 0.0
    %433 = vmatpush1.xpose.msra.mxu0 0.0
    %434 = vmatprep.subr.mxu0 0.0
    %435 = vmatpush1.xpose.msra.mxu0 0.0
    %436 = vmatprep.subr.mxu0 0.0
    %437 = vmatpush1.xpose.msra.mxu0 0.0
    %438 = vmatprep.subr.mxu0 0.0
    %439 = vmatpush1.xpose.msra.mxu0 0.0
    %440 = vmatprep.subr.mxu0 0.0
    %441 = vmatpush1.xpose.msra.mxu0 0.0
    %442 = vmatprep.subr.mxu0 0.0
    %443 = vmatpush1.xpose.msra.mxu0 0.0
    %444 = vmatprep.mubr.f32.mxu0 0.0
    %445 = vmatmul.mubr.f32.gmra.mrb[0].mxu0 %v348
    %v446 = vpop.f32.mrb[0].mxu0
    %v447 = vadd.f32 0.0, %v446
    %v448 = vpop.f32.mrb[0].mxu0
    %449 = vmatprep.mubr.f32.mxu0 0.0
    %450 = vmatmul.mubr.f32.gmra.mrb[0].mxu0 %v350
    %v451 = vpop.f32.mrb[0].mxu0
    %v452 = vadd.f32 0.0, %v451
    %v453 = vpop.f32.mrb[0].mxu0
    %454 = vmatprep.mubr.f32.mxu0 0.0
    %455 = vmatmul.mubr.f32.gmra.mrb[0].mxu0 %v352
    %v456 = vpop.f32.mrb[0].mxu0
    %v457 = vadd.f32 0.0, %v456
    %v458 = vpop.f32.mrb[0].mxu0
    %459 = vmatprep.mubr.f32.mxu0 0.0
    %460 = vmatmul.mubr.f32.gmra.mrb[0].mxu0 %v354
    %v461 = vpop.f32.mrb[0].mxu0
    %v462 = vadd.f32 0.0, %v461
    %v463 = vpop.f32.mrb[0].mxu0
    %464 = vmatprep.mubr.f32.mxu0 0.0
    %465 = vmatmul.mubr.f32.gmra.mrb[0].mxu0 %v356
    %v466 = vpop.f32.mrb[0].mxu0
    %v467 = vadd.f32 0.0, %v466
    %v468 = vpop.f32.mrb[0].mxu0
    %469 = vmatprep.mubr.f32.mxu0 0.0
    %470 = vmatmul.mubr.f32.gmra.mrb[0].mxu0 %v358
    %v471 = vpop.f32.mrb[0].mxu0
    %v472 = vadd.f32 0.0, %v471
    %v473 = vpop.f32.mrb[0].mxu0
    %474 = vmatprep.mubr.f32.mxu0 0.0
    %475 = vmatmul.mubr.f32.gmra.mrb[0].mxu0 %v360
    %v476 = vpop.f32.mrb[0].mxu0
    %v477 = vadd.f32 0.0, %v476
    %v478 = vpop.f32.mrb[0].mxu0
    %479 = vmatprep.mubr.f32.mxu0 0.0
    %480 = vmatmul.mubr.f32.gmra.mrb[0].mxu0 %v362
    %v481 = vpop.f32.mrb[0].mxu0
    %v482 = vadd.f32 0.0, %v481
    %v483 = vpop.f32.mrb[0].mxu0
    %484 = vdwg.mxu0
    %v485 = vmul.f32 %v447, 0.35355338
    %v486 = vmul.f32 %v452, 0.35355338
    %v487 = vmul.f32 %v457, 0.35355338
    %v488 = vmul.f32 %v462, 0.35355338
    %v489 = vmul.f32 %v467, 0.35355338
    %v490 = vmul.f32 %v472, 0.35355338
    %v491 = vmul.f32 %v477, 0.35355338
    %v492 = vmul.f32 %v482, 0.35355338
    %v493 = vsel %vm315, %v485, -1e+30
    %v494 = vsel %vm316, %v486, -1e+30
    %v495 = vsel %vm317, %v487, -1e+30
    %v496 = vsel %vm318, %v488, -1e+30
    %v497 = vsel %vm319, %v489, -1e+30
    %v498 = vsel %vm320, %v490, -1e+30
    %v499 = vsel %vm321, %v491, -1e+30
    %v500 = vsel %vm322, %v492, -1e+30
    %vm501 = vcmask 523264
    %v502 = vsel %vm501, %v493, -inf
    %503 = vmax.xlane.f32.xlu0 %v502
    %v504 = vpop.xlane.xlu0 %503
    %v505 = vsel %vm501, %v494, -inf
    %506 = vmax.xlane.f32.xlu0 %v505
    %v507 = vpop.xlane.xlu0 %506
    %v508 = vsel %vm501, %v495, -inf
    %509 = vmax.xlane.f32.xlu0 %v508
    %v510 = vpop.xlane.xlu0 %509
    %v511 = vsel %vm501, %v496, -inf
    %512 = vmax.xlane.f32.xlu0 %v511
    %v513 = vpop.xlane.xlu0 %512
    %v514 = vsel %vm501, %v497, -inf
    %515 = vmax.xlane.f32.xlu0 %v514
    %v516 = vpop.xlane.xlu0 %515
    %v517 = vsel %vm501, %v498, -inf
    %518 = vmax.xlane.f32.xlu0 %v517
    %v519 = vpop.xlane.xlu0 %518
    %v520 = vsel %vm501, %v499, -inf
    %521 = vmax.xlane.f32.xlu0 %v520
    %v522 = vpop.xlane.xlu0 %521
    %v523 = vsel %vm501, %v500, -inf
    %524 = vmax.xlane.f32.xlu0 %v523
    %v525 = vpop.xlane.xlu0 %524
    %v526 = vsub.f32 %v493, %v504
    %v527 = vsub.f32 %v494, %v507
    %v528 = vsub.f32 %v495, %v510
    %v529 = vsub.f32 %v496, %v513
    %v530 = vsub.f32 %v497, %v516
    %v531 = vsub.f32 %v498, %v519
    %v532 = vsub.f32 %v499, %v522
    %v533 = vsub.f32 %v500, %v525
    %v534 = vmul.f32 %v526, 1.442695
    %v535 = vpow.pop %v534
    %v536 = vmul.f32 %v527, 1.442695
    %v537 = vpow.pop %v536
    %v538 = vmul.f32 %v528, 1.442695
    %v539 = vpow.pop %v538
    %v540 = vmul.f32 %v529, 1.442695
    %v541 = vpow.pop %v540
    %v542 = vmul.f32 %v530, 1.442695
    %v543 = vpow.pop %v542
    %v544 = vmul.f32 %v531, 1.442695
    %v545 = vpow.pop %v544
    %v546 = vmul.f32 %v532, 1.442695
    %v547 = vpow.pop %v546
    %v548 = vmul.f32 %v533, 1.442695
    %v549 = vpow.pop %v548
    %v550 = vsel %vm501, %v535, 0.0
    %551 = vadd.xlane.f32.xlu0 %v550
    %v552 = vpop.xlane.xlu0 %551
    %v553 = vsel %vm501, %v537, 0.0
    %554 = vadd.xlane.f32.xlu0 %v553
    %v555 = vpop.xlane.xlu0 %554
    %v556 = vsel %vm501, %v539, 0.0
    %557 = vadd.xlane.f32.xlu0 %v556
    %v558 = vpop.xlane.xlu0 %557
    %v559 = vsel %vm501, %v541, 0.0
    %560 = vadd.xlane.f32.xlu0 %v559
    %v561 = vpop.xlane.xlu0 %560
    %v562 = vsel %vm501, %v543, 0.0
    %563 = vadd.xlane.f32.xlu0 %v562
    %v564 = vpop.xlane.xlu0 %563
    %v565 = vsel %vm501, %v545, 0.0
    %566 = vadd.xlane.f32.xlu0 %v565
    %v567 = vpop.xlane.xlu0 %566
    %v568 = vsel %vm501, %v547, 0.0
    %569 = vadd.xlane.f32.xlu0 %v568
    %v570 = vpop.xlane.xlu0 %569
    %v571 = vsel %vm501, %v549, 0.0
    %572 = vadd.xlane.f32.xlu0 %v571
    %v573 = vpop.xlane.xlu0 %572
    %v574 = vrcp.pop %v552
    %v575 = vrcp.pop %v555
    %v576 = vrcp.pop %v558
    %v577 = vrcp.pop %v561
    %v578 = vrcp.pop %v564
    %v579 = vrcp.pop %v567
    %v580 = vrcp.pop %v570
    %v581 = vrcp.pop %v573
    %v582 = vmul.f32 %v535, %v574
    %v583 = vmul.f32 %v537, %v575
    %v584 = vmul.f32 %v539, %v576
    %v585 = vmul.f32 %v541, %v577
    %v586 = vmul.f32 %v543, %v578
    %v587 = vmul.f32 %v545, %v579
    %v588 = vmul.f32 %v547, %v580
    %v589 = vmul.f32 %v549, %v581
    %590 = vrot.lane.b32.xlu0 %v158, 64
    %v591 = vpop.permute.xlu0 %590
    %592 = vrot.lane.b32.xlu0 %v163, 64
    %v593 = vpop.permute.xlu0 %592
    %594 = vrot.lane.b32.xlu0 %v168, 64
    %v595 = vpop.permute.xlu0 %594
    %596 = vrot.lane.b32.xlu0 %v173, 64
    %v597 = vpop.permute.xlu0 %596
    %598 = vrot.lane.b32.xlu0 %v178, 64
    %v599 = vpop.permute.xlu0 %598
    %600 = vrot.lane.b32.xlu0 %v183, 64
    %v601 = vpop.permute.xlu0 %600
    %602 = vrot.lane.b32.xlu0 %v188, 64
    %v603 = vpop.permute.xlu0 %602
    %604 = vrot.lane.b32.xlu0 %v193, 64
    %v605 = vpop.permute.xlu0 %604
    %v615 = vsel %vm501, %v582, 0
    %v618 = vsel %vm501, %v583, 0
    %v621 = vsel %vm501, %v584, 0
    %v624 = vsel %vm501, %v585, 0
    %v627 = vsel %vm501, %v586, 0
    %v630 = vsel %vm501, %v587, 0
    %v633 = vsel %vm501, %v588, 0
    %v636 = vsel %vm501, %v589, 0
    %638 = vmatprep.subr.mxu0 0.0
    %639 = vmatpush1.msra.mxu0 %v591
    %640 = vmatprep.subr.mxu0 0.0
    %641 = vmatpush1.msra.mxu0 %v593
    %642 = vmatprep.subr.mxu0 0.0
    %643 = vmatpush1.msra.mxu0 %v595
    %644 = vmatprep.subr.mxu0 0.0
    %645 = vmatpush1.msra.mxu0 %v597
    %646 = vmatprep.subr.mxu0 0.0
    %647 = vmatpush1.msra.mxu0 %v599
    %648 = vmatprep.subr.mxu0 0.0
    %649 = vmatpush1.msra.mxu0 %v601
    %650 = vmatprep.subr.mxu0 0.0
    %651 = vmatpush1.msra.mxu0 %v603
    %652 = vmatprep.subr.mxu0 0.0
    %653 = vmatpush1.msra.mxu0 %v605
    %654 = vmatprep.subr.mxu0 0.0
    %655 = vmatpush1.msra.mxu0 0.0
    %656 = vmatprep.subr.mxu0 0.0
    %657 = vmatpush1.msra.mxu0 0.0
    %658 = vmatprep.subr.mxu0 0.0
    %659 = vmatpush1.msra.mxu0 0.0
    %660 = vmatprep.subr.mxu0 0.0
    %661 = vmatpush1.msra.mxu0 0.0
    %662 = vmatprep.subr.mxu0 0.0
    %663 = vmatpush1.msra.mxu0 0.0
    %664 = vmatprep.subr.mxu0 0.0
    %665 = vmatpush1.msra.mxu0 0.0
    %666 = vmatprep.subr.mxu0 0.0
    %667 = vmatpush1.msra.mxu0 0.0
    %668 = vmatprep.subr.mxu0 0.0
    %669 = vmatpush1.msra.mxu0 0.0
    %670 = vmatprep.subr.mxu0 0.0
    %671 = vmatpush1.msra.mxu0 0.0
    %672 = vmatprep.subr.mxu0 0.0
    %673 = vmatpush1.msra.mxu0 0.0
    %674 = vmatprep.subr.mxu0 0.0
    %675 = vmatpush1.msra.mxu0 0.0
    %676 = vmatprep.subr.mxu0 0.0
    %677 = vmatpush1.msra.mxu0 0.0
    %678 = vmatprep.subr.mxu0 0.0
    %679 = vmatpush1.msra.mxu0 0.0
    %680 = vmatprep.subr.mxu0 0.0
    %681 = vmatpush1.msra.mxu0 0.0
    %682 = vmatprep.subr.mxu0 0.0
    %683 = vmatpush1.msra.mxu0 0.0
    %684 = vmatprep.subr.mxu0 0.0
    %685 = vmatpush1.msra.mxu0 0.0
    %686 = vmatprep.subr.mxu0 0.0
    %687 = vmatpush1.msra.mxu0 0.0
    %688 = vmatprep.subr.mxu0 0.0
    %689 = vmatpush1.msra.mxu0 0.0
    %690 = vmatprep.subr.mxu0 0.0
    %691 = vmatpush1.msra.mxu0 0.0
    %692 = vmatprep.subr.mxu0 0.0
    %693 = vmatpush1.msra.mxu0 0.0
    %694 = vmatprep.subr.mxu0 0.0
    %695 = vmatpush1.msra.mxu0 0.0
    %696 = vmatprep.subr.mxu0 0.0
    %697 = vmatpush1.msra.mxu0 0.0
    %698 = vmatprep.subr.mxu0 0.0
    %699 = vmatpush1.msra.mxu0 0.0
    %700 = vmatprep.subr.mxu0 0.0
    %701 = vmatpush1.msra.mxu0 0.0
    %702 = vmatprep.mubr.f32.mxu0 0.0
    %703 = vmatmul.mubr.f32.gmra.mrb[0].mxu0 %v615
    %v704 = vpop.f32.mrb[0].mxu0
    %v705 = vadd.f32 0.0, %v704
    %v706 = vpop.f32.mrb[0].mxu0
    %707 = vmatprep.mubr.f32.mxu0 0.0
    %708 = vmatmul.mubr.f32.gmra.mrb[0].mxu0 %v618
    %v709 = vpop.f32.mrb[0].mxu0
    %v710 = vadd.f32 0.0, %v709
    %v711 = vpop.f32.mrb[0].mxu0
    %712 = vmatprep.mubr.f32.mxu0 0.0
    %713 = vmatmul.mubr.f32.gmra.mrb[0].mxu0 %v621
    %v714 = vpop.f32.mrb[0].mxu0
    %v715 = vadd.f32 0.0, %v714
    %v716 = vpop.f32.mrb[0].mxu0
    %717 = vmatprep.mubr.f32.mxu0 0.0
    %718 = vmatmul.mubr.f32.gmra.mrb[0].mxu0 %v624
    %v719 = vpop.f32.mrb[0].mxu0
    %v720 = vadd.f32 0.0, %v719
    %v721 = vpop.f32.mrb[0].mxu0
    %722 = vmatprep.mubr.f32.mxu0 0.0
    %723 = vmatmul.mubr.f32.gmra.mrb[0].mxu0 %v627
    %v724 = vpop.f32.mrb[0].mxu0
    %v725 = vadd.f32 0.0, %v724
    %v726 = vpop.f32.mrb[0].mxu0
    %727 = vmatprep.mubr.f32.mxu0 0.0
    %728 = vmatmul.mubr.f32.gmra.mrb[0].mxu0 %v630
    %v729 = vpop.f32.mrb[0].mxu0
    %v730 = vadd.f32 0.0, %v729
    %v731 = vpop.f32.mrb[0].mxu0
    %732 = vmatprep.mubr.f32.mxu0 0.0
    %733 = vmatmul.mubr.f32.gmra.mrb[0].mxu0 %v633
    %v734 = vpop.f32.mrb[0].mxu0
    %v735 = vadd.f32 0.0, %v734
    %v736 = vpop.f32.mrb[0].mxu0
    %737 = vmatprep.mubr.f32.mxu0 0.0
    %738 = vmatmul.mubr.f32.gmra.mrb[0].mxu0 %v636
    %v739 = vpop.f32.mrb[0].mxu0
    %v740 = vadd.f32 0.0, %v739
    %v741 = vpop.f32.mrb[0].mxu0
    %742 = vdwg.mxu0
    %v743 = vld [vmem:[%s2] sm:$0xff]
    %744 = vrot.lane.b32.xlu0 %v158, 120
    %v745 = vpop.permute.xlu0 %744
    %746 = vrot.lane.b32.xlu0 %v163, 120
    %v747 = vpop.permute.xlu0 %746
    %748 = vrot.lane.b32.xlu0 %v168, 120
    %v749 = vpop.permute.xlu0 %748
    %750 = vrot.lane.b32.xlu0 %v173, 120
    %v751 = vpop.permute.xlu0 %750
    %752 = vrot.lane.b32.xlu0 %v178, 120
    %v753 = vpop.permute.xlu0 %752
    %754 = vrot.lane.b32.xlu0 %v183, 120
    %v755 = vpop.permute.xlu0 %754
    %756 = vrot.lane.b32.xlu0 %v188, 120
    %v757 = vpop.permute.xlu0 %756
    %758 = vrot.lane.b32.xlu0 %v193, 120
    %v759 = vpop.permute.xlu0 %758
    %760 = vrot.lane.b32.xlu0 %v158, 88
    %v761 = vpop.permute.xlu0 %760
    %762 = vrot.lane.b32.xlu0 %v163, 88
    %v763 = vpop.permute.xlu0 %762
    %764 = vrot.lane.b32.xlu0 %v168, 88
    %v765 = vpop.permute.xlu0 %764
    %766 = vrot.lane.b32.xlu0 %v173, 88
    %v767 = vpop.permute.xlu0 %766
    %768 = vrot.lane.b32.xlu0 %v178, 88
    %v769 = vpop.permute.xlu0 %768
    %770 = vrot.lane.b32.xlu0 %v183, 88
    %v771 = vpop.permute.xlu0 %770
    %772 = vrot.lane.b32.xlu0 %v188, 88
    %v773 = vpop.permute.xlu0 %772
    %774 = vrot.lane.b32.xlu0 %v193, 88
    %v775 = vpop.permute.xlu0 %774
    %v776 = vsel %vm347, %v745, 0
    %v778 = vsel %vm347, %v747, 0
    %v780 = vsel %vm347, %v749, 0
    %v782 = vsel %vm347, %v751, 0
    %v784 = vsel %vm347, %v753, 0
    %v786 = vsel %vm347, %v755, 0
    %v788 = vsel %vm347, %v757, 0
    %v790 = vsel %vm347, %v759, 0
    %v792 = vsel %vm347, %v761, 0
    %v794 = vsel %vm347, %v763, 0
    %v796 = vsel %vm347, %v765, 0
    %v798 = vsel %vm347, %v767, 0
    %v800 = vsel %vm347, %v769, 0
    %v802 = vsel %vm347, %v771, 0
    %v804 = vsel %vm347, %v773, 0
    %v806 = vsel %vm347, %v775, 0
    %808 = vmatprep.subr.mxu0 0.0
    %809 = vmatpush1.xpose.msra.mxu0 %v792
    %810 = vmatprep.subr.mxu0 0.0
    %811 = vmatpush1.xpose.msra.mxu0 %v794
    %812 = vmatprep.subr.mxu0 0.0
    %813 = vmatpush1.xpose.msra.mxu0 %v796
    %814 = vmatprep.subr.mxu0 0.0
    %815 = vmatpush1.xpose.msra.mxu0 %v798
    %816 = vmatprep.subr.mxu0 0.0
    %817 = vmatpush1.xpose.msra.mxu0 %v800
    %818 = vmatprep.subr.mxu0 0.0
    %819 = vmatpush1.xpose.msra.mxu0 %v802
    %820 = vmatprep.subr.mxu0 0.0
    %821 = vmatpush1.xpose.msra.mxu0 %v804
    %822 = vmatprep.subr.mxu0 0.0
    %823 = vmatpush1.xpose.msra.mxu0 %v806
    %824 = vmatprep.subr.mxu0 0.0
    %825 = vmatpush1.xpose.msra.mxu0 0.0
    %826 = vmatprep.subr.mxu0 0.0
    %827 = vmatpush1.xpose.msra.mxu0 0.0
    %828 = vmatprep.subr.mxu0 0.0
    %829 = vmatpush1.xpose.msra.mxu0 0.0
    %830 = vmatprep.subr.mxu0 0.0
    %831 = vmatpush1.xpose.msra.mxu0 0.0
    %832 = vmatprep.subr.mxu0 0.0
    %833 = vmatpush1.xpose.msra.mxu0 0.0
    %834 = vmatprep.subr.mxu0 0.0
    %835 = vmatpush1.xpose.msra.mxu0 0.0
    %836 = vmatprep.subr.mxu0 0.0
    %837 = vmatpush1.xpose.msra.mxu0 0.0
    %838 = vmatprep.subr.mxu0 0.0
    %839 = vmatpush1.xpose.msra.mxu0 0.0
    %840 = vmatprep.subr.mxu0 0.0
    %841 = vmatpush1.xpose.msra.mxu0 0.0
    %842 = vmatprep.subr.mxu0 0.0
    %843 = vmatpush1.xpose.msra.mxu0 0.0
    %844 = vmatprep.subr.mxu0 0.0
    %845 = vmatpush1.xpose.msra.mxu0 0.0
    %846 = vmatprep.subr.mxu0 0.0
    %847 = vmatpush1.xpose.msra.mxu0 0.0
    %848 = vmatprep.subr.mxu0 0.0
    %849 = vmatpush1.xpose.msra.mxu0 0.0
    %850 = vmatprep.subr.mxu0 0.0
    %851 = vmatpush1.xpose.msra.mxu0 0.0
    %852 = vmatprep.subr.mxu0 0.0
    %853 = vmatpush1.xpose.msra.mxu0 0.0
    %854 = vmatprep.subr.mxu0 0.0
    %855 = vmatpush1.xpose.msra.mxu0 0.0
    %856 = vmatprep.subr.mxu0 0.0
    %857 = vmatpush1.xpose.msra.mxu0 0.0
    %858 = vmatprep.subr.mxu0 0.0
    %859 = vmatpush1.xpose.msra.mxu0 0.0
    %860 = vmatprep.subr.mxu0 0.0
    %861 = vmatpush1.xpose.msra.mxu0 0.0
    %862 = vmatprep.subr.mxu0 0.0
    %863 = vmatpush1.xpose.msra.mxu0 0.0
    %864 = vmatprep.subr.mxu0 0.0
    %865 = vmatpush1.xpose.msra.mxu0 0.0
    %866 = vmatprep.subr.mxu0 0.0
    %867 = vmatpush1.xpose.msra.mxu0 0.0
    %868 = vmatprep.subr.mxu0 0.0
    %869 = vmatpush1.xpose.msra.mxu0 0.0
    %870 = vmatprep.subr.mxu0 0.0
    %871 = vmatpush1.xpose.msra.mxu0 0.0
    %872 = vmatprep.mubr.f32.mxu0 0.0
    %873 = vmatmul.mubr.f32.gmra.mrb[0].mxu0 %v776
    %v874 = vpop.f32.mrb[0].mxu0
    %v875 = vadd.f32 0.0, %v874
    %v876 = vpop.f32.mrb[0].mxu0
    %877 = vmatprep.mubr.f32.mxu0 0.0
    %878 = vmatmul.mubr.f32.gmra.mrb[0].mxu0 %v778
    %v879 = vpop.f32.mrb[0].mxu0
    %v880 = vadd.f32 0.0, %v879
    %v881 = vpop.f32.mrb[0].mxu0
    %882 = vmatprep.mubr.f32.mxu0 0.0
    %883 = vmatmul.mubr.f32.gmra.mrb[0].mxu0 %v780
    %v884 = vpop.f32.mrb[0].mxu0
    %v885 = vadd.f32 0.0, %v884
    %v886 = vpop.f32.mrb[0].mxu0
    %887 = vmatprep.mubr.f32.mxu0 0.0
    %888 = vmatmul.mubr.f32.gmra.mrb[0].mxu0 %v782
    %v889 = vpop.f32.mrb[0].mxu0
    %v890 = vadd.f32 0.0, %v889
    %v891 = vpop.f32.mrb[0].mxu0
    %892 = vmatprep.mubr.f32.mxu0 0.0
    %893 = vmatmul.mubr.f32.gmra.mrb[0].mxu0 %v784
    %v894 = vpop.f32.mrb[0].mxu0
    %v895 = vadd.f32 0.0, %v894
    %v896 = vpop.f32.mrb[0].mxu0
    %897 = vmatprep.mubr.f32.mxu0 0.0
    %898 = vmatmul.mubr.f32.gmra.mrb[0].mxu0 %v786
    %v899 = vpop.f32.mrb[0].mxu0
    %v900 = vadd.f32 0.0, %v899
    %v901 = vpop.f32.mrb[0].mxu0
    %902 = vmatprep.mubr.f32.mxu0 0.0
    %903 = vmatmul.mubr.f32.gmra.mrb[0].mxu0 %v788
    %v904 = vpop.f32.mrb[0].mxu0
    %v905 = vadd.f32 0.0, %v904
    %v906 = vpop.f32.mrb[0].mxu0
    %907 = vmatprep.mubr.f32.mxu0 0.0
    %908 = vmatmul.mubr.f32.gmra.mrb[0].mxu0 %v790
    %v909 = vpop.f32.mrb[0].mxu0
    %v910 = vadd.f32 0.0, %v909
    %v911 = vpop.f32.mrb[0].mxu0
    %912 = vdwg.mxu0
    %v913 = vmul.f32 %v875, 0.35355338
    %v914 = vmul.f32 %v880, 0.35355338
    %v915 = vmul.f32 %v885, 0.35355338
    %v916 = vmul.f32 %v890, 0.35355338
    %v917 = vmul.f32 %v895, 0.35355338
    %v918 = vmul.f32 %v900, 0.35355338
    %v919 = vmul.f32 %v905, 0.35355338
    %v920 = vmul.f32 %v910, 0.35355338
    %v921 = vsel %vm315, %v913, -1e+30
    %v922 = vsel %vm316, %v914, -1e+30
    %v923 = vsel %vm317, %v915, -1e+30
    %v924 = vsel %vm318, %v916, -1e+30
    %v925 = vsel %vm319, %v917, -1e+30
    %v926 = vsel %vm320, %v918, -1e+30
    %v927 = vsel %vm321, %v919, -1e+30
    %v928 = vsel %vm322, %v920, -1e+30
    %v929 = vsel %vm501, %v921, -inf
    %930 = vmax.xlane.f32.xlu0 %v929
    %v931 = vpop.xlane.xlu0 %930
    %v932 = vsel %vm501, %v922, -inf
    %933 = vmax.xlane.f32.xlu0 %v932
    %v934 = vpop.xlane.xlu0 %933
    %v935 = vsel %vm501, %v923, -inf
    %936 = vmax.xlane.f32.xlu0 %v935
    %v937 = vpop.xlane.xlu0 %936
    %v938 = vsel %vm501, %v924, -inf
    %939 = vmax.xlane.f32.xlu0 %v938
    %v940 = vpop.xlane.xlu0 %939
    %v941 = vsel %vm501, %v925, -inf
    %942 = vmax.xlane.f32.xlu0 %v941
    %v943 = vpop.xlane.xlu0 %942
    %v944 = vsel %vm501, %v926, -inf
    %945 = vmax.xlane.f32.xlu0 %v944
    %v946 = vpop.xlane.xlu0 %945
    %v947 = vsel %vm501, %v927, -inf
    %948 = vmax.xlane.f32.xlu0 %v947
    %v949 = vpop.xlane.xlu0 %948
    %v950 = vsel %vm501, %v928, -inf
    %951 = vmax.xlane.f32.xlu0 %v950
    %v952 = vpop.xlane.xlu0 %951
    %v953 = vsub.f32 %v921, %v931
    %v954 = vsub.f32 %v922, %v934
    %v955 = vsub.f32 %v923, %v937
    %v956 = vsub.f32 %v924, %v940
    %v957 = vsub.f32 %v925, %v943
    %v958 = vsub.f32 %v926, %v946
    %v959 = vsub.f32 %v927, %v949
    %v960 = vsub.f32 %v928, %v952
    %v961 = vmul.f32 %v953, 1.442695
    %v962 = vpow.pop %v961
    %v963 = vmul.f32 %v954, 1.442695
    %v964 = vpow.pop %v963
    %v965 = vmul.f32 %v955, 1.442695
    %v966 = vpow.pop %v965
    %v967 = vmul.f32 %v956, 1.442695
    %v968 = vpow.pop %v967
    %v969 = vmul.f32 %v957, 1.442695
    %v970 = vpow.pop %v969
    %v971 = vmul.f32 %v958, 1.442695
    %v972 = vpow.pop %v971
    %v973 = vmul.f32 %v959, 1.442695
    %v974 = vpow.pop %v973
    %v975 = vmul.f32 %v960, 1.442695
    %v976 = vpow.pop %v975
    %v977 = vsel %vm501, %v962, 0.0
    %978 = vadd.xlane.f32.xlu0 %v977
    %v979 = vpop.xlane.xlu0 %978
    %v980 = vsel %vm501, %v964, 0.0
    %981 = vadd.xlane.f32.xlu0 %v980
    %v982 = vpop.xlane.xlu0 %981
    %v983 = vsel %vm501, %v966, 0.0
    %984 = vadd.xlane.f32.xlu0 %v983
    %v985 = vpop.xlane.xlu0 %984
    %v986 = vsel %vm501, %v968, 0.0
    %987 = vadd.xlane.f32.xlu0 %v986
    %v988 = vpop.xlane.xlu0 %987
    %v989 = vsel %vm501, %v970, 0.0
    %990 = vadd.xlane.f32.xlu0 %v989
    %v991 = vpop.xlane.xlu0 %990
    %v992 = vsel %vm501, %v972, 0.0
    %993 = vadd.xlane.f32.xlu0 %v992
    %v994 = vpop.xlane.xlu0 %993
    %v995 = vsel %vm501, %v974, 0.0
    %996 = vadd.xlane.f32.xlu0 %v995
    %v997 = vpop.xlane.xlu0 %996
    %v998 = vsel %vm501, %v976, 0.0
    %999 = vadd.xlane.f32.xlu0 %v998
    %v1000 = vpop.xlane.xlu0 %999
    %v1001 = vrcp.pop %v979
    %v1002 = vrcp.pop %v982
    %v1003 = vrcp.pop %v985
    %v1004 = vrcp.pop %v988
    %v1005 = vrcp.pop %v991
    %v1006 = vrcp.pop %v994
    %v1007 = vrcp.pop %v997
    %v1008 = vrcp.pop %v1000
    %v1009 = vmul.f32 %v962, %v1001
    %v1010 = vmul.f32 %v964, %v1002
    %v1011 = vmul.f32 %v966, %v1003
    %v1012 = vmul.f32 %v968, %v1004
    %v1013 = vmul.f32 %v970, %v1005
    %v1014 = vmul.f32 %v972, %v1006
    %v1015 = vmul.f32 %v974, %v1007
    %v1016 = vmul.f32 %v976, %v1008
    %1017 = vrot.lane.b32.xlu0 %v158, 56
    %v1018 = vpop.permute.xlu0 %1017
    %1019 = vrot.lane.b32.xlu0 %v163, 56
    %v1020 = vpop.permute.xlu0 %1019
    %1021 = vrot.lane.b32.xlu0 %v168, 56
    %v1022 = vpop.permute.xlu0 %1021
    %1023 = vrot.lane.b32.xlu0 %v173, 56
    %v1024 = vpop.permute.xlu0 %1023
    %1025 = vrot.lane.b32.xlu0 %v178, 56
    %v1026 = vpop.permute.xlu0 %1025
    %1027 = vrot.lane.b32.xlu0 %v183, 56
    %v1028 = vpop.permute.xlu0 %1027
    %1029 = vrot.lane.b32.xlu0 %v188, 56
    %v1030 = vpop.permute.xlu0 %1029
    %1031 = vrot.lane.b32.xlu0 %v193, 56
    %v1032 = vpop.permute.xlu0 %1031
    %v1042 = vsel %vm501, %v1009, 0
    %v1045 = vsel %vm501, %v1010, 0
    %v1048 = vsel %vm501, %v1011, 0
    %v1051 = vsel %vm501, %v1012, 0
    %v1054 = vsel %vm501, %v1013, 0
    %v1057 = vsel %vm501, %v1014, 0
    %v1060 = vsel %vm501, %v1015, 0
    %v1063 = vsel %vm501, %v1016, 0
    %1065 = vmatprep.subr.mxu0 0.0
    %1066 = vmatpush1.msra.mxu0 %v1018
    %1067 = vmatprep.subr.mxu0 0.0
    %1068 = vmatpush1.msra.mxu0 %v1020
    %1069 = vmatprep.subr.mxu0 0.0
    %1070 = vmatpush1.msra.mxu0 %v1022
    %1071 = vmatprep.subr.mxu0 0.0
    %1072 = vmatpush1.msra.mxu0 %v1024
    %1073 = vmatprep.subr.mxu0 0.0
    %1074 = vmatpush1.msra.mxu0 %v1026
    %1075 = vmatprep.subr.mxu0 0.0
    %1076 = vmatpush1.msra.mxu0 %v1028
    %1077 = vmatprep.subr.mxu0 0.0
    %1078 = vmatpush1.msra.mxu0 %v1030
    %1079 = vmatprep.subr.mxu0 0.0
    %1080 = vmatpush1.msra.mxu0 %v1032
    %1081 = vmatprep.subr.mxu0 0.0
    %1082 = vmatpush1.msra.mxu0 0.0
    %1083 = vmatprep.subr.mxu0 0.0
    %1084 = vmatpush1.msra.mxu0 0.0
    %1085 = vmatprep.subr.mxu0 0.0
    %1086 = vmatpush1.msra.mxu0 0.0
    %1087 = vmatprep.subr.mxu0 0.0
    %1088 = vmatpush1.msra.mxu0 0.0
    %1089 = vmatprep.subr.mxu0 0.0
    %1090 = vmatpush1.msra.mxu0 0.0
    %1091 = vmatprep.subr.mxu0 0.0
    %1092 = vmatpush1.msra.mxu0 0.0
    %1093 = vmatprep.subr.mxu0 0.0
    %1094 = vmatpush1.msra.mxu0 0.0
    %1095 = vmatprep.subr.mxu0 0.0
    %1096 = vmatpush1.msra.mxu0 0.0
    %1097 = vmatprep.subr.mxu0 0.0
    %1098 = vmatpush1.msra.mxu0 0.0
    %1099 = vmatprep.subr.mxu0 0.0
    %1100 = vmatpush1.msra.mxu0 0.0
    %1101 = vmatprep.subr.mxu0 0.0
    %1102 = vmatpush1.msra.mxu0 0.0
    %1103 = vmatprep.subr.mxu0 0.0
    %1104 = vmatpush1.msra.mxu0 0.0
    %1105 = vmatprep.subr.mxu0 0.0
    %1106 = vmatpush1.msra.mxu0 0.0
    %1107 = vmatprep.subr.mxu0 0.0
    %1108 = vmatpush1.msra.mxu0 0.0
    %1109 = vmatprep.subr.mxu0 0.0
    %1110 = vmatpush1.msra.mxu0 0.0
    %1111 = vmatprep.subr.mxu0 0.0
    %1112 = vmatpush1.msra.mxu0 0.0
    %1113 = vmatprep.subr.mxu0 0.0
    %1114 = vmatpush1.msra.mxu0 0.0
    %1115 = vmatprep.subr.mxu0 0.0
    %1116 = vmatpush1.msra.mxu0 0.0
    %1117 = vmatprep.subr.mxu0 0.0
    %1118 = vmatpush1.msra.mxu0 0.0
    %1119 = vmatprep.subr.mxu0 0.0
    %1120 = vmatpush1.msra.mxu0 0.0
    %1121 = vmatprep.subr.mxu0 0.0
    %1122 = vmatpush1.msra.mxu0 0.0
    %1123 = vmatprep.subr.mxu0 0.0
    %1124 = vmatpush1.msra.mxu0 0.0
    %1125 = vmatprep.subr.mxu0 0.0
    %1126 = vmatpush1.msra.mxu0 0.0
    %1127 = vmatprep.subr.mxu0 0.0
    %1128 = vmatpush1.msra.mxu0 0.0
    %1129 = vmatprep.mubr.f32.mxu0 0.0
    %1130 = vmatmul.mubr.f32.gmra.mrb[0].mxu0 %v1042
    %v1131 = vpop.f32.mrb[0].mxu0
    %v1132 = vadd.f32 0.0, %v1131
    %v1133 = vpop.f32.mrb[0].mxu0
    %1134 = vmatprep.mubr.f32.mxu0 0.0
    %1135 = vmatmul.mubr.f32.gmra.mrb[0].mxu0 %v1045
    %v1136 = vpop.f32.mrb[0].mxu0
    %v1137 = vadd.f32 0.0, %v1136
    %v1138 = vpop.f32.mrb[0].mxu0
    %1139 = vmatprep.mubr.f32.mxu0 0.0
    %1140 = vmatmul.mubr.f32.gmra.mrb[0].mxu0 %v1048
    %v1141 = vpop.f32.mrb[0].mxu0
    %v1142 = vadd.f32 0.0, %v1141
    %v1143 = vpop.f32.mrb[0].mxu0
    %1144 = vmatprep.mubr.f32.mxu0 0.0
    %1145 = vmatmul.mubr.f32.gmra.mrb[0].mxu0 %v1051
    %v1146 = vpop.f32.mrb[0].mxu0
    %v1147 = vadd.f32 0.0, %v1146
    %v1148 = vpop.f32.mrb[0].mxu0
    %1149 = vmatprep.mubr.f32.mxu0 0.0
    %1150 = vmatmul.mubr.f32.gmra.mrb[0].mxu0 %v1054
    %v1151 = vpop.f32.mrb[0].mxu0
    %v1152 = vadd.f32 0.0, %v1151
    %v1153 = vpop.f32.mrb[0].mxu0
    %1154 = vmatprep.mubr.f32.mxu0 0.0
    %1155 = vmatmul.mubr.f32.gmra.mrb[0].mxu0 %v1057
    %v1156 = vpop.f32.mrb[0].mxu0
    %v1157 = vadd.f32 0.0, %v1156
    %v1158 = vpop.f32.mrb[0].mxu0
    %1159 = vmatprep.mubr.f32.mxu0 0.0
    %1160 = vmatmul.mubr.f32.gmra.mrb[0].mxu0 %v1060
    %v1161 = vpop.f32.mrb[0].mxu0
    %v1162 = vadd.f32 0.0, %v1161
    %v1163 = vpop.f32.mrb[0].mxu0
    %1164 = vmatprep.mubr.f32.mxu0 0.0
    %1165 = vmatmul.mubr.f32.gmra.mrb[0].mxu0 %v1063
    %v1166 = vpop.f32.mrb[0].mxu0
    %v1167 = vadd.f32 0.0, %v1166
    %v1168 = vpop.f32.mrb[0].mxu0
    %1169 = vdwg.mxu0
    %v1170 = vld [vmem:[%s2 + $0x8] sm:$0xff]
    %v1172 = vsel %vm347, %v1132, 0
    %v1175 = vsel %vm347, %v1137, 0
    %v1178 = vsel %vm347, %v1142, 0
    %v1181 = vsel %vm347, %v1147, 0
    %v1184 = vsel %vm347, %v1152, 0
    %v1187 = vsel %vm347, %v1157, 0
    %v1190 = vsel %vm347, %v1162, 0
    %v1193 = vsel %vm347, %v1167, 0
    %1195 = vmatprep.subr.mxu0 0.0
    %1196 = vmatpush1.msra.mxu0 %v1170
    %1197 = vmatprep.subr.mxu0 0.0
    %1198 = vmatpush1.msra.mxu0 0.0
    %1199 = vmatprep.subr.mxu0 0.0
    %1200 = vmatpush1.msra.mxu0 0.0
    %1201 = vmatprep.subr.mxu0 0.0
    %1202 = vmatpush1.msra.mxu0 0.0
    %1203 = vmatprep.subr.mxu0 0.0
    %1204 = vmatpush1.msra.mxu0 0.0
    %1205 = vmatprep.subr.mxu0 0.0
    %1206 = vmatpush1.msra.mxu0 0.0
    %1207 = vmatprep.subr.mxu0 0.0
    %1208 = vmatpush1.msra.mxu0 0.0
    %1209 = vmatprep.subr.mxu0 0.0
    %1210 = vmatpush1.msra.mxu0 0.0
    %1211 = vmatprep.subr.mxu0 0.0
    %1212 = vmatpush1.msra.mxu0 0.0
    %1213 = vmatprep.subr.mxu0 0.0
    %1214 = vmatpush1.msra.mxu0 0.0
    %1215 = vmatprep.subr.mxu0 0.0
    %1216 = vmatpush1.msra.mxu0 0.0
    %1217 = vmatprep.subr.mxu0 0.0
    %1218 = vmatpush1.msra.mxu0 0.0
    %1219 = vmatprep.subr.mxu0 0.0
    %1220 = vmatpush1.msra.mxu0 0.0
    %1221 = vmatprep.subr.mxu0 0.0
    %1222 = vmatpush1.msra.mxu0 0.0
    %1223 = vmatprep.subr.mxu0 0.0
    %1224 = vmatpush1.msra.mxu0 0.0
    %1225 = vmatprep.subr.mxu0 0.0
    %1226 = vmatpush1.msra.mxu0 0.0
    %1227 = vmatprep.subr.mxu0 0.0
    %1228 = vmatpush1.msra.mxu0 0.0
    %1229 = vmatprep.subr.mxu0 0.0
    %1230 = vmatpush1.msra.mxu0 0.0
    %1231 = vmatprep.subr.mxu0 0.0
    %1232 = vmatpush1.msra.mxu0 0.0
    %1233 = vmatprep.subr.mxu0 0.0
    %1234 = vmatpush1.msra.mxu0 0.0
    %1235 = vmatprep.subr.mxu0 0.0
    %1236 = vmatpush1.msra.mxu0 0.0
    %1237 = vmatprep.subr.mxu0 0.0
    %1238 = vmatpush1.msra.mxu0 0.0
    %1239 = vmatprep.subr.mxu0 0.0
    %1240 = vmatpush1.msra.mxu0 0.0
    %1241 = vmatprep.subr.mxu0 0.0
    %1242 = vmatpush1.msra.mxu0 0.0
    %1243 = vmatprep.subr.mxu0 0.0
    %1244 = vmatpush1.msra.mxu0 0.0
    %1245 = vmatprep.subr.mxu0 0.0
    %1246 = vmatpush1.msra.mxu0 0.0
    %1247 = vmatprep.subr.mxu0 0.0
    %1248 = vmatpush1.msra.mxu0 0.0
    %1249 = vmatprep.subr.mxu0 0.0
    %1250 = vmatpush1.msra.mxu0 0.0
    %1251 = vmatprep.subr.mxu0 0.0
    %1252 = vmatpush1.msra.mxu0 0.0
    %1253 = vmatprep.subr.mxu0 0.0
    %1254 = vmatpush1.msra.mxu0 0.0
    %1255 = vmatprep.subr.mxu0 0.0
    %1256 = vmatpush1.msra.mxu0 0.0
    %1257 = vmatprep.subr.mxu0 0.0
    %1258 = vmatpush1.msra.mxu0 0.0
    %1259 = vmatprep.mubr.f32.mxu0 0.0
    %1260 = vmatmul.mubr.f32.gmra.mrb[0].mxu0 %v1172
    %v1261 = vpop.f32.mrb[0].mxu0
    %v1262 = vadd.f32 0.0, %v1261
    %v1263 = vpop.f32.mrb[0].mxu0
    %1264 = vmatprep.mubr.f32.mxu0 0.0
    %1265 = vmatmul.mubr.f32.gmra.mrb[0].mxu0 %v1175
    %v1266 = vpop.f32.mrb[0].mxu0
    %v1267 = vadd.f32 0.0, %v1266
    %v1268 = vpop.f32.mrb[0].mxu0
    %1269 = vmatprep.mubr.f32.mxu0 0.0
    %1270 = vmatmul.mubr.f32.gmra.mrb[0].mxu0 %v1178
    %v1271 = vpop.f32.mrb[0].mxu0
    %v1272 = vadd.f32 0.0, %v1271
    %v1273 = vpop.f32.mrb[0].mxu0
    %1274 = vmatprep.mubr.f32.mxu0 0.0
    %1275 = vmatmul.mubr.f32.gmra.mrb[0].mxu0 %v1181
    %v1276 = vpop.f32.mrb[0].mxu0
    %v1277 = vadd.f32 0.0, %v1276
    %v1278 = vpop.f32.mrb[0].mxu0
    %1279 = vmatprep.mubr.f32.mxu0 0.0
    %1280 = vmatmul.mubr.f32.gmra.mrb[0].mxu0 %v1184
    %v1281 = vpop.f32.mrb[0].mxu0
    %v1282 = vadd.f32 0.0, %v1281
    %v1283 = vpop.f32.mrb[0].mxu0
    %1284 = vmatprep.mubr.f32.mxu0 0.0
    %1285 = vmatmul.mubr.f32.gmra.mrb[0].mxu0 %v1187
    %v1286 = vpop.f32.mrb[0].mxu0
    %v1287 = vadd.f32 0.0, %v1286
    %v1288 = vpop.f32.mrb[0].mxu0
    %1289 = vmatprep.mubr.f32.mxu0 0.0
    %1290 = vmatmul.mubr.f32.gmra.mrb[0].mxu0 %v1190
    %v1291 = vpop.f32.mrb[0].mxu0
    %v1292 = vadd.f32 0.0, %v1291
    %v1293 = vpop.f32.mrb[0].mxu0
    %1294 = vmatprep.mubr.f32.mxu0 0.0
    %1295 = vmatmul.mubr.f32.gmra.mrb[0].mxu0 %v1193
    %v1296 = vpop.f32.mrb[0].mxu0
    %v1297 = vadd.f32 0.0, %v1296
    %v1298 = vpop.f32.mrb[0].mxu0
    %1299 = vdwg.mxu0
    %v1301 = vsel %vm347, %v705, 0
    %v1304 = vsel %vm347, %v710, 0
    %v1307 = vsel %vm347, %v715, 0
    %v1310 = vsel %vm347, %v720, 0
    %v1313 = vsel %vm347, %v725, 0
    %v1316 = vsel %vm347, %v730, 0
    %v1319 = vsel %vm347, %v735, 0
    %v1322 = vsel %vm347, %v740, 0
    %1324 = vmatprep.subr.mxu0 0.0
    %1325 = vmatpush1.msra.mxu0 %v743
    %1326 = vmatprep.subr.mxu0 0.0
    %1327 = vmatpush1.msra.mxu0 0.0
    %1328 = vmatprep.subr.mxu0 0.0
    %1329 = vmatpush1.msra.mxu0 0.0
    %1330 = vmatprep.subr.mxu0 0.0
    %1331 = vmatpush1.msra.mxu0 0.0
    %1332 = vmatprep.subr.mxu0 0.0
    %1333 = vmatpush1.msra.mxu0 0.0
    %1334 = vmatprep.subr.mxu0 0.0
    %1335 = vmatpush1.msra.mxu0 0.0
    %1336 = vmatprep.subr.mxu0 0.0
    %1337 = vmatpush1.msra.mxu0 0.0
    %1338 = vmatprep.subr.mxu0 0.0
    %1339 = vmatpush1.msra.mxu0 0.0
    %1340 = vmatprep.subr.mxu0 0.0
    %1341 = vmatpush1.msra.mxu0 0.0
    %1342 = vmatprep.subr.mxu0 0.0
    %1343 = vmatpush1.msra.mxu0 0.0
    %1344 = vmatprep.subr.mxu0 0.0
    %1345 = vmatpush1.msra.mxu0 0.0
    %1346 = vmatprep.subr.mxu0 0.0
    %1347 = vmatpush1.msra.mxu0 0.0
    %1348 = vmatprep.subr.mxu0 0.0
    %1349 = vmatpush1.msra.mxu0 0.0
    %1350 = vmatprep.subr.mxu0 0.0
    %1351 = vmatpush1.msra.mxu0 0.0
    %1352 = vmatprep.subr.mxu0 0.0
    %1353 = vmatpush1.msra.mxu0 0.0
    %1354 = vmatprep.subr.mxu0 0.0
    %1355 = vmatpush1.msra.mxu0 0.0
    %1356 = vmatprep.subr.mxu0 0.0
    %1357 = vmatpush1.msra.mxu0 0.0
    %1358 = vmatprep.subr.mxu0 0.0
    %1359 = vmatpush1.msra.mxu0 0.0
    %1360 = vmatprep.subr.mxu0 0.0
    %1361 = vmatpush1.msra.mxu0 0.0
    %1362 = vmatprep.subr.mxu0 0.0
    %1363 = vmatpush1.msra.mxu0 0.0
    %1364 = vmatprep.subr.mxu0 0.0
    %1365 = vmatpush1.msra.mxu0 0.0
    %1366 = vmatprep.subr.mxu0 0.0
    %1367 = vmatpush1.msra.mxu0 0.0
    %1368 = vmatprep.subr.mxu0 0.0
    %1369 = vmatpush1.msra.mxu0 0.0
    %1370 = vmatprep.subr.mxu0 0.0
    %1371 = vmatpush1.msra.mxu0 0.0
    %1372 = vmatprep.subr.mxu0 0.0
    %1373 = vmatpush1.msra.mxu0 0.0
    %1374 = vmatprep.subr.mxu0 0.0
    %1375 = vmatpush1.msra.mxu0 0.0
    %1376 = vmatprep.subr.mxu0 0.0
    %1377 = vmatpush1.msra.mxu0 0.0
    %1378 = vmatprep.subr.mxu0 0.0
    %1379 = vmatpush1.msra.mxu0 0.0
    %1380 = vmatprep.subr.mxu0 0.0
    %1381 = vmatpush1.msra.mxu0 0.0
    %1382 = vmatprep.subr.mxu0 0.0
    %1383 = vmatpush1.msra.mxu0 0.0
    %1384 = vmatprep.subr.mxu0 0.0
    %1385 = vmatpush1.msra.mxu0 0.0
    %1386 = vmatprep.subr.mxu0 0.0
    %1387 = vmatpush1.msra.mxu0 0.0
    %1388 = vmatprep.mubr.f32.mxu0 0.0
    %1389 = vmatmul.mubr.f32.gmra.mrb[0].mxu0 %v1301
    %v1390 = vpop.f32.mrb[0].mxu0
    %v1391 = vadd.f32 %v1262, %v1390
    %v1392 = vpop.f32.mrb[0].mxu0
    %1393 = vmatprep.mubr.f32.mxu0 0.0
    %1394 = vmatmul.mubr.f32.gmra.mrb[0].mxu0 %v1304
    %v1395 = vpop.f32.mrb[0].mxu0
    %v1396 = vadd.f32 %v1267, %v1395
    %v1397 = vpop.f32.mrb[0].mxu0
    %1398 = vmatprep.mubr.f32.mxu0 0.0
    %1399 = vmatmul.mubr.f32.gmra.mrb[0].mxu0 %v1307
    %v1400 = vpop.f32.mrb[0].mxu0
    %v1401 = vadd.f32 %v1272, %v1400
    %v1402 = vpop.f32.mrb[0].mxu0
    %1403 = vmatprep.mubr.f32.mxu0 0.0
    %1404 = vmatmul.mubr.f32.gmra.mrb[0].mxu0 %v1310
    %v1405 = vpop.f32.mrb[0].mxu0
    %v1406 = vadd.f32 %v1277, %v1405
    %v1407 = vpop.f32.mrb[0].mxu0
    %1408 = vmatprep.mubr.f32.mxu0 0.0
    %1409 = vmatmul.mubr.f32.gmra.mrb[0].mxu0 %v1313
    %v1410 = vpop.f32.mrb[0].mxu0
    %v1411 = vadd.f32 %v1282, %v1410
    %v1412 = vpop.f32.mrb[0].mxu0
    %1413 = vmatprep.mubr.f32.mxu0 0.0
    %1414 = vmatmul.mubr.f32.gmra.mrb[0].mxu0 %v1316
    %v1415 = vpop.f32.mrb[0].mxu0
    %v1416 = vadd.f32 %v1287, %v1415
    %v1417 = vpop.f32.mrb[0].mxu0
    %1418 = vmatprep.mubr.f32.mxu0 0.0
    %1419 = vmatmul.mubr.f32.gmra.mrb[0].mxu0 %v1319
    %v1420 = vpop.f32.mrb[0].mxu0
    %v1421 = vadd.f32 %v1292, %v1420
    %v1422 = vpop.f32.mrb[0].mxu0
    %1423 = vmatprep.mubr.f32.mxu0 0.0
    %1424 = vmatmul.mubr.f32.gmra.mrb[0].mxu0 %v1322
    %v1425 = vpop.f32.mrb[0].mxu0
    %v1426 = vadd.f32 %v1297, %v1425
    %v1427 = vpop.f32.mrb[0].mxu0
    %1428 = vdwg.mxu0
    %1429 = vrot.lane.b32.xlu0 %v158, 112
    %v1430 = vpop.permute.xlu0 %1429
    %1431 = vrot.lane.b32.xlu0 %v163, 112
    %v1432 = vpop.permute.xlu0 %1431
    %1433 = vrot.lane.b32.xlu0 %v168, 112
    %v1434 = vpop.permute.xlu0 %1433
    %1435 = vrot.lane.b32.xlu0 %v173, 112
    %v1436 = vpop.permute.xlu0 %1435
    %1437 = vrot.lane.b32.xlu0 %v178, 112
    %v1438 = vpop.permute.xlu0 %1437
    %1439 = vrot.lane.b32.xlu0 %v183, 112
    %v1440 = vpop.permute.xlu0 %1439
    %1441 = vrot.lane.b32.xlu0 %v188, 112
    %v1442 = vpop.permute.xlu0 %1441
    %1443 = vrot.lane.b32.xlu0 %v193, 112
    %v1444 = vpop.permute.xlu0 %1443
    %1445 = vrot.lane.b32.xlu0 %v158, 80
    %v1446 = vpop.permute.xlu0 %1445
    %1447 = vrot.lane.b32.xlu0 %v163, 80
    %v1448 = vpop.permute.xlu0 %1447
    %1449 = vrot.lane.b32.xlu0 %v168, 80
    %v1450 = vpop.permute.xlu0 %1449
    %1451 = vrot.lane.b32.xlu0 %v173, 80
    %v1452 = vpop.permute.xlu0 %1451
    %1453 = vrot.lane.b32.xlu0 %v178, 80
    %v1454 = vpop.permute.xlu0 %1453
    %1455 = vrot.lane.b32.xlu0 %v183, 80
    %v1456 = vpop.permute.xlu0 %1455
    %1457 = vrot.lane.b32.xlu0 %v188, 80
    %v1458 = vpop.permute.xlu0 %1457
    %1459 = vrot.lane.b32.xlu0 %v193, 80
    %v1460 = vpop.permute.xlu0 %1459
    %v1461 = vsel %vm347, %v1430, 0
    %v1463 = vsel %vm347, %v1432, 0
    %v1465 = vsel %vm347, %v1434, 0
    %v1467 = vsel %vm347, %v1436, 0
    %v1469 = vsel %vm347, %v1438, 0
    %v1471 = vsel %vm347, %v1440, 0
    %v1473 = vsel %vm347, %v1442, 0
    %v1475 = vsel %vm347, %v1444, 0
    %v1477 = vsel %vm347, %v1446, 0
    %v1479 = vsel %vm347, %v1448, 0
    %v1481 = vsel %vm347, %v1450, 0
    %v1483 = vsel %vm347, %v1452, 0
    %v1485 = vsel %vm347, %v1454, 0
    %v1487 = vsel %vm347, %v1456, 0
    %v1489 = vsel %vm347, %v1458, 0
    %v1491 = vsel %vm347, %v1460, 0
    %1493 = vmatprep.subr.mxu0 0.0
    %1494 = vmatpush1.xpose.msra.mxu0 %v1477
    %1495 = vmatprep.subr.mxu0 0.0
    %1496 = vmatpush1.xpose.msra.mxu0 %v1479
    %1497 = vmatprep.subr.mxu0 0.0
    %1498 = vmatpush1.xpose.msra.mxu0 %v1481
    %1499 = vmatprep.subr.mxu0 0.0
    %1500 = vmatpush1.xpose.msra.mxu0 %v1483
    %1501 = vmatprep.subr.mxu0 0.0
    %1502 = vmatpush1.xpose.msra.mxu0 %v1485
    %1503 = vmatprep.subr.mxu0 0.0
    %1504 = vmatpush1.xpose.msra.mxu0 %v1487
    %1505 = vmatprep.subr.mxu0 0.0
    %1506 = vmatpush1.xpose.msra.mxu0 %v1489
    %1507 = vmatprep.subr.mxu0 0.0
    %1508 = vmatpush1.xpose.msra.mxu0 %v1491
    %1509 = vmatprep.subr.mxu0 0.0
    %1510 = vmatpush1.xpose.msra.mxu0 0.0
    %1511 = vmatprep.subr.mxu0 0.0
    %1512 = vmatpush1.xpose.msra.mxu0 0.0
    %1513 = vmatprep.subr.mxu0 0.0
    %1514 = vmatpush1.xpose.msra.mxu0 0.0
    %1515 = vmatprep.subr.mxu0 0.0
    %1516 = vmatpush1.xpose.msra.mxu0 0.0
    %1517 = vmatprep.subr.mxu0 0.0
    %1518 = vmatpush1.xpose.msra.mxu0 0.0
    %1519 = vmatprep.subr.mxu0 0.0
    %1520 = vmatpush1.xpose.msra.mxu0 0.0
    %1521 = vmatprep.subr.mxu0 0.0
    %1522 = vmatpush1.xpose.msra.mxu0 0.0
    %1523 = vmatprep.subr.mxu0 0.0
    %1524 = vmatpush1.xpose.msra.mxu0 0.0
    %1525 = vmatprep.subr.mxu0 0.0
    %1526 = vmatpush1.xpose.msra.mxu0 0.0
    %1527 = vmatprep.subr.mxu0 0.0
    %1528 = vmatpush1.xpose.msra.mxu0 0.0
    %1529 = vmatprep.subr.mxu0 0.0
    %1530 = vmatpush1.xpose.msra.mxu0 0.0
    %1531 = vmatprep.subr.mxu0 0.0
    %1532 = vmatpush1.xpose.msra.mxu0 0.0
    %1533 = vmatprep.subr.mxu0 0.0
    %1534 = vmatpush1.xpose.msra.mxu0 0.0
    %1535 = vmatprep.subr.mxu0 0.0
    %1536 = vmatpush1.xpose.msra.mxu0 0.0
    %1537 = vmatprep.subr.mxu0 0.0
    %1538 = vmatpush1.xpose.msra.mxu0 0.0
    %1539 = vmatprep.subr.mxu0 0.0
    %1540 = vmatpush1.xpose.msra.mxu0 0.0
    %1541 = vmatprep.subr.mxu0 0.0
    %1542 = vmatpush1.xpose.msra.mxu0 0.0
    %1543 = vmatprep.subr.mxu0 0.0
    %1544 = vmatpush1.xpose.msra.mxu0 0.0
    %1545 = vmatprep.subr.mxu0 0.0
    %1546 = vmatpush1.xpose.msra.mxu0 0.0
    %1547 = vmatprep.subr.mxu0 0.0
    %1548 = vmatpush1.xpose.msra.mxu0 0.0
    %1549 = vmatprep.subr.mxu0 0.0
    %1550 = vmatpush1.xpose.msra.mxu0 0.0
    %1551 = vmatprep.subr.mxu0 0.0
    %1552 = vmatpush1.xpose.msra.mxu0 0.0
    %1553 = vmatprep.subr.mxu0 0.0
    %1554 = vmatpush1.xpose.msra.mxu0 0.0
    %1555 = vmatprep.subr.mxu0 0.0
    %1556 = vmatpush1.xpose.msra.mxu0 0.0
    %1557 = vmatprep.mubr.f32.mxu0 0.0
    %1558 = vmatmul.mubr.f32.gmra.mrb[0].mxu0 %v1461
    %v1559 = vpop.f32.mrb[0].mxu0
    %v1560 = vadd.f32 0.0, %v1559
    %v1561 = vpop.f32.mrb[0].mxu0
    %1562 = vmatprep.mubr.f32.mxu0 0.0
    %1563 = vmatmul.mubr.f32.gmra.mrb[0].mxu0 %v1463
    %v1564 = vpop.f32.mrb[0].mxu0
    %v1565 = vadd.f32 0.0, %v1564
    %v1566 = vpop.f32.mrb[0].mxu0
    %1567 = vmatprep.mubr.f32.mxu0 0.0
    %1568 = vmatmul.mubr.f32.gmra.mrb[0].mxu0 %v1465
    %v1569 = vpop.f32.mrb[0].mxu0
    %v1570 = vadd.f32 0.0, %v1569
    %v1571 = vpop.f32.mrb[0].mxu0
    %1572 = vmatprep.mubr.f32.mxu0 0.0
    %1573 = vmatmul.mubr.f32.gmra.mrb[0].mxu0 %v1467
    %v1574 = vpop.f32.mrb[0].mxu0
    %v1575 = vadd.f32 0.0, %v1574
    %v1576 = vpop.f32.mrb[0].mxu0
    %1577 = vmatprep.mubr.f32.mxu0 0.0
    %1578 = vmatmul.mubr.f32.gmra.mrb[0].mxu0 %v1469
    %v1579 = vpop.f32.mrb[0].mxu0
    %v1580 = vadd.f32 0.0, %v1579
    %v1581 = vpop.f32.mrb[0].mxu0
    %1582 = vmatprep.mubr.f32.mxu0 0.0
    %1583 = vmatmul.mubr.f32.gmra.mrb[0].mxu0 %v1471
    %v1584 = vpop.f32.mrb[0].mxu0
    %v1585 = vadd.f32 0.0, %v1584
    %v1586 = vpop.f32.mrb[0].mxu0
    %1587 = vmatprep.mubr.f32.mxu0 0.0
    %1588 = vmatmul.mubr.f32.gmra.mrb[0].mxu0 %v1473
    %v1589 = vpop.f32.mrb[0].mxu0
    %v1590 = vadd.f32 0.0, %v1589
    %v1591 = vpop.f32.mrb[0].mxu0
    %1592 = vmatprep.mubr.f32.mxu0 0.0
    %1593 = vmatmul.mubr.f32.gmra.mrb[0].mxu0 %v1475
    %v1594 = vpop.f32.mrb[0].mxu0
    %v1595 = vadd.f32 0.0, %v1594
    %v1596 = vpop.f32.mrb[0].mxu0
    %1597 = vdwg.mxu0
    %v1598 = vmul.f32 %v1560, 0.35355338
    %v1599 = vmul.f32 %v1565, 0.35355338
    %v1600 = vmul.f32 %v1570, 0.35355338
    %v1601 = vmul.f32 %v1575, 0.35355338
    %v1602 = vmul.f32 %v1580, 0.35355338
    %v1603 = vmul.f32 %v1585, 0.35355338
    %v1604 = vmul.f32 %v1590, 0.35355338
    %v1605 = vmul.f32 %v1595, 0.35355338
    %v1606 = vsel %vm315, %v1598, -1e+30
    %v1607 = vsel %vm316, %v1599, -1e+30
    %v1608 = vsel %vm317, %v1600, -1e+30
    %v1609 = vsel %vm318, %v1601, -1e+30
    %v1610 = vsel %vm319, %v1602, -1e+30
    %v1611 = vsel %vm320, %v1603, -1e+30
    %v1612 = vsel %vm321, %v1604, -1e+30
    %v1613 = vsel %vm322, %v1605, -1e+30
    %v1614 = vsel %vm501, %v1606, -inf
    %1615 = vmax.xlane.f32.xlu0 %v1614
    %v1616 = vpop.xlane.xlu0 %1615
    %v1617 = vsel %vm501, %v1607, -inf
    %1618 = vmax.xlane.f32.xlu0 %v1617
    %v1619 = vpop.xlane.xlu0 %1618
    %v1620 = vsel %vm501, %v1608, -inf
    %1621 = vmax.xlane.f32.xlu0 %v1620
    %v1622 = vpop.xlane.xlu0 %1621
    %v1623 = vsel %vm501, %v1609, -inf
    %1624 = vmax.xlane.f32.xlu0 %v1623
    %v1625 = vpop.xlane.xlu0 %1624
    %v1626 = vsel %vm501, %v1610, -inf
    %1627 = vmax.xlane.f32.xlu0 %v1626
    %v1628 = vpop.xlane.xlu0 %1627
    %v1629 = vsel %vm501, %v1611, -inf
    %1630 = vmax.xlane.f32.xlu0 %v1629
    %v1631 = vpop.xlane.xlu0 %1630
    %v1632 = vsel %vm501, %v1612, -inf
    %1633 = vmax.xlane.f32.xlu0 %v1632
    %v1634 = vpop.xlane.xlu0 %1633
    %v1635 = vsel %vm501, %v1613, -inf
    %1636 = vmax.xlane.f32.xlu0 %v1635
    %v1637 = vpop.xlane.xlu0 %1636
    %v1638 = vsub.f32 %v1606, %v1616
    %v1639 = vsub.f32 %v1607, %v1619
    %v1640 = vsub.f32 %v1608, %v1622
    %v1641 = vsub.f32 %v1609, %v1625
    %v1642 = vsub.f32 %v1610, %v1628
    %v1643 = vsub.f32 %v1611, %v1631
    %v1644 = vsub.f32 %v1612, %v1634
    %v1645 = vsub.f32 %v1613, %v1637
    %v1646 = vmul.f32 %v1638, 1.442695
    %v1647 = vpow.pop %v1646
    %v1648 = vmul.f32 %v1639, 1.442695
    %v1649 = vpow.pop %v1648
    %v1650 = vmul.f32 %v1640, 1.442695
    %v1651 = vpow.pop %v1650
    %v1652 = vmul.f32 %v1641, 1.442695
    %v1653 = vpow.pop %v1652
    %v1654 = vmul.f32 %v1642, 1.442695
    %v1655 = vpow.pop %v1654
    %v1656 = vmul.f32 %v1643, 1.442695
    %v1657 = vpow.pop %v1656
    %v1658 = vmul.f32 %v1644, 1.442695
    %v1659 = vpow.pop %v1658
    %v1660 = vmul.f32 %v1645, 1.442695
    %v1661 = vpow.pop %v1660
    %v1662 = vsel %vm501, %v1647, 0.0
    %1663 = vadd.xlane.f32.xlu0 %v1662
    %v1664 = vpop.xlane.xlu0 %1663
    %v1665 = vsel %vm501, %v1649, 0.0
    %1666 = vadd.xlane.f32.xlu0 %v1665
    %v1667 = vpop.xlane.xlu0 %1666
    %v1668 = vsel %vm501, %v1651, 0.0
    %1669 = vadd.xlane.f32.xlu0 %v1668
    %v1670 = vpop.xlane.xlu0 %1669
    %v1671 = vsel %vm501, %v1653, 0.0
    %1672 = vadd.xlane.f32.xlu0 %v1671
    %v1673 = vpop.xlane.xlu0 %1672
    %v1674 = vsel %vm501, %v1655, 0.0
    %1675 = vadd.xlane.f32.xlu0 %v1674
    %v1676 = vpop.xlane.xlu0 %1675
    %v1677 = vsel %vm501, %v1657, 0.0
    %1678 = vadd.xlane.f32.xlu0 %v1677
    %v1679 = vpop.xlane.xlu0 %1678
    %v1680 = vsel %vm501, %v1659, 0.0
    %1681 = vadd.xlane.f32.xlu0 %v1680
    %v1682 = vpop.xlane.xlu0 %1681
    %v1683 = vsel %vm501, %v1661, 0.0
    %1684 = vadd.xlane.f32.xlu0 %v1683
    %v1685 = vpop.xlane.xlu0 %1684
    %v1686 = vrcp.pop %v1664
    %v1687 = vrcp.pop %v1667
    %v1688 = vrcp.pop %v1670
    %v1689 = vrcp.pop %v1673
    %v1690 = vrcp.pop %v1676
    %v1691 = vrcp.pop %v1679
    %v1692 = vrcp.pop %v1682
    %v1693 = vrcp.pop %v1685
    %v1694 = vmul.f32 %v1647, %v1686
    %v1695 = vmul.f32 %v1649, %v1687
    %v1696 = vmul.f32 %v1651, %v1688
    %v1697 = vmul.f32 %v1653, %v1689
    %v1698 = vmul.f32 %v1655, %v1690
    %v1699 = vmul.f32 %v1657, %v1691
    %v1700 = vmul.f32 %v1659, %v1692
    %v1701 = vmul.f32 %v1661, %v1693
    %1702 = vrot.lane.b32.xlu0 %v158, 48
    %v1703 = vpop.permute.xlu0 %1702
    %1704 = vrot.lane.b32.xlu0 %v163, 48
    %v1705 = vpop.permute.xlu0 %1704
    %1706 = vrot.lane.b32.xlu0 %v168, 48
    %v1707 = vpop.permute.xlu0 %1706
    %1708 = vrot.lane.b32.xlu0 %v173, 48
    %v1709 = vpop.permute.xlu0 %1708
    %1710 = vrot.lane.b32.xlu0 %v178, 48
    %v1711 = vpop.permute.xlu0 %1710
    %1712 = vrot.lane.b32.xlu0 %v183, 48
    %v1713 = vpop.permute.xlu0 %1712
    %1714 = vrot.lane.b32.xlu0 %v188, 48
    %v1715 = vpop.permute.xlu0 %1714
    %1716 = vrot.lane.b32.xlu0 %v193, 48
    %v1717 = vpop.permute.xlu0 %1716
    %v1727 = vsel %vm501, %v1694, 0
    %v1730 = vsel %vm501, %v1695, 0
    %v1733 = vsel %vm501, %v1696, 0
    %v1736 = vsel %vm501, %v1697, 0
    %v1739 = vsel %vm501, %v1698, 0
    %v1742 = vsel %vm501, %v1699, 0
    %v1745 = vsel %vm501, %v1700, 0
    %v1748 = vsel %vm501, %v1701, 0
    %1750 = vmatprep.subr.mxu0 0.0
    %1751 = vmatpush1.msra.mxu0 %v1703
    %1752 = vmatprep.subr.mxu0 0.0
    %1753 = vmatpush1.msra.mxu0 %v1705
    %1754 = vmatprep.subr.mxu0 0.0
    %1755 = vmatpush1.msra.mxu0 %v1707
    %1756 = vmatprep.subr.mxu0 0.0
    %1757 = vmatpush1.msra.mxu0 %v1709
    %1758 = vmatprep.subr.mxu0 0.0
    %1759 = vmatpush1.msra.mxu0 %v1711
    %1760 = vmatprep.subr.mxu0 0.0
    %1761 = vmatpush1.msra.mxu0 %v1713
    %1762 = vmatprep.subr.mxu0 0.0
    %1763 = vmatpush1.msra.mxu0 %v1715
    %1764 = vmatprep.subr.mxu0 0.0
    %1765 = vmatpush1.msra.mxu0 %v1717
    %1766 = vmatprep.subr.mxu0 0.0
    %1767 = vmatpush1.msra.mxu0 0.0
    %1768 = vmatprep.subr.mxu0 0.0
    %1769 = vmatpush1.msra.mxu0 0.0
    %1770 = vmatprep.subr.mxu0 0.0
    %1771 = vmatpush1.msra.mxu0 0.0
    %1772 = vmatprep.subr.mxu0 0.0
    %1773 = vmatpush1.msra.mxu0 0.0
    %1774 = vmatprep.subr.mxu0 0.0
    %1775 = vmatpush1.msra.mxu0 0.0
    %1776 = vmatprep.subr.mxu0 0.0
    %1777 = vmatpush1.msra.mxu0 0.0
    %1778 = vmatprep.subr.mxu0 0.0
    %1779 = vmatpush1.msra.mxu0 0.0
    %1780 = vmatprep.subr.mxu0 0.0
    %1781 = vmatpush1.msra.mxu0 0.0
    %1782 = vmatprep.subr.mxu0 0.0
    %1783 = vmatpush1.msra.mxu0 0.0
    %1784 = vmatprep.subr.mxu0 0.0
    %1785 = vmatpush1.msra.mxu0 0.0
    %1786 = vmatprep.subr.mxu0 0.0
    %1787 = vmatpush1.msra.mxu0 0.0
    %1788 = vmatprep.subr.mxu0 0.0
    %1789 = vmatpush1.msra.mxu0 0.0
    %1790 = vmatprep.subr.mxu0 0.0
    %1791 = vmatpush1.msra.mxu0 0.0
    %1792 = vmatprep.subr.mxu0 0.0
    %1793 = vmatpush1.msra.mxu0 0.0
    %1794 = vmatprep.subr.mxu0 0.0
    %1795 = vmatpush1.msra.mxu0 0.0
    %1796 = vmatprep.subr.mxu0 0.0
    %1797 = vmatpush1.msra.mxu0 0.0
    %1798 = vmatprep.subr.mxu0 0.0
    %1799 = vmatpush1.msra.mxu0 0.0
    %1800 = vmatprep.subr.mxu0 0.0
    %1801 = vmatpush1.msra.mxu0 0.0
    %1802 = vmatprep.subr.mxu0 0.0
    %1803 = vmatpush1.msra.mxu0 0.0
    %1804 = vmatprep.subr.mxu0 0.0
    %1805 = vmatpush1.msra.mxu0 0.0
    %1806 = vmatprep.subr.mxu0 0.0
    %1807 = vmatpush1.msra.mxu0 0.0
    %1808 = vmatprep.subr.mxu0 0.0
    %1809 = vmatpush1.msra.mxu0 0.0
    %1810 = vmatprep.subr.mxu0 0.0
    %1811 = vmatpush1.msra.mxu0 0.0
    %1812 = vmatprep.subr.mxu0 0.0
    %1813 = vmatpush1.msra.mxu0 0.0
    %1814 = vmatprep.mubr.f32.mxu0 0.0
    %1815 = vmatmul.mubr.f32.gmra.mrb[0].mxu0 %v1727
    %v1816 = vpop.f32.mrb[0].mxu0
    %v1817 = vadd.f32 0.0, %v1816
    %v1818 = vpop.f32.mrb[0].mxu0
    %1819 = vmatprep.mubr.f32.mxu0 0.0
    %1820 = vmatmul.mubr.f32.gmra.mrb[0].mxu0 %v1730
    %v1821 = vpop.f32.mrb[0].mxu0
    %v1822 = vadd.f32 0.0, %v1821
    %v1823 = vpop.f32.mrb[0].mxu0
    %1824 = vmatprep.mubr.f32.mxu0 0.0
    %1825 = vmatmul.mubr.f32.gmra.mrb[0].mxu0 %v1733
    %v1826 = vpop.f32.mrb[0].mxu0
    %v1827 = vadd.f32 0.0, %v1826
    %v1828 = vpop.f32.mrb[0].mxu0
    %1829 = vmatprep.mubr.f32.mxu0 0.0
    %1830 = vmatmul.mubr.f32.gmra.mrb[0].mxu0 %v1736
    %v1831 = vpop.f32.mrb[0].mxu0
    %v1832 = vadd.f32 0.0, %v1831
    %v1833 = vpop.f32.mrb[0].mxu0
    %1834 = vmatprep.mubr.f32.mxu0 0.0
    %1835 = vmatmul.mubr.f32.gmra.mrb[0].mxu0 %v1739
    %v1836 = vpop.f32.mrb[0].mxu0
    %v1837 = vadd.f32 0.0, %v1836
    %v1838 = vpop.f32.mrb[0].mxu0
    %1839 = vmatprep.mubr.f32.mxu0 0.0
    %1840 = vmatmul.mubr.f32.gmra.mrb[0].mxu0 %v1742
    %v1841 = vpop.f32.mrb[0].mxu0
    %v1842 = vadd.f32 0.0, %v1841
    %v1843 = vpop.f32.mrb[0].mxu0
    %1844 = vmatprep.mubr.f32.mxu0 0.0
    %1845 = vmatmul.mubr.f32.gmra.mrb[0].mxu0 %v1745
    %v1846 = vpop.f32.mrb[0].mxu0
    %v1847 = vadd.f32 0.0, %v1846
    %v1848 = vpop.f32.mrb[0].mxu0
    %1849 = vmatprep.mubr.f32.mxu0 0.0
    %1850 = vmatmul.mubr.f32.gmra.mrb[0].mxu0 %v1748
    %v1851 = vpop.f32.mrb[0].mxu0
    %v1852 = vadd.f32 0.0, %v1851
    %v1853 = vpop.f32.mrb[0].mxu0
    %1854 = vdwg.mxu0
    %v1855 = vld [vmem:[%s2 + $0x10] sm:$0xff]
    %v1857 = vsel %vm347, %v1817, 0
    %v1860 = vsel %vm347, %v1822, 0
    %v1863 = vsel %vm347, %v1827, 0
    %v1866 = vsel %vm347, %v1832, 0
    %v1869 = vsel %vm347, %v1837, 0
    %v1872 = vsel %vm347, %v1842, 0
    %v1875 = vsel %vm347, %v1847, 0
    %v1878 = vsel %vm347, %v1852, 0
    %1880 = vmatprep.subr.mxu0 0.0
    %1881 = vmatpush1.msra.mxu0 %v1855
    %1882 = vmatprep.subr.mxu0 0.0
    %1883 = vmatpush1.msra.mxu0 0.0
    %1884 = vmatprep.subr.mxu0 0.0
    %1885 = vmatpush1.msra.mxu0 0.0
    %1886 = vmatprep.subr.mxu0 0.0
    %1887 = vmatpush1.msra.mxu0 0.0
    %1888 = vmatprep.subr.mxu0 0.0
    %1889 = vmatpush1.msra.mxu0 0.0
    %1890 = vmatprep.subr.mxu0 0.0
    %1891 = vmatpush1.msra.mxu0 0.0
    %1892 = vmatprep.subr.mxu0 0.0
    %1893 = vmatpush1.msra.mxu0 0.0
    %1894 = vmatprep.subr.mxu0 0.0
    %1895 = vmatpush1.msra.mxu0 0.0
    %1896 = vmatprep.subr.mxu0 0.0
    %1897 = vmatpush1.msra.mxu0 0.0
    %1898 = vmatprep.subr.mxu0 0.0
    %1899 = vmatpush1.msra.mxu0 0.0
    %1900 = vmatprep.subr.mxu0 0.0
    %1901 = vmatpush1.msra.mxu0 0.0
    %1902 = vmatprep.subr.mxu0 0.0
    %1903 = vmatpush1.msra.mxu0 0.0
    %1904 = vmatprep.subr.mxu0 0.0
    %1905 = vmatpush1.msra.mxu0 0.0
    %1906 = vmatprep.subr.mxu0 0.0
    %1907 = vmatpush1.msra.mxu0 0.0
    %1908 = vmatprep.subr.mxu0 0.0
    %1909 = vmatpush1.msra.mxu0 0.0
    %1910 = vmatprep.subr.mxu0 0.0
    %1911 = vmatpush1.msra.mxu0 0.0
    %1912 = vmatprep.subr.mxu0 0.0
    %1913 = vmatpush1.msra.mxu0 0.0
    %1914 = vmatprep.subr.mxu0 0.0
    %1915 = vmatpush1.msra.mxu0 0.0
    %1916 = vmatprep.subr.mxu0 0.0
    %1917 = vmatpush1.msra.mxu0 0.0
    %1918 = vmatprep.subr.mxu0 0.0
    %1919 = vmatpush1.msra.mxu0 0.0
    %1920 = vmatprep.subr.mxu0 0.0
    %1921 = vmatpush1.msra.mxu0 0.0
    %1922 = vmatprep.subr.mxu0 0.0
    %1923 = vmatpush1.msra.mxu0 0.0
    %1924 = vmatprep.subr.mxu0 0.0
    %1925 = vmatpush1.msra.mxu0 0.0
    %1926 = vmatprep.subr.mxu0 0.0
    %1927 = vmatpush1.msra.mxu0 0.0
    %1928 = vmatprep.subr.mxu0 0.0
    %1929 = vmatpush1.msra.mxu0 0.0
    %1930 = vmatprep.subr.mxu0 0.0
    %1931 = vmatpush1.msra.mxu0 0.0
    %1932 = vmatprep.subr.mxu0 0.0
    %1933 = vmatpush1.msra.mxu0 0.0
    %1934 = vmatprep.subr.mxu0 0.0
    %1935 = vmatpush1.msra.mxu0 0.0
    %1936 = vmatprep.subr.mxu0 0.0
    %1937 = vmatpush1.msra.mxu0 0.0
    %1938 = vmatprep.subr.mxu0 0.0
    %1939 = vmatpush1.msra.mxu0 0.0
    %1940 = vmatprep.subr.mxu0 0.0
    %1941 = vmatpush1.msra.mxu0 0.0
    %1942 = vmatprep.subr.mxu0 0.0
    %1943 = vmatpush1.msra.mxu0 0.0
    %1944 = vmatprep.mubr.f32.mxu0 0.0
    %1945 = vmatmul.mubr.f32.gmra.mrb[0].mxu0 %v1857
    %v1946 = vpop.f32.mrb[0].mxu0
    %v1947 = vadd.f32 0.0, %v1946
    %v1948 = vpop.f32.mrb[0].mxu0
    %1949 = vmatprep.mubr.f32.mxu0 0.0
    %1950 = vmatmul.mubr.f32.gmra.mrb[0].mxu0 %v1860
    %v1951 = vpop.f32.mrb[0].mxu0
    %v1952 = vadd.f32 0.0, %v1951
    %v1953 = vpop.f32.mrb[0].mxu0
    %1954 = vmatprep.mubr.f32.mxu0 0.0
    %1955 = vmatmul.mubr.f32.gmra.mrb[0].mxu0 %v1863
    %v1956 = vpop.f32.mrb[0].mxu0
    %v1957 = vadd.f32 0.0, %v1956
    %v1958 = vpop.f32.mrb[0].mxu0
    %1959 = vmatprep.mubr.f32.mxu0 0.0
    %1960 = vmatmul.mubr.f32.gmra.mrb[0].mxu0 %v1866
    %v1961 = vpop.f32.mrb[0].mxu0
    %v1962 = vadd.f32 0.0, %v1961
    %v1963 = vpop.f32.mrb[0].mxu0
    %1964 = vmatprep.mubr.f32.mxu0 0.0
    %1965 = vmatmul.mubr.f32.gmra.mrb[0].mxu0 %v1869
    %v1966 = vpop.f32.mrb[0].mxu0
    %v1967 = vadd.f32 0.0, %v1966
    %v1968 = vpop.f32.mrb[0].mxu0
    %1969 = vmatprep.mubr.f32.mxu0 0.0
    %1970 = vmatmul.mubr.f32.gmra.mrb[0].mxu0 %v1872
    %v1971 = vpop.f32.mrb[0].mxu0
    %v1972 = vadd.f32 0.0, %v1971
    %v1973 = vpop.f32.mrb[0].mxu0
    %1974 = vmatprep.mubr.f32.mxu0 0.0
    %1975 = vmatmul.mubr.f32.gmra.mrb[0].mxu0 %v1875
    %v1976 = vpop.f32.mrb[0].mxu0
    %v1977 = vadd.f32 0.0, %v1976
    %v1978 = vpop.f32.mrb[0].mxu0
    %1979 = vmatprep.mubr.f32.mxu0 0.0
    %1980 = vmatmul.mubr.f32.gmra.mrb[0].mxu0 %v1878
    %v1981 = vpop.f32.mrb[0].mxu0
    %v1982 = vadd.f32 0.0, %v1981
    %v1983 = vpop.f32.mrb[0].mxu0
    %1984 = vdwg.mxu0
    %v1985 = vadd.f32 %v1391, %v1947
    %v1986 = vadd.f32 %v1396, %v1952
    %v1987 = vadd.f32 %v1401, %v1957
    %v1988 = vadd.f32 %v1406, %v1962
    %v1989 = vadd.f32 %v1411, %v1967
    %v1990 = vadd.f32 %v1416, %v1972
    %v1991 = vadd.f32 %v1421, %v1977
    %v1992 = vadd.f32 %v1426, %v1982
    %1993 = vrot.lane.b32.xlu0 %v158, 104
    %v1994 = vpop.permute.xlu0 %1993
    %1995 = vrot.lane.b32.xlu0 %v163, 104
    %v1996 = vpop.permute.xlu0 %1995
    %1997 = vrot.lane.b32.xlu0 %v168, 104
    %v1998 = vpop.permute.xlu0 %1997
    %1999 = vrot.lane.b32.xlu0 %v173, 104
    %v2000 = vpop.permute.xlu0 %1999
    %2001 = vrot.lane.b32.xlu0 %v178, 104
    %v2002 = vpop.permute.xlu0 %2001
    %2003 = vrot.lane.b32.xlu0 %v183, 104
    %v2004 = vpop.permute.xlu0 %2003
    %2005 = vrot.lane.b32.xlu0 %v188, 104
    %v2006 = vpop.permute.xlu0 %2005
    %2007 = vrot.lane.b32.xlu0 %v193, 104
    %v2008 = vpop.permute.xlu0 %2007
    %2009 = vrot.lane.b32.xlu0 %v158, 72
    %v2010 = vpop.permute.xlu0 %2009
    %2011 = vrot.lane.b32.xlu0 %v163, 72
    %v2012 = vpop.permute.xlu0 %2011
    %2013 = vrot.lane.b32.xlu0 %v168, 72
    %v2014 = vpop.permute.xlu0 %2013
    %2015 = vrot.lane.b32.xlu0 %v173, 72
    %v2016 = vpop.permute.xlu0 %2015
    %2017 = vrot.lane.b32.xlu0 %v178, 72
    %v2018 = vpop.permute.xlu0 %2017
    %2019 = vrot.lane.b32.xlu0 %v183, 72
    %v2020 = vpop.permute.xlu0 %2019
    %2021 = vrot.lane.b32.xlu0 %v188, 72
    %v2022 = vpop.permute.xlu0 %2021
    %2023 = vrot.lane.b32.xlu0 %v193, 72
    %v2024 = vpop.permute.xlu0 %2023
    %v2025 = vsel %vm347, %v1994, 0
    %v2027 = vsel %vm347, %v1996, 0
    %v2029 = vsel %vm347, %v1998, 0
    %v2031 = vsel %vm347, %v2000, 0
    %v2033 = vsel %vm347, %v2002, 0
    %v2035 = vsel %vm347, %v2004, 0
    %v2037 = vsel %vm347, %v2006, 0
    %v2039 = vsel %vm347, %v2008, 0
    %v2041 = vsel %vm347, %v2010, 0
    %v2043 = vsel %vm347, %v2012, 0
    %v2045 = vsel %vm347, %v2014, 0
    %v2047 = vsel %vm347, %v2016, 0
    %v2049 = vsel %vm347, %v2018, 0
    %v2051 = vsel %vm347, %v2020, 0
    %v2053 = vsel %vm347, %v2022, 0
    %v2055 = vsel %vm347, %v2024, 0
    %2057 = vmatprep.subr.mxu0 0.0
    %2058 = vmatpush1.xpose.msra.mxu0 %v2041
    %2059 = vmatprep.subr.mxu0 0.0
    %2060 = vmatpush1.xpose.msra.mxu0 %v2043
    %2061 = vmatprep.subr.mxu0 0.0
    %2062 = vmatpush1.xpose.msra.mxu0 %v2045
    %2063 = vmatprep.subr.mxu0 0.0
    %2064 = vmatpush1.xpose.msra.mxu0 %v2047
    %2065 = vmatprep.subr.mxu0 0.0
    %2066 = vmatpush1.xpose.msra.mxu0 %v2049
    %2067 = vmatprep.subr.mxu0 0.0
    %2068 = vmatpush1.xpose.msra.mxu0 %v2051
    %2069 = vmatprep.subr.mxu0 0.0
    %2070 = vmatpush1.xpose.msra.mxu0 %v2053
    %2071 = vmatprep.subr.mxu0 0.0
    %2072 = vmatpush1.xpose.msra.mxu0 %v2055
    %2073 = vmatprep.subr.mxu0 0.0
    %2074 = vmatpush1.xpose.msra.mxu0 0.0
    %2075 = vmatprep.subr.mxu0 0.0
    %2076 = vmatpush1.xpose.msra.mxu0 0.0
    %2077 = vmatprep.subr.mxu0 0.0
    %2078 = vmatpush1.xpose.msra.mxu0 0.0
    %2079 = vmatprep.subr.mxu0 0.0
    %2080 = vmatpush1.xpose.msra.mxu0 0.0
    %2081 = vmatprep.subr.mxu0 0.0
    %2082 = vmatpush1.xpose.msra.mxu0 0.0
    %2083 = vmatprep.subr.mxu0 0.0
    %2084 = vmatpush1.xpose.msra.mxu0 0.0
    %2085 = vmatprep.subr.mxu0 0.0
    %2086 = vmatpush1.xpose.msra.mxu0 0.0
    %2087 = vmatprep.subr.mxu0 0.0
    %2088 = vmatpush1.xpose.msra.mxu0 0.0
    %2089 = vmatprep.subr.mxu0 0.0
    %2090 = vmatpush1.xpose.msra.mxu0 0.0
    %2091 = vmatprep.subr.mxu0 0.0
    %2092 = vmatpush1.xpose.msra.mxu0 0.0
    %2093 = vmatprep.subr.mxu0 0.0
    %2094 = vmatpush1.xpose.msra.mxu0 0.0
    %2095 = vmatprep.subr.mxu0 0.0
    %2096 = vmatpush1.xpose.msra.mxu0 0.0
    %2097 = vmatprep.subr.mxu0 0.0
    %2098 = vmatpush1.xpose.msra.mxu0 0.0
    %2099 = vmatprep.subr.mxu0 0.0
    %2100 = vmatpush1.xpose.msra.mxu0 0.0
    %2101 = vmatprep.subr.mxu0 0.0
    %2102 = vmatpush1.xpose.msra.mxu0 0.0
    %2103 = vmatprep.subr.mxu0 0.0
    %2104 = vmatpush1.xpose.msra.mxu0 0.0
    %2105 = vmatprep.subr.mxu0 0.0
    %2106 = vmatpush1.xpose.msra.mxu0 0.0
    %2107 = vmatprep.subr.mxu0 0.0
    %2108 = vmatpush1.xpose.msra.mxu0 0.0
    %2109 = vmatprep.subr.mxu0 0.0
    %2110 = vmatpush1.xpose.msra.mxu0 0.0
    %2111 = vmatprep.subr.mxu0 0.0
    %2112 = vmatpush1.xpose.msra.mxu0 0.0
    %2113 = vmatprep.subr.mxu0 0.0
    %2114 = vmatpush1.xpose.msra.mxu0 0.0
    %2115 = vmatprep.subr.mxu0 0.0
    %2116 = vmatpush1.xpose.msra.mxu0 0.0
    %2117 = vmatprep.subr.mxu0 0.0
    %2118 = vmatpush1.xpose.msra.mxu0 0.0
    %2119 = vmatprep.subr.mxu0 0.0
    %2120 = vmatpush1.xpose.msra.mxu0 0.0
    %2121 = vmatprep.mubr.f32.mxu0 0.0
    %2122 = vmatmul.mubr.f32.gmra.mrb[0].mxu0 %v2025
    %v2123 = vpop.f32.mrb[0].mxu0
    %v2124 = vadd.f32 0.0, %v2123
    %v2125 = vpop.f32.mrb[0].mxu0
    %2126 = vmatprep.mubr.f32.mxu0 0.0
    %2127 = vmatmul.mubr.f32.gmra.mrb[0].mxu0 %v2027
    %v2128 = vpop.f32.mrb[0].mxu0
    %v2129 = vadd.f32 0.0, %v2128
    %v2130 = vpop.f32.mrb[0].mxu0
    %2131 = vmatprep.mubr.f32.mxu0 0.0
    %2132 = vmatmul.mubr.f32.gmra.mrb[0].mxu0 %v2029
    %v2133 = vpop.f32.mrb[0].mxu0
    %v2134 = vadd.f32 0.0, %v2133
    %v2135 = vpop.f32.mrb[0].mxu0
    %2136 = vmatprep.mubr.f32.mxu0 0.0
    %2137 = vmatmul.mubr.f32.gmra.mrb[0].mxu0 %v2031
    %v2138 = vpop.f32.mrb[0].mxu0
    %v2139 = vadd.f32 0.0, %v2138
    %v2140 = vpop.f32.mrb[0].mxu0
    %2141 = vmatprep.mubr.f32.mxu0 0.0
    %2142 = vmatmul.mubr.f32.gmra.mrb[0].mxu0 %v2033
    %v2143 = vpop.f32.mrb[0].mxu0
    %v2144 = vadd.f32 0.0, %v2143
    %v2145 = vpop.f32.mrb[0].mxu0
    %2146 = vmatprep.mubr.f32.mxu0 0.0
    %2147 = vmatmul.mubr.f32.gmra.mrb[0].mxu0 %v2035
    %v2148 = vpop.f32.mrb[0].mxu0
    %v2149 = vadd.f32 0.0, %v2148
    %v2150 = vpop.f32.mrb[0].mxu0
    %2151 = vmatprep.mubr.f32.mxu0 0.0
    %2152 = vmatmul.mubr.f32.gmra.mrb[0].mxu0 %v2037
    %v2153 = vpop.f32.mrb[0].mxu0
    %v2154 = vadd.f32 0.0, %v2153
    %v2155 = vpop.f32.mrb[0].mxu0
    %2156 = vmatprep.mubr.f32.mxu0 0.0
    %2157 = vmatmul.mubr.f32.gmra.mrb[0].mxu0 %v2039
    %v2158 = vpop.f32.mrb[0].mxu0
    %v2159 = vadd.f32 0.0, %v2158
    %v2160 = vpop.f32.mrb[0].mxu0
    %2161 = vdwg.mxu0
    %v2162 = vmul.f32 %v2124, 0.35355338
    %v2163 = vmul.f32 %v2129, 0.35355338
    %v2164 = vmul.f32 %v2134, 0.35355338
    %v2165 = vmul.f32 %v2139, 0.35355338
    %v2166 = vmul.f32 %v2144, 0.35355338
    %v2167 = vmul.f32 %v2149, 0.35355338
    %v2168 = vmul.f32 %v2154, 0.35355338
    %v2169 = vmul.f32 %v2159, 0.35355338
    %v2170 = vsel %vm315, %v2162, -1e+30
    %v2171 = vsel %vm316, %v2163, -1e+30
    %v2172 = vsel %vm317, %v2164, -1e+30
    %v2173 = vsel %vm318, %v2165, -1e+30
    %v2174 = vsel %vm319, %v2166, -1e+30
    %v2175 = vsel %vm320, %v2167, -1e+30
    %v2176 = vsel %vm321, %v2168, -1e+30
    %v2177 = vsel %vm322, %v2169, -1e+30
    %v2178 = vsel %vm501, %v2170, -inf
    %2179 = vmax.xlane.f32.xlu0 %v2178
    %v2180 = vpop.xlane.xlu0 %2179
    %v2181 = vsel %vm501, %v2171, -inf
    %2182 = vmax.xlane.f32.xlu0 %v2181
    %v2183 = vpop.xlane.xlu0 %2182
    %v2184 = vsel %vm501, %v2172, -inf
    %2185 = vmax.xlane.f32.xlu0 %v2184
    %v2186 = vpop.xlane.xlu0 %2185
    %v2187 = vsel %vm501, %v2173, -inf
    %2188 = vmax.xlane.f32.xlu0 %v2187
    %v2189 = vpop.xlane.xlu0 %2188
    %v2190 = vsel %vm501, %v2174, -inf
    %2191 = vmax.xlane.f32.xlu0 %v2190
    %v2192 = vpop.xlane.xlu0 %2191
    %v2193 = vsel %vm501, %v2175, -inf
    %2194 = vmax.xlane.f32.xlu0 %v2193
    %v2195 = vpop.xlane.xlu0 %2194
    %v2196 = vsel %vm501, %v2176, -inf
    %2197 = vmax.xlane.f32.xlu0 %v2196
    %v2198 = vpop.xlane.xlu0 %2197
    %v2199 = vsel %vm501, %v2177, -inf
    %2200 = vmax.xlane.f32.xlu0 %v2199
    %v2201 = vpop.xlane.xlu0 %2200
    %v2202 = vsub.f32 %v2170, %v2180
    %v2203 = vsub.f32 %v2171, %v2183
    %v2204 = vsub.f32 %v2172, %v2186
    %v2205 = vsub.f32 %v2173, %v2189
    %v2206 = vsub.f32 %v2174, %v2192
    %v2207 = vsub.f32 %v2175, %v2195
    %v2208 = vsub.f32 %v2176, %v2198
    %v2209 = vsub.f32 %v2177, %v2201
    %v2210 = vmul.f32 %v2202, 1.442695
    %v2211 = vpow.pop %v2210
    %v2212 = vmul.f32 %v2203, 1.442695
    %v2213 = vpow.pop %v2212
    %v2214 = vmul.f32 %v2204, 1.442695
    %v2215 = vpow.pop %v2214
    %v2216 = vmul.f32 %v2205, 1.442695
    %v2217 = vpow.pop %v2216
    %v2218 = vmul.f32 %v2206, 1.442695
    %v2219 = vpow.pop %v2218
    %v2220 = vmul.f32 %v2207, 1.442695
    %v2221 = vpow.pop %v2220
    %v2222 = vmul.f32 %v2208, 1.442695
    %v2223 = vpow.pop %v2222
    %v2224 = vmul.f32 %v2209, 1.442695
    %v2225 = vpow.pop %v2224
    %v2226 = vsel %vm501, %v2211, 0.0
    %2227 = vadd.xlane.f32.xlu0 %v2226
    %v2228 = vpop.xlane.xlu0 %2227
    %v2229 = vsel %vm501, %v2213, 0.0
    %2230 = vadd.xlane.f32.xlu0 %v2229
    %v2231 = vpop.xlane.xlu0 %2230
    %v2232 = vsel %vm501, %v2215, 0.0
    %2233 = vadd.xlane.f32.xlu0 %v2232
    %v2234 = vpop.xlane.xlu0 %2233
    %v2235 = vsel %vm501, %v2217, 0.0
    %2236 = vadd.xlane.f32.xlu0 %v2235
    %v2237 = vpop.xlane.xlu0 %2236
    %v2238 = vsel %vm501, %v2219, 0.0
    %2239 = vadd.xlane.f32.xlu0 %v2238
    %v2240 = vpop.xlane.xlu0 %2239
    %v2241 = vsel %vm501, %v2221, 0.0
    %2242 = vadd.xlane.f32.xlu0 %v2241
    %v2243 = vpop.xlane.xlu0 %2242
    %v2244 = vsel %vm501, %v2223, 0.0
    %2245 = vadd.xlane.f32.xlu0 %v2244
    %v2246 = vpop.xlane.xlu0 %2245
    %v2247 = vsel %vm501, %v2225, 0.0
    %2248 = vadd.xlane.f32.xlu0 %v2247
    %v2249 = vpop.xlane.xlu0 %2248
    %v2250 = vrcp.pop %v2228
    %v2251 = vrcp.pop %v2231
    %v2252 = vrcp.pop %v2234
    %v2253 = vrcp.pop %v2237
    %v2254 = vrcp.pop %v2240
    %v2255 = vrcp.pop %v2243
    %v2256 = vrcp.pop %v2246
    %v2257 = vrcp.pop %v2249
    %v2258 = vmul.f32 %v2211, %v2250
    %v2259 = vmul.f32 %v2213, %v2251
    %v2260 = vmul.f32 %v2215, %v2252
    %v2261 = vmul.f32 %v2217, %v2253
    %v2262 = vmul.f32 %v2219, %v2254
    %v2263 = vmul.f32 %v2221, %v2255
    %v2264 = vmul.f32 %v2223, %v2256
    %v2265 = vmul.f32 %v2225, %v2257
    %2266 = vrot.lane.b32.xlu0 %v158, 40
    %v2267 = vpop.permute.xlu0 %2266
    %2268 = vrot.lane.b32.xlu0 %v163, 40
    %v2269 = vpop.permute.xlu0 %2268
    %2270 = vrot.lane.b32.xlu0 %v168, 40
    %v2271 = vpop.permute.xlu0 %2270
    %2272 = vrot.lane.b32.xlu0 %v173, 40
    %v2273 = vpop.permute.xlu0 %2272
    %2274 = vrot.lane.b32.xlu0 %v178, 40
    %v2275 = vpop.permute.xlu0 %2274
    %2276 = vrot.lane.b32.xlu0 %v183, 40
    %v2277 = vpop.permute.xlu0 %2276
    %2278 = vrot.lane.b32.xlu0 %v188, 40
    %v2279 = vpop.permute.xlu0 %2278
    %2280 = vrot.lane.b32.xlu0 %v193, 40
    %v2281 = vpop.permute.xlu0 %2280
    %v2291 = vsel %vm501, %v2258, 0
    %v2294 = vsel %vm501, %v2259, 0
    %v2297 = vsel %vm501, %v2260, 0
    %v2300 = vsel %vm501, %v2261, 0
    %v2303 = vsel %vm501, %v2262, 0
    %v2306 = vsel %vm501, %v2263, 0
    %v2309 = vsel %vm501, %v2264, 0
    %v2312 = vsel %vm501, %v2265, 0
    %2314 = vmatprep.subr.mxu0 0.0
    %2315 = vmatpush1.msra.mxu0 %v2267
    %2316 = vmatprep.subr.mxu0 0.0
    %2317 = vmatpush1.msra.mxu0 %v2269
    %2318 = vmatprep.subr.mxu0 0.0
    %2319 = vmatpush1.msra.mxu0 %v2271
    %2320 = vmatprep.subr.mxu0 0.0
    %2321 = vmatpush1.msra.mxu0 %v2273
    %2322 = vmatprep.subr.mxu0 0.0
    %2323 = vmatpush1.msra.mxu0 %v2275
    %2324 = vmatprep.subr.mxu0 0.0
    %2325 = vmatpush1.msra.mxu0 %v2277
    %2326 = vmatprep.subr.mxu0 0.0
    %2327 = vmatpush1.msra.mxu0 %v2279
    %2328 = vmatprep.subr.mxu0 0.0
    %2329 = vmatpush1.msra.mxu0 %v2281
    %2330 = vmatprep.subr.mxu0 0.0
    %2331 = vmatpush1.msra.mxu0 0.0
    %2332 = vmatprep.subr.mxu0 0.0
    %2333 = vmatpush1.msra.mxu0 0.0
    %2334 = vmatprep.subr.mxu0 0.0
    %2335 = vmatpush1.msra.mxu0 0.0
    %2336 = vmatprep.subr.mxu0 0.0
    %2337 = vmatpush1.msra.mxu0 0.0
    %2338 = vmatprep.subr.mxu0 0.0
    %2339 = vmatpush1.msra.mxu0 0.0
    %2340 = vmatprep.subr.mxu0 0.0
    %2341 = vmatpush1.msra.mxu0 0.0
    %2342 = vmatprep.subr.mxu0 0.0
    %2343 = vmatpush1.msra.mxu0 0.0
    %2344 = vmatprep.subr.mxu0 0.0
    %2345 = vmatpush1.msra.mxu0 0.0
    %2346 = vmatprep.subr.mxu0 0.0
    %2347 = vmatpush1.msra.mxu0 0.0
    %2348 = vmatprep.subr.mxu0 0.0
    %2349 = vmatpush1.msra.mxu0 0.0
    %2350 = vmatprep.subr.mxu0 0.0
    %2351 = vmatpush1.msra.mxu0 0.0
    %2352 = vmatprep.subr.mxu0 0.0
    %2353 = vmatpush1.msra.mxu0 0.0
    %2354 = vmatprep.subr.mxu0 0.0
    %2355 = vmatpush1.msra.mxu0 0.0
    %2356 = vmatprep.subr.mxu0 0.0
    %2357 = vmatpush1.msra.mxu0 0.0
    %2358 = vmatprep.subr.mxu0 0.0
    %2359 = vmatpush1.msra.mxu0 0.0
    %2360 = vmatprep.subr.mxu0 0.0
    %2361 = vmatpush1.msra.mxu0 0.0
    %2362 = vmatprep.subr.mxu0 0.0
    %2363 = vmatpush1.msra.mxu0 0.0
    %2364 = vmatprep.subr.mxu0 0.0
    %2365 = vmatpush1.msra.mxu0 0.0
    %2366 = vmatprep.subr.mxu0 0.0
    %2367 = vmatpush1.msra.mxu0 0.0
    %2368 = vmatprep.subr.mxu0 0.0
    %2369 = vmatpush1.msra.mxu0 0.0
    %2370 = vmatprep.subr.mxu0 0.0
    %2371 = vmatpush1.msra.mxu0 0.0
    %2372 = vmatprep.subr.mxu0 0.0
    %2373 = vmatpush1.msra.mxu0 0.0
    %2374 = vmatprep.subr.mxu0 0.0
    %2375 = vmatpush1.msra.mxu0 0.0
    %2376 = vmatprep.subr.mxu0 0.0
    %2377 = vmatpush1.msra.mxu0 0.0
    %2378 = vmatprep.mubr.f32.mxu0 0.0
    %2379 = vmatmul.mubr.f32.gmra.mrb[0].mxu0 %v2291
    %v2380 = vpop.f32.mrb[0].mxu0
    %v2381 = vadd.f32 0.0, %v2380
    %v2382 = vpop.f32.mrb[0].mxu0
    %2383 = vmatprep.mubr.f32.mxu0 0.0
    %2384 = vmatmul.mubr.f32.gmra.mrb[0].mxu0 %v2294
    %v2385 = vpop.f32.mrb[0].mxu0
    %v2386 = vadd.f32 0.0, %v2385
    %v2387 = vpop.f32.mrb[0].mxu0
    %2388 = vmatprep.mubr.f32.mxu0 0.0
    %2389 = vmatmul.mubr.f32.gmra.mrb[0].mxu0 %v2297
    %v2390 = vpop.f32.mrb[0].mxu0
    %v2391 = vadd.f32 0.0, %v2390
    %v2392 = vpop.f32.mrb[0].mxu0
    %2393 = vmatprep.mubr.f32.mxu0 0.0
    %2394 = vmatmul.mubr.f32.gmra.mrb[0].mxu0 %v2300
    %v2395 = vpop.f32.mrb[0].mxu0
    %v2396 = vadd.f32 0.0, %v2395
    %v2397 = vpop.f32.mrb[0].mxu0
    %2398 = vmatprep.mubr.f32.mxu0 0.0
    %2399 = vmatmul.mubr.f32.gmra.mrb[0].mxu0 %v2303
    %v2400 = vpop.f32.mrb[0].mxu0
    %v2401 = vadd.f32 0.0, %v2400
    %v2402 = vpop.f32.mrb[0].mxu0
    %2403 = vmatprep.mubr.f32.mxu0 0.0
    %2404 = vmatmul.mubr.f32.gmra.mrb[0].mxu0 %v2306
    %v2405 = vpop.f32.mrb[0].mxu0
    %v2406 = vadd.f32 0.0, %v2405
    %v2407 = vpop.f32.mrb[0].mxu0
    %2408 = vmatprep.mubr.f32.mxu0 0.0
    %2409 = vmatmul.mubr.f32.gmra.mrb[0].mxu0 %v2309
    %v2410 = vpop.f32.mrb[0].mxu0
    %v2411 = vadd.f32 0.0, %v2410
    %v2412 = vpop.f32.mrb[0].mxu0
    %2413 = vmatprep.mubr.f32.mxu0 0.0
    %2414 = vmatmul.mubr.f32.gmra.mrb[0].mxu0 %v2312
    %v2415 = vpop.f32.mrb[0].mxu0
    %v2416 = vadd.f32 0.0, %v2415
    %v2417 = vpop.f32.mrb[0].mxu0
    %2418 = vdwg.mxu0
    %v2419 = vld [vmem:[%s2 + $0x18] sm:$0xff]
    %v2421 = vsel %vm347, %v2381, 0
    %v2424 = vsel %vm347, %v2386, 0
    %v2427 = vsel %vm347, %v2391, 0
    %v2430 = vsel %vm347, %v2396, 0
    %v2433 = vsel %vm347, %v2401, 0
    %v2436 = vsel %vm347, %v2406, 0
    %v2439 = vsel %vm347, %v2411, 0
    %v2442 = vsel %vm347, %v2416, 0
    %2444 = vmatprep.subr.mxu0 0.0
    %2445 = vmatpush1.msra.mxu0 %v2419
    %2446 = vmatprep.subr.mxu0 0.0
    %2447 = vmatpush1.msra.mxu0 0.0
    %2448 = vmatprep.subr.mxu0 0.0
    %2449 = vmatpush1.msra.mxu0 0.0
    %2450 = vmatprep.subr.mxu0 0.0
    %2451 = vmatpush1.msra.mxu0 0.0
    %2452 = vmatprep.subr.mxu0 0.0
    %2453 = vmatpush1.msra.mxu0 0.0
    %2454 = vmatprep.subr.mxu0 0.0
    %2455 = vmatpush1.msra.mxu0 0.0
    %2456 = vmatprep.subr.mxu0 0.0
    %2457 = vmatpush1.msra.mxu0 0.0
    %2458 = vmatprep.subr.mxu0 0.0
    %2459 = vmatpush1.msra.mxu0 0.0
    %2460 = vmatprep.subr.mxu0 0.0
    %2461 = vmatpush1.msra.mxu0 0.0
    %2462 = vmatprep.subr.mxu0 0.0
    %2463 = vmatpush1.msra.mxu0 0.0
    %2464 = vmatprep.subr.mxu0 0.0
    %2465 = vmatpush1.msra.mxu0 0.0
    %2466 = vmatprep.subr.mxu0 0.0
    %2467 = vmatpush1.msra.mxu0 0.0
    %2468 = vmatprep.subr.mxu0 0.0
    %2469 = vmatpush1.msra.mxu0 0.0
    %2470 = vmatprep.subr.mxu0 0.0
    %2471 = vmatpush1.msra.mxu0 0.0
    %2472 = vmatprep.subr.mxu0 0.0
    %2473 = vmatpush1.msra.mxu0 0.0
    %2474 = vmatprep.subr.mxu0 0.0
    %2475 = vmatpush1.msra.mxu0 0.0
    %2476 = vmatprep.subr.mxu0 0.0
    %2477 = vmatpush1.msra.mxu0 0.0
    %2478 = vmatprep.subr.mxu0 0.0
    %2479 = vmatpush1.msra.mxu0 0.0
    %2480 = vmatprep.subr.mxu0 0.0
    %2481 = vmatpush1.msra.mxu0 0.0
    %2482 = vmatprep.subr.mxu0 0.0
    %2483 = vmatpush1.msra.mxu0 0.0
    %2484 = vmatprep.subr.mxu0 0.0
    %2485 = vmatpush1.msra.mxu0 0.0
    %2486 = vmatprep.subr.mxu0 0.0
    %2487 = vmatpush1.msra.mxu0 0.0
    %2488 = vmatprep.subr.mxu0 0.0
    %2489 = vmatpush1.msra.mxu0 0.0
    %2490 = vmatprep.subr.mxu0 0.0
    %2491 = vmatpush1.msra.mxu0 0.0
    %2492 = vmatprep.subr.mxu0 0.0
    %2493 = vmatpush1.msra.mxu0 0.0
    %2494 = vmatprep.subr.mxu0 0.0
    %2495 = vmatpush1.msra.mxu0 0.0
    %2496 = vmatprep.subr.mxu0 0.0
    %2497 = vmatpush1.msra.mxu0 0.0
    %2498 = vmatprep.subr.mxu0 0.0
    %2499 = vmatpush1.msra.mxu0 0.0
    %2500 = vmatprep.subr.mxu0 0.0
    %2501 = vmatpush1.msra.mxu0 0.0
    %2502 = vmatprep.subr.mxu0 0.0
    %2503 = vmatpush1.msra.mxu0 0.0
    %2504 = vmatprep.subr.mxu0 0.0
    %2505 = vmatpush1.msra.mxu0 0.0
    %2506 = vmatprep.subr.mxu0 0.0
    %2507 = vmatpush1.msra.mxu0 0.0
    %2508 = vmatprep.mubr.f32.mxu0 0.0
    %2509 = vmatmul.mubr.f32.gmra.mrb[0].mxu0 %v2421
    %v2510 = vpop.f32.mrb[0].mxu0
    %v2511 = vadd.f32 0.0, %v2510
    %v2512 = vpop.f32.mrb[0].mxu0
    %2513 = vmatprep.mubr.f32.mxu0 0.0
    %2514 = vmatmul.mubr.f32.gmra.mrb[0].mxu0 %v2424
    %v2515 = vpop.f32.mrb[0].mxu0
    %v2516 = vadd.f32 0.0, %v2515
    %v2517 = vpop.f32.mrb[0].mxu0
    %2518 = vmatprep.mubr.f32.mxu0 0.0
    %2519 = vmatmul.mubr.f32.gmra.mrb[0].mxu0 %v2427
    %v2520 = vpop.f32.mrb[0].mxu0
    %v2521 = vadd.f32 0.0, %v2520
    %v2522 = vpop.f32.mrb[0].mxu0
    %2523 = vmatprep.mubr.f32.mxu0 0.0
    %2524 = vmatmul.mubr.f32.gmra.mrb[0].mxu0 %v2430
    %v2525 = vpop.f32.mrb[0].mxu0
    %v2526 = vadd.f32 0.0, %v2525
    %v2527 = vpop.f32.mrb[0].mxu0
    %2528 = vmatprep.mubr.f32.mxu0 0.0
    %2529 = vmatmul.mubr.f32.gmra.mrb[0].mxu0 %v2433
    %v2530 = vpop.f32.mrb[0].mxu0
    %v2531 = vadd.f32 0.0, %v2530
    %v2532 = vpop.f32.mrb[0].mxu0
    %2533 = vmatprep.mubr.f32.mxu0 0.0
    %2534 = vmatmul.mubr.f32.gmra.mrb[0].mxu0 %v2436
    %v2535 = vpop.f32.mrb[0].mxu0
    %v2536 = vadd.f32 0.0, %v2535
    %v2537 = vpop.f32.mrb[0].mxu0
    %2538 = vmatprep.mubr.f32.mxu0 0.0
    %2539 = vmatmul.mubr.f32.gmra.mrb[0].mxu0 %v2439
    %v2540 = vpop.f32.mrb[0].mxu0
    %v2541 = vadd.f32 0.0, %v2540
    %v2542 = vpop.f32.mrb[0].mxu0
    %2543 = vmatprep.mubr.f32.mxu0 0.0
    %2544 = vmatmul.mubr.f32.gmra.mrb[0].mxu0 %v2442
    %v2545 = vpop.f32.mrb[0].mxu0
    %v2546 = vadd.f32 0.0, %v2545
    %v2547 = vpop.f32.mrb[0].mxu0
    %2548 = vdwg.mxu0
    %v2549 = vadd.f32 %v1985, %v2511
    %v2550 = vadd.f32 %v1986, %v2516
    %v2551 = vadd.f32 %v1987, %v2521
    %v2552 = vadd.f32 %v1988, %v2526
    %v2553 = vadd.f32 %v1989, %v2531
    %v2554 = vadd.f32 %v1990, %v2536
    %v2555 = vadd.f32 %v1991, %v2541
    %v2556 = vadd.f32 %v1992, %v2546
    %v2557 = vlaneseq
    %v2558 = vshrl.u32 %v2557, 7
    %v2559 = vsub.s32 0, %v2558
    %v2560 = vrot.slane %v59, %v2559
    %v2561 = vadd.f32 %v2549, %v2560
    %v2562 = vadd.f32 %v2550, %v2560
    %v2563 = vadd.f32 %v2551, %v2560
    %v2564 = vadd.f32 %v2552, %v2560
    %v2565 = vadd.f32 %v2553, %v2560
    %v2566 = vadd.f32 %v2554, %v2560
    %v2567 = vadd.f32 %v2555, %v2560
    %v2568 = vadd.f32 %v2556, %v2560
    %v2569 = vadd.f32 %v36, %v2561
    %v2570 = vadd.f32 %v40, %v2562
    %v2571 = vadd.f32 %v43, %v2563
    %v2572 = vadd.f32 %v46, %v2564
    %v2573 = vadd.f32 %v37, %v2565
    %v2574 = vadd.f32 %v50, %v2566
    %v2575 = vadd.f32 %v53, %v2567
    %v2576 = vadd.f32 %v56, %v2568
    %v2577 = vsel %vm74, %v2569, 0.0
    %2578 = vadd.xlane.f32.xlu0 %v2577
    %v2579 = vpop.xlane.xlu0 %2578
    %v2580 = vsel %vm74, %v2570, 0.0
    %2581 = vadd.xlane.f32.xlu0 %v2580
    %v2582 = vpop.xlane.xlu0 %2581
    %v2583 = vsel %vm74, %v2571, 0.0
    %2584 = vadd.xlane.f32.xlu0 %v2583
    %v2585 = vpop.xlane.xlu0 %2584
    %v2586 = vsel %vm74, %v2572, 0.0
    %2587 = vadd.xlane.f32.xlu0 %v2586
    %v2588 = vpop.xlane.xlu0 %2587
    %v2589 = vsel %vm74, %v2573, 0.0
    %2590 = vadd.xlane.f32.xlu0 %v2589
    %v2591 = vpop.xlane.xlu0 %2590
    %v2592 = vsel %vm74, %v2574, 0.0
    %2593 = vadd.xlane.f32.xlu0 %v2592
    %v2594 = vpop.xlane.xlu0 %2593
    %v2595 = vsel %vm74, %v2575, 0.0
    %2596 = vadd.xlane.f32.xlu0 %v2595
    %v2597 = vpop.xlane.xlu0 %2596
    %v2598 = vsel %vm74, %v2576, 0.0
    %2599 = vadd.xlane.f32.xlu0 %v2598
    %v2600 = vpop.xlane.xlu0 %2599
    %v2601 = vrcp.pop 32.0
    %v2602 = vmul.f32 %v2579, %v2601
    %v2603 = vmul.f32 %v2582, %v2601
    %v2604 = vmul.f32 %v2585, %v2601
    %v2605 = vmul.f32 %v2588, %v2601
    %v2606 = vmul.f32 %v2591, %v2601
    %v2607 = vmul.f32 %v2594, %v2601
    %v2608 = vmul.f32 %v2597, %v2601
    %v2609 = vmul.f32 %v2600, %v2601
    %v2610 = vsub.f32 %v2569, %v2602
    %v2611 = vsub.f32 %v2570, %v2603
    %v2612 = vsub.f32 %v2571, %v2604
    %v2613 = vsub.f32 %v2572, %v2605
    %v2614 = vsub.f32 %v2573, %v2606
    %v2615 = vsub.f32 %v2574, %v2607
    %v2616 = vsub.f32 %v2575, %v2608
    %v2617 = vsub.f32 %v2576, %v2609
    %v2618 = vmul.f32 %v2610, %v2610
    %v2619 = vmul.f32 %v2611, %v2611
    %v2620 = vmul.f32 %v2612, %v2612
    %v2621 = vmul.f32 %v2613, %v2613
    %v2622 = vmul.f32 %v2614, %v2614
    %v2623 = vmul.f32 %v2615, %v2615
    %v2624 = vmul.f32 %v2616, %v2616
    %v2625 = vmul.f32 %v2617, %v2617
    %v2626 = vsel %vm74, %v2618, 0.0
    %2627 = vadd.xlane.f32.xlu0 %v2626
    %v2628 = vpop.xlane.xlu0 %2627
    %v2629 = vsel %vm74, %v2619, 0.0
    %2630 = vadd.xlane.f32.xlu0 %v2629
    %v2631 = vpop.xlane.xlu0 %2630
    %v2632 = vsel %vm74, %v2620, 0.0
    %2633 = vadd.xlane.f32.xlu0 %v2632
    %v2634 = vpop.xlane.xlu0 %2633
    %v2635 = vsel %vm74, %v2621, 0.0
    %2636 = vadd.xlane.f32.xlu0 %v2635
    %v2637 = vpop.xlane.xlu0 %2636
    %v2638 = vsel %vm74, %v2622, 0.0
    %2639 = vadd.xlane.f32.xlu0 %v2638
    %v2640 = vpop.xlane.xlu0 %2639
    %v2641 = vsel %vm74, %v2623, 0.0
    %2642 = vadd.xlane.f32.xlu0 %v2641
    %v2643 = vpop.xlane.xlu0 %2642
    %v2644 = vsel %vm74, %v2624, 0.0
    %2645 = vadd.xlane.f32.xlu0 %v2644
    %v2646 = vpop.xlane.xlu0 %2645
    %v2647 = vsel %vm74, %v2625, 0.0
    %2648 = vadd.xlane.f32.xlu0 %v2647
    %v2649 = vpop.xlane.xlu0 %2648
    %v2650 = vmul.f32 %v2628, %v2601
    %v2651 = vmul.f32 %v2631, %v2601
    %v2652 = vmul.f32 %v2634, %v2601
    %v2653 = vmul.f32 %v2637, %v2601
    %v2654 = vmul.f32 %v2640, %v2601
    %v2655 = vmul.f32 %v2643, %v2601
    %v2656 = vmul.f32 %v2646, %v2601
    %v2657 = vmul.f32 %v2649, %v2601
    %v2658 = vadd.f32 %v2650, 1e-05
    %v2659 = vadd.f32 %v2651, 1e-05
    %v2660 = vadd.f32 %v2652, 1e-05
    %v2661 = vadd.f32 %v2653, 1e-05
    %v2662 = vadd.f32 %v2654, 1e-05
    %v2663 = vadd.f32 %v2655, 1e-05
    %v2664 = vadd.f32 %v2656, 1e-05
    %v2665 = vadd.f32 %v2657, 1e-05
    %v2666 = vrsqrt.pop %v2658
    %v2667 = vrsqrt.pop %v2659
    %v2668 = vrsqrt.pop %v2660
    %v2669 = vrsqrt.pop %v2661
    %v2670 = vrsqrt.pop %v2662
    %v2671 = vrsqrt.pop %v2663
    %v2672 = vrsqrt.pop %v2664
    %v2673 = vrsqrt.pop %v2665
    %v2674 = vmul.f32 %v2610, %v2666
    %v2675 = vmul.f32 %v2611, %v2667
    %v2676 = vmul.f32 %v2612, %v2668
    %v2677 = vmul.f32 %v2613, %v2669
    %v2678 = vmul.f32 %v2614, %v2670
    %v2679 = vmul.f32 %v2615, %v2671
    %v2680 = vmul.f32 %v2616, %v2672
    %v2681 = vmul.f32 %v2617, %v2673
    %v2682 = vlaneseq
    %v2683 = vshrl.u32 %v2682, 7
    %v2684 = vsub.s32 0, %v2683
    %v2685 = vrot.slane %v62, %v2684
    %v2686 = vmul.f32 %v2674, %v2685
    %v2687 = vmul.f32 %v2675, %v2685
    %v2688 = vmul.f32 %v2676, %v2685
    %v2689 = vmul.f32 %v2677, %v2685
    %v2690 = vmul.f32 %v2678, %v2685
    %v2691 = vmul.f32 %v2679, %v2685
    %v2692 = vmul.f32 %v2680, %v2685
    %v2693 = vmul.f32 %v2681, %v2685
    %v2694 = vlaneseq
    %v2695 = vshrl.u32 %v2694, 7
    %v2696 = vsub.s32 0, %v2695
    %v2697 = vrot.slane %v63, %v2696
    %v2698 = vadd.f32 %v2686, %v2697
    %v2699 = vadd.f32 %v2687, %v2697
    %v2700 = vadd.f32 %v2688, %v2697
    %v2701 = vadd.f32 %v2689, %v2697
    %v2702 = vadd.f32 %v2690, %v2697
    %v2703 = vadd.f32 %v2691, %v2697
    %v2704 = vadd.f32 %v2692, %v2697
    %v2705 = vadd.f32 %v2693, %v2697
    %v2706 = vld [vmem:[%s3] sm:$0xff]
    %v2707 = vld [vmem:[%s3 + $0x8] sm:$0xff]
    %v2708 = vld [vmem:[%s3 + $0x10] sm:$0xff]
    %v2709 = vld [vmem:[%s3 + $0x18] sm:$0xff]
    %v2710 = vlaneseq
    %v2711 = vshrl.u32 %v2710, 7
    %v2712 = vsub.s32 0, %v2711
    %v2713 = vrot.slane %v60, %v2712
    %v2715 = vsel %vm74, %v2698, 0
    %v2718 = vsel %vm74, %v2699, 0
    %v2721 = vsel %vm74, %v2700, 0
    %v2724 = vsel %vm74, %v2701, 0
    %v2727 = vsel %vm74, %v2702, 0
    %v2730 = vsel %vm74, %v2703, 0
    %v2733 = vsel %vm74, %v2704, 0
    %v2736 = vsel %vm74, %v2705, 0
    %2738 = vmatprep.subr.mxu0 0.0
    %2739 = vmatpush1.msra.mxu0 %v2706
    %2740 = vmatprep.subr.mxu0 0.0
    %2741 = vmatpush1.msra.mxu0 %v2707
    %2742 = vmatprep.subr.mxu0 0.0
    %2743 = vmatpush1.msra.mxu0 %v2708
    %2744 = vmatprep.subr.mxu0 0.0
    %2745 = vmatpush1.msra.mxu0 %v2709
    %2746 = vmatprep.subr.mxu0 0.0
    %2747 = vmatpush1.msra.mxu0 0.0
    %2748 = vmatprep.subr.mxu0 0.0
    %2749 = vmatpush1.msra.mxu0 0.0
    %2750 = vmatprep.subr.mxu0 0.0
    %2751 = vmatpush1.msra.mxu0 0.0
    %2752 = vmatprep.subr.mxu0 0.0
    %2753 = vmatpush1.msra.mxu0 0.0
    %2754 = vmatprep.subr.mxu0 0.0
    %2755 = vmatpush1.msra.mxu0 0.0
    %2756 = vmatprep.subr.mxu0 0.0
    %2757 = vmatpush1.msra.mxu0 0.0
    %2758 = vmatprep.subr.mxu0 0.0
    %2759 = vmatpush1.msra.mxu0 0.0
    %2760 = vmatprep.subr.mxu0 0.0
    %2761 = vmatpush1.msra.mxu0 0.0
    %2762 = vmatprep.subr.mxu0 0.0
    %2763 = vmatpush1.msra.mxu0 0.0
    %2764 = vmatprep.subr.mxu0 0.0
    %2765 = vmatpush1.msra.mxu0 0.0
    %2766 = vmatprep.subr.mxu0 0.0
    %2767 = vmatpush1.msra.mxu0 0.0
    %2768 = vmatprep.subr.mxu0 0.0
    %2769 = vmatpush1.msra.mxu0 0.0
    %2770 = vmatprep.subr.mxu0 0.0
    %2771 = vmatpush1.msra.mxu0 0.0
    %2772 = vmatprep.subr.mxu0 0.0
    %2773 = vmatpush1.msra.mxu0 0.0
    %2774 = vmatprep.subr.mxu0 0.0
    %2775 = vmatpush1.msra.mxu0 0.0
    %2776 = vmatprep.subr.mxu0 0.0
    %2777 = vmatpush1.msra.mxu0 0.0
    %2778 = vmatprep.subr.mxu0 0.0
    %2779 = vmatpush1.msra.mxu0 0.0
    %2780 = vmatprep.subr.mxu0 0.0
    %2781 = vmatpush1.msra.mxu0 0.0
    %2782 = vmatprep.subr.mxu0 0.0
    %2783 = vmatpush1.msra.mxu0 0.0
    %2784 = vmatprep.subr.mxu0 0.0
    %2785 = vmatpush1.msra.mxu0 0.0
    %2786 = vmatprep.subr.mxu0 0.0
    %2787 = vmatpush1.msra.mxu0 0.0
    %2788 = vmatprep.subr.mxu0 0.0
    %2789 = vmatpush1.msra.mxu0 0.0
    %2790 = vmatprep.subr.mxu0 0.0
    %2791 = vmatpush1.msra.mxu0 0.0
    %2792 = vmatprep.subr.mxu0 0.0
    %2793 = vmatpush1.msra.mxu0 0.0
    %2794 = vmatprep.subr.mxu0 0.0
    %2795 = vmatpush1.msra.mxu0 0.0
    %2796 = vmatprep.subr.mxu0 0.0
    %2797 = vmatpush1.msra.mxu0 0.0
    %2798 = vmatprep.subr.mxu0 0.0
    %2799 = vmatpush1.msra.mxu0 0.0
    %2800 = vmatprep.subr.mxu0 0.0
    %2801 = vmatpush1.msra.mxu0 0.0
    %2802 = vmatprep.mubr.f32.mxu0 0.0
    %2803 = vmatmul.mubr.f32.gmra.mrb[0].mxu0 %v2715
    %v2804 = vpop.f32.mrb[0].mxu0
    %v2805 = vadd.f32 %v2713, %v2804
    %v2806 = vpop.f32.mrb[0].mxu0
    %2807 = vmatprep.mubr.f32.mxu0 0.0
    %2808 = vmatmul.mubr.f32.gmra.mrb[0].mxu0 %v2718
    %v2809 = vpop.f32.mrb[0].mxu0
    %v2810 = vadd.f32 %v2713, %v2809
    %v2811 = vpop.f32.mrb[0].mxu0
    %2812 = vmatprep.mubr.f32.mxu0 0.0
    %2813 = vmatmul.mubr.f32.gmra.mrb[0].mxu0 %v2721
    %v2814 = vpop.f32.mrb[0].mxu0
    %v2815 = vadd.f32 %v2713, %v2814
    %v2816 = vpop.f32.mrb[0].mxu0
    %2817 = vmatprep.mubr.f32.mxu0 0.0
    %2818 = vmatmul.mubr.f32.gmra.mrb[0].mxu0 %v2724
    %v2819 = vpop.f32.mrb[0].mxu0
    %v2820 = vadd.f32 %v2713, %v2819
    %v2821 = vpop.f32.mrb[0].mxu0
    %2822 = vmatprep.mubr.f32.mxu0 0.0
    %2823 = vmatmul.mubr.f32.gmra.mrb[0].mxu0 %v2727
    %v2824 = vpop.f32.mrb[0].mxu0
    %v2825 = vadd.f32 %v2713, %v2824
    %v2826 = vpop.f32.mrb[0].mxu0
    %2827 = vmatprep.mubr.f32.mxu0 0.0
    %2828 = vmatmul.mubr.f32.gmra.mrb[0].mxu0 %v2730
    %v2829 = vpop.f32.mrb[0].mxu0
    %v2830 = vadd.f32 %v2713, %v2829
    %v2831 = vpop.f32.mrb[0].mxu0
    %2832 = vmatprep.mubr.f32.mxu0 0.0
    %2833 = vmatmul.mubr.f32.gmra.mrb[0].mxu0 %v2733
    %v2834 = vpop.f32.mrb[0].mxu0
    %v2835 = vadd.f32 %v2713, %v2834
    %v2836 = vpop.f32.mrb[0].mxu0
    %2837 = vmatprep.mubr.f32.mxu0 0.0
    %2838 = vmatmul.mubr.f32.gmra.mrb[0].mxu0 %v2736
    %v2839 = vpop.f32.mrb[0].mxu0
    %v2840 = vadd.f32 %v2713, %v2839
    %v2841 = vpop.f32.mrb[0].mxu0
    %2842 = vdwg.mxu0
    %v2843 = vmax.f32 %v2805, 0.0
    %v2844 = vmax.f32 %v2810, 0.0
    %v2845 = vmax.f32 %v2815, 0.0
    %v2846 = vmax.f32 %v2820, 0.0
    %v2847 = vmax.f32 %v2825, 0.0
    %v2848 = vmax.f32 %v2830, 0.0
    %v2849 = vmax.f32 %v2835, 0.0
    %v2850 = vmax.f32 %v2840, 0.0
    %v2851 = vld [vmem:[%s4] sm:$0xff]
    %v2852 = vld [vmem:[%s4 + $0x8] sm:$0xff]
    %v2853 = vld [vmem:[%s4 + $0x10] sm:$0xff]
    %v2854 = vld [vmem:[%s4 + $0x18] sm:$0xff]
    %v2855 = vld [vmem:[%s4 + $0x20] sm:$0xff]
    %v2856 = vld [vmem:[%s4 + $0x28] sm:$0xff]
    %v2857 = vld [vmem:[%s4 + $0x30] sm:$0xff]
    %v2858 = vld [vmem:[%s4 + $0x38] sm:$0xff]
    %v2859 = vlaneseq
    %v2860 = vshrl.u32 %v2859, 7
    %v2861 = vsub.s32 0, %v2860
    %v2862 = vrot.slane %v61, %v2861
    %v2864 = vsel %vm501, %v2843, 0
    %v2867 = vsel %vm501, %v2844, 0
    %v2870 = vsel %vm501, %v2845, 0
    %v2873 = vsel %vm501, %v2846, 0
    %v2876 = vsel %vm501, %v2847, 0
    %v2879 = vsel %vm501, %v2848, 0
    %v2882 = vsel %vm501, %v2849, 0
    %v2885 = vsel %vm501, %v2850, 0
    %2887 = vmatprep.subr.mxu0 0.0
    %2888 = vmatpush1.msra.mxu0 %v2851
    %2889 = vmatprep.subr.mxu0 0.0
    %2890 = vmatpush1.msra.mxu0 %v2852
    %2891 = vmatprep.subr.mxu0 0.0
    %2892 = vmatpush1.msra.mxu0 %v2853
    %2893 = vmatprep.subr.mxu0 0.0
    %2894 = vmatpush1.msra.mxu0 %v2854
    %2895 = vmatprep.subr.mxu0 0.0
    %2896 = vmatpush1.msra.mxu0 %v2855
    %2897 = vmatprep.subr.mxu0 0.0
    %2898 = vmatpush1.msra.mxu0 %v2856
    %2899 = vmatprep.subr.mxu0 0.0
    %2900 = vmatpush1.msra.mxu0 %v2857
    %2901 = vmatprep.subr.mxu0 0.0
    %2902 = vmatpush1.msra.mxu0 %v2858
    %2903 = vmatprep.subr.mxu0 0.0
    %2904 = vmatpush1.msra.mxu0 0.0
    %2905 = vmatprep.subr.mxu0 0.0
    %2906 = vmatpush1.msra.mxu0 0.0
    %2907 = vmatprep.subr.mxu0 0.0
    %2908 = vmatpush1.msra.mxu0 0.0
    %2909 = vmatprep.subr.mxu0 0.0
    %2910 = vmatpush1.msra.mxu0 0.0
    %2911 = vmatprep.subr.mxu0 0.0
    %2912 = vmatpush1.msra.mxu0 0.0
    %2913 = vmatprep.subr.mxu0 0.0
    %2914 = vmatpush1.msra.mxu0 0.0
    %2915 = vmatprep.subr.mxu0 0.0
    %2916 = vmatpush1.msra.mxu0 0.0
    %2917 = vmatprep.subr.mxu0 0.0
    %2918 = vmatpush1.msra.mxu0 0.0
    %2919 = vmatprep.subr.mxu0 0.0
    %2920 = vmatpush1.msra.mxu0 0.0
    %2921 = vmatprep.subr.mxu0 0.0
    %2922 = vmatpush1.msra.mxu0 0.0
    %2923 = vmatprep.subr.mxu0 0.0
    %2924 = vmatpush1.msra.mxu0 0.0
    %2925 = vmatprep.subr.mxu0 0.0
    %2926 = vmatpush1.msra.mxu0 0.0
    %2927 = vmatprep.subr.mxu0 0.0
    %2928 = vmatpush1.msra.mxu0 0.0
    %2929 = vmatprep.subr.mxu0 0.0
    %2930 = vmatpush1.msra.mxu0 0.0
    %2931 = vmatprep.subr.mxu0 0.0
    %2932 = vmatpush1.msra.mxu0 0.0
    %2933 = vmatprep.subr.mxu0 0.0
    %2934 = vmatpush1.msra.mxu0 0.0
    %2935 = vmatprep.subr.mxu0 0.0
    %2936 = vmatpush1.msra.mxu0 0.0
    %2937 = vmatprep.subr.mxu0 0.0
    %2938 = vmatpush1.msra.mxu0 0.0
    %2939 = vmatprep.subr.mxu0 0.0
    %2940 = vmatpush1.msra.mxu0 0.0
    %2941 = vmatprep.subr.mxu0 0.0
    %2942 = vmatpush1.msra.mxu0 0.0
    %2943 = vmatprep.subr.mxu0 0.0
    %2944 = vmatpush1.msra.mxu0 0.0
    %2945 = vmatprep.subr.mxu0 0.0
    %2946 = vmatpush1.msra.mxu0 0.0
    %2947 = vmatprep.subr.mxu0 0.0
    %2948 = vmatpush1.msra.mxu0 0.0
    %2949 = vmatprep.subr.mxu0 0.0
    %2950 = vmatpush1.msra.mxu0 0.0
    %2951 = vmatprep.mubr.f32.mxu0 0.0
    %2952 = vmatmul.mubr.f32.gmra.mrb[0].mxu0 %v2864
    %v2953 = vpop.f32.mrb[0].mxu0
    %v2954 = vadd.f32 %v2862, %v2953
    %v2955 = vpop.f32.mrb[0].mxu0
    %2956 = vmatprep.mubr.f32.mxu0 0.0
    %2957 = vmatmul.mubr.f32.gmra.mrb[0].mxu0 %v2867
    %v2958 = vpop.f32.mrb[0].mxu0
    %v2959 = vadd.f32 %v2862, %v2958
    %v2960 = vpop.f32.mrb[0].mxu0
    %2961 = vmatprep.mubr.f32.mxu0 0.0
    %2962 = vmatmul.mubr.f32.gmra.mrb[0].mxu0 %v2870
    %v2963 = vpop.f32.mrb[0].mxu0
    %v2964 = vadd.f32 %v2862, %v2963
    %v2965 = vpop.f32.mrb[0].mxu0
    %2966 = vmatprep.mubr.f32.mxu0 0.0
    %2967 = vmatmul.mubr.f32.gmra.mrb[0].mxu0 %v2873
    %v2968 = vpop.f32.mrb[0].mxu0
    %v2969 = vadd.f32 %v2862, %v2968
    %v2970 = vpop.f32.mrb[0].mxu0
    %2971 = vmatprep.mubr.f32.mxu0 0.0
    %2972 = vmatmul.mubr.f32.gmra.mrb[0].mxu0 %v2876
    %v2973 = vpop.f32.mrb[0].mxu0
    %v2974 = vadd.f32 %v2862, %v2973
    %v2975 = vpop.f32.mrb[0].mxu0
    %2976 = vmatprep.mubr.f32.mxu0 0.0
    %2977 = vmatmul.mubr.f32.gmra.mrb[0].mxu0 %v2879
    %v2978 = vpop.f32.mrb[0].mxu0
    %v2979 = vadd.f32 %v2862, %v2978
    %v2980 = vpop.f32.mrb[0].mxu0
    %2981 = vmatprep.mubr.f32.mxu0 0.0
    %2982 = vmatmul.mubr.f32.gmra.mrb[0].mxu0 %v2882
    %v2983 = vpop.f32.mrb[0].mxu0
    %v2984 = vadd.f32 %v2862, %v2983
    %v2985 = vpop.f32.mrb[0].mxu0
    %2986 = vmatprep.mubr.f32.mxu0 0.0
    %2987 = vmatmul.mubr.f32.gmra.mrb[0].mxu0 %v2885
    %v2988 = vpop.f32.mrb[0].mxu0
    %v2989 = vadd.f32 %v2862, %v2988
    %v2990 = vpop.f32.mrb[0].mxu0
    %2991 = vdwg.mxu0
    %v2992 = vadd.f32 %v2698, %v2954
    %v2993 = vadd.f32 %v2699, %v2959
    %v2994 = vadd.f32 %v2700, %v2964
    %v2995 = vadd.f32 %v2701, %v2969
    %v2996 = vadd.f32 %v2702, %v2974
    %v2997 = vadd.f32 %v2703, %v2979
    %v2998 = vadd.f32 %v2704, %v2984
    %v2999 = vadd.f32 %v2705, %v2989
    %v3000 = vsel %vm74, %v2992, 0.0
    %3001 = vadd.xlane.f32.xlu0 %v3000
    %v3002 = vpop.xlane.xlu0 %3001
    %v3003 = vsel %vm74, %v2993, 0.0
    %3004 = vadd.xlane.f32.xlu0 %v3003
    %v3005 = vpop.xlane.xlu0 %3004
    %v3006 = vsel %vm74, %v2994, 0.0
    %3007 = vadd.xlane.f32.xlu0 %v3006
    %v3008 = vpop.xlane.xlu0 %3007
    %v3009 = vsel %vm74, %v2995, 0.0
    %3010 = vadd.xlane.f32.xlu0 %v3009
    %v3011 = vpop.xlane.xlu0 %3010
    %v3012 = vsel %vm74, %v2996, 0.0
    %3013 = vadd.xlane.f32.xlu0 %v3012
    %v3014 = vpop.xlane.xlu0 %3013
    %v3015 = vsel %vm74, %v2997, 0.0
    %3016 = vadd.xlane.f32.xlu0 %v3015
    %v3017 = vpop.xlane.xlu0 %3016
    %v3018 = vsel %vm74, %v2998, 0.0
    %3019 = vadd.xlane.f32.xlu0 %v3018
    %v3020 = vpop.xlane.xlu0 %3019
    %v3021 = vsel %vm74, %v2999, 0.0
    %3022 = vadd.xlane.f32.xlu0 %v3021
    %v3023 = vpop.xlane.xlu0 %3022
    %v3024 = vmul.f32 %v3002, %v2601
    %v3025 = vmul.f32 %v3005, %v2601
    %v3026 = vmul.f32 %v3008, %v2601
    %v3027 = vmul.f32 %v3011, %v2601
    %v3028 = vmul.f32 %v3014, %v2601
    %v3029 = vmul.f32 %v3017, %v2601
    %v3030 = vmul.f32 %v3020, %v2601
    %v3031 = vmul.f32 %v3023, %v2601
    %v3032 = vsub.f32 %v2992, %v3024
    %v3033 = vsub.f32 %v2993, %v3025
    %v3034 = vsub.f32 %v2994, %v3026
    %v3035 = vsub.f32 %v2995, %v3027
    %v3036 = vsub.f32 %v2996, %v3028
    %v3037 = vsub.f32 %v2997, %v3029
    %v3038 = vsub.f32 %v2998, %v3030
    %v3039 = vsub.f32 %v2999, %v3031
    %v3040 = vmul.f32 %v3032, %v3032
    %v3041 = vmul.f32 %v3033, %v3033
    %v3042 = vmul.f32 %v3034, %v3034
    %v3043 = vmul.f32 %v3035, %v3035
    %v3044 = vmul.f32 %v3036, %v3036
    %v3045 = vmul.f32 %v3037, %v3037
    %v3046 = vmul.f32 %v3038, %v3038
    %v3047 = vmul.f32 %v3039, %v3039
    %v3048 = vsel %vm74, %v3040, 0.0
    %3049 = vadd.xlane.f32.xlu0 %v3048
    %v3050 = vpop.xlane.xlu0 %3049
    %v3051 = vsel %vm74, %v3041, 0.0
    %3052 = vadd.xlane.f32.xlu0 %v3051
    %v3053 = vpop.xlane.xlu0 %3052
    %v3054 = vsel %vm74, %v3042, 0.0
    %3055 = vadd.xlane.f32.xlu0 %v3054
    %v3056 = vpop.xlane.xlu0 %3055
    %v3057 = vsel %vm74, %v3043, 0.0
    %3058 = vadd.xlane.f32.xlu0 %v3057
    %v3059 = vpop.xlane.xlu0 %3058
    %v3060 = vsel %vm74, %v3044, 0.0
    %3061 = vadd.xlane.f32.xlu0 %v3060
    %v3062 = vpop.xlane.xlu0 %3061
    %v3063 = vsel %vm74, %v3045, 0.0
    %3064 = vadd.xlane.f32.xlu0 %v3063
    %v3065 = vpop.xlane.xlu0 %3064
    %v3066 = vsel %vm74, %v3046, 0.0
    %3067 = vadd.xlane.f32.xlu0 %v3066
    %v3068 = vpop.xlane.xlu0 %3067
    %v3069 = vsel %vm74, %v3047, 0.0
    %3070 = vadd.xlane.f32.xlu0 %v3069
    %v3071 = vpop.xlane.xlu0 %3070
    %v3072 = vmul.f32 %v3050, %v2601
    %v3073 = vmul.f32 %v3053, %v2601
    %v3074 = vmul.f32 %v3056, %v2601
    %v3075 = vmul.f32 %v3059, %v2601
    %v3076 = vmul.f32 %v3062, %v2601
    %v3077 = vmul.f32 %v3065, %v2601
    %v3078 = vmul.f32 %v3068, %v2601
    %v3079 = vmul.f32 %v3071, %v2601
    %v3080 = vadd.f32 %v3072, 1e-05
    %v3081 = vadd.f32 %v3073, 1e-05
    %v3082 = vadd.f32 %v3074, 1e-05
    %v3083 = vadd.f32 %v3075, 1e-05
    %v3084 = vadd.f32 %v3076, 1e-05
    %v3085 = vadd.f32 %v3077, 1e-05
    %v3086 = vadd.f32 %v3078, 1e-05
    %v3087 = vadd.f32 %v3079, 1e-05
    %v3088 = vrsqrt.pop %v3080
    %v3089 = vrsqrt.pop %v3081
    %v3090 = vrsqrt.pop %v3082
    %v3091 = vrsqrt.pop %v3083
    %v3092 = vrsqrt.pop %v3084
    %v3093 = vrsqrt.pop %v3085
    %v3094 = vrsqrt.pop %v3086
    %v3095 = vrsqrt.pop %v3087
    %v3096 = vmul.f32 %v3032, %v3088
    %v3097 = vmul.f32 %v3033, %v3089
    %v3098 = vmul.f32 %v3034, %v3090
    %v3099 = vmul.f32 %v3035, %v3091
    %v3100 = vmul.f32 %v3036, %v3092
    %v3101 = vmul.f32 %v3037, %v3093
    %v3102 = vmul.f32 %v3038, %v3094
    %v3103 = vmul.f32 %v3039, %v3095
    %v3104 = vlaneseq
    %v3105 = vshrl.u32 %v3104, 7
    %v3106 = vsub.s32 0, %v3105
    %v3107 = vrot.slane %v64, %v3106
    %v3108 = vmul.f32 %v3096, %v3107
    %v3109 = vmul.f32 %v3097, %v3107
    %v3110 = vmul.f32 %v3098, %v3107
    %v3111 = vmul.f32 %v3099, %v3107
    %v3112 = vmul.f32 %v3100, %v3107
    %v3113 = vmul.f32 %v3101, %v3107
    %v3114 = vmul.f32 %v3102, %v3107
    %v3115 = vmul.f32 %v3103, %v3107
    %v3116 = vlaneseq
    %v3117 = vshrl.u32 %v3116, 7
    %v3118 = vsub.s32 0, %v3117
    %v3119 = vrot.slane %v65, %v3118
    %v3120 = vadd.f32 %v3108, %v3119
    %v3121 = vadd.f32 %v3109, %v3119
    %v3122 = vadd.f32 %v3110, %v3119
    %v3123 = vadd.f32 %v3111, %v3119
    %v3124 = vadd.f32 %v3112, %v3119
    %v3125 = vadd.f32 %v3113, %v3119
    %v3126 = vadd.f32 %v3114, %v3119
    %v3127 = vadd.f32 %v3115, %v3119
    %3129 = vrot.lane.b32.xlu0 %v3121, 32
    %v3130 = vpop.permute.xlu0 %3129
    %3133 = vrot.lane.b32.xlu0 %v3122, 64
    %v3134 = vpop.permute.xlu0 %3133
    %3137 = vrot.lane.b32.xlu0 %v3123, 96
    %v3138 = vpop.permute.xlu0 %3137
    %3141 = vrot.lane.b32.xlu0 %v3125, 32
    %v3142 = vpop.permute.xlu0 %3141
    %3145 = vrot.lane.b32.xlu0 %v3126, 64
    %v3146 = vpop.permute.xlu0 %3145
    %3149 = vrot.lane.b32.xlu0 %v3127, 96
    %v3150 = vpop.permute.xlu0 %3149
    %v3152 = vsel %vm74, %v3120, %v3130
    %v3153 = vsel %vm501, %v3152, %v3134
    %vm3154 = vcmask 785408
    %v3155 = vsel %vm3154, %v3153, %v3138
    %v3156 = vsel %vm74, %v3124, %v3142
    %v3157 = vsel %vm501, %v3156, %v3146
    %v3158 = vsel %vm3154, %v3157, %v3150
    %3159 = vst [vmem:[#allocation5] sm:$0xff] %v3155
    %3160 = vst [vmem:[#allocation5 + $0x8] sm:$0xff] %v3158
    // Predicated region
    $region30: #{tpu_custom_call.1} parent=1 // pred_check
      _
    $region31: #{tpu_custom_call.1} parent=1 // pred_check_branch
      %3162 = sbr.rel (0) target = $region33
    $region32: #{tpu_custom_call.1} parent=1 // pred_region
      %s3164 = ssub.s32 256, 256
      %3165 = vsyncadd [#allocation4], %s3164
      %s3167 = sshll.u32 [#allocation5], 4
      %s3168 = int_to_ptr.vmem [resolvable:$true] %s3167
      %3170 = dma.vmem_to_hbm [thread:$0]  %s3168, 256, %s6, [#allocation4]
    $region33: #{tpu_custom_call.1} parent=1 // pred_fallthru
      _
    // Predicated region
    $region34: #{tpu_custom_call.1} parent=1 // pred_check
      _
    $region35: #{tpu_custom_call.1} parent=1 // pred_check_branch
      %3172 = sbr.rel (0) target = $region37
    $region36: #{tpu_custom_call.1} parent=1 // pred_region
      %3173 = dma.done [#allocation4], 256
    $region37: #{tpu_custom_call.1} parent=1 // pred_fallthru
      _
    %3174 = vsyncpa [#allocation3], 1
    %3175 = vsyncpa [#allocation4], 1

</llo_original>
